<compile_context>
chip_gen: v7x
topology: tpu7x:2x2x1
jax: 0.10.0
libtpu: 0.0.40
codegen_flags: <defaults>
</compile_context>

<pallas_src>
import functools

import jax
import jax.numpy as jnp
from jax.experimental import pallas as pl
from jax.experimental.pallas import tpu as pltpu

F32 = jnp.float32
BF16 = jnp.bfloat16

# A single im2col LHS tile larger than this falls back to per-dw tap groups.
_IM2COL_BYTES_CAP = 4 * 1024 * 1024


# --------------------------------------------------------------------------
# In-kernel (and reference) math helpers
# --------------------------------------------------------------------------

def _sigmoid(z):
    # Exact sigmoid: every operand here is a tiny pooled vector, so the EUP
    # exp + divide are negligible and we keep PyTorch-level gate numerics.
    return 1.0 / (1.0 + jnp.exp(-z))


def _prelu(z, slope):
    return jnp.where(z >= 0.0, z, slope * z)


# --------------------------------------------------------------------------
# Fused make_mix kernel
# --------------------------------------------------------------------------

def _make_mix_kernel(x_ref, wconv_ref, kdown_ref, kup_ref,
                     t1_ref, fdown_ref, fup_ref, t2_ref, slopes_ref,
                     o_ref, *, H, W, nCh, G, K, cout_pad, full_im2col):
    P = K // 2
    Hp, Wp = H + 2 * P, W + 2 * P
    HW = H * W
    Bb = x_ref.shape[0]
    M = Bb * HW

    x = x_ref[...]                               # (Bb, H, W, nCh) f32, read once
    xb = x.astype(BF16)                          # single f32->bf16 cast

    # ---- in-kernel halo padding (no jnp.pad HBM round-trip in the wrapper) --
    zw = jnp.zeros((Bb, H, P, nCh), BF16)
    zh = jnp.zeros((Bb, P, Wp, nCh), BF16)
    xpad = jnp.concatenate(
        [zh, jnp.concatenate([zw, xb, zw], axis=2), zh], axis=1)  # (Bb,Hp,Wp,nCh)

    # ---- fused 3x3/5x5 conv as im2col matmul(s) -----------------------------
    # dw loop is outermost: only K sublane-shifting W-slices; the dh slices
    # are leading-dim row-plane slices (free when W % 8 == 0).
    groups = []
    for dw in range(K):
        col = xpad[:, :, dw:dw + W, :].reshape(Bb, Hp * W, nCh)
        groups.append(jnp.concatenate(
            [col[:, dh * W:(dh + H) * W, :] for dh in range(K)], axis=-1))

    if full_im2col:
        # One (M, 25*nCh) @ (25*nCh, 2G) dot: full MXU K-fill, hardware
        # accumulation chain (MRB on v7x), no per-tap VALU adds.
        lhs = jnp.concatenate(groups, axis=-1).reshape(M, K * K * nCh)
        conv = jnp.dot(lhs, wconv_ref[...], preferred_element_type=F32)  # (M, 2G)
    else:
        # Per-dw tap groups: K dots with reduction depth K*nCh (>= 256).
        conv = jnp.dot(groups[0].reshape(M, K * nCh), wconv_ref[:K * nCh, :],
                       preferred_element_type=F32)
        for dw in range(1, K):
            conv = conv + jnp.dot(
                groups[dw].reshape(M, K * nCh),
                wconv_ref[dw * K * nCh:(dw + 1) * K * nCh, :],
                preferred_element_type=F32)

    # ---- dual-branch PReLU + kernel-selection SE gate ------------------------
    # y1*w + y2*w == (y1 + y2)*w because the same gate multiplies both branches.
    y1 = _prelu(conv[:, :G], slopes_ref[0])      # 3x3 branch (relu1)
    y2 = _prelu(conv[:, G:], slopes_ref[1])      # 5x5 branch (relu2)
    ysum = (y1 + y2).reshape(Bb, HW, G)

    ks = jnp.mean(ysum, axis=1)                                           # (Bb, G)
    cd = _prelu(jnp.dot(ks.astype(BF16), kdown_ref[...],
                        preferred_element_type=F32), slopes_ref[2])       # krelu
    cu = jnp.dot(cd.astype(BF16), kup_ref[...], preferred_element_type=F32)
    y = ysum * _sigmoid(cu)[:, None, :]                                   # (Bb,HW,G)

    # ---- FRM(G, G) ------------------------------------------------------------
    ex = _prelu(jnp.dot(y.reshape(M, G).astype(BF16), t1_ref[...],
                        preferred_element_type=F32), slopes_ref[3])       # (M, 4G)
    pooled = jnp.mean(ex.reshape(Bb, HW, 4 * G), axis=1)                  # (Bb, 4G)
    d = jnp.dot(pooled.astype(BF16), fdown_ref[...], preferred_element_type=F32)
    d = d * _sigmoid(d)                                                   # swish
    g = jnp.dot(d.astype(BF16), fup_ref[...], preferred_element_type=F32)
    gated = ex.reshape(Bb, HW, 4 * G) * _sigmoid(g)[:, None, :]
    yf = _prelu(jnp.dot(gated.reshape(M, 4 * G).astype(BF16), t2_ref[...],
                        preferred_element_type=F32), slopes_ref[4])       # (M, G)
    yf = yf.reshape(Bb, HW, G)

    # ---- dense / channel-shuffle concat, padded to a lane-dense 128-slab ------
    xf = x.reshape(Bb, HW, nCh)
    parts = []
    if nCh > 32:
        parts.append(xf[:, :, :nCh - 32])                 # identity channels
    parts.append(xf[:, :, nCh - 32:] + yf[:, :, :32])     # x_right + y_left
    parts.append(yf[:, :, 32:64])                         # y_right
    pad = cout_pad - (nCh + 32)
    if pad:
        parts.append(jnp.zeros((Bb, HW, pad), F32))       # lane padding (dropped later)
    o_ref[...] = jnp.concatenate(parts, axis=-1)


# --------------------------------------------------------------------------
# Wrapper
# --------------------------------------------------------------------------

def _pick_bblk(B, HW):
    """Largest divisor of B so that Bblk*HW stacked rows reach ~128 (MXU fill)."""
    want = max(1, -(-128 // HW))
    best = 1
    for d in range(1, B + 1):
        if B % d == 0 and d <= want:
            best = d
    return best


def make_mix_forward(p, x_nchw):
    """x_nchw: (B, nCh, H, W) f32 -> (B, nCh + 32, H, W) f32."""
    x = jnp.transpose(x_nchw, (0, 2, 3, 1)).astype(F32)        # NCHW -> NHWC
    B, H, W, nCh = x.shape
    G = p["kdown"].shape[0]
    K = 5                                                       # 3x3 embedded in 5x5
    assert p["wconv"].shape == (K * K * nCh, 2 * G)
    assert G == 64 and nCh >= 32        # the module's slicing hard-codes this
    HW = H * W
    cout = nCh + 32
    cout_pad = -(-cout // 128) * 128                             # lane-dense out slab
    bblk = _pick_bblk(B, HW)
    full_im2col = bblk * HW * K * K * nCh * 2 <= _IM2COL_BYTES_CAP

    kernel = functools.partial(
        _make_mix_kernel, H=H, W=W, nCh=nCh, G=G, K=K,
        cout_pad=cout_pad, full_im2col=full_im2col)

    out = pl.pallas_call(
        kernel,
        grid=(B // bblk,),
        in_specs=[
            pl.BlockSpec((bblk, H, W, nCh), lambda b: (b, 0, 0, 0)),
            pl.BlockSpec((K * K * nCh, 2 * G), lambda b: (0, 0)),
            pl.BlockSpec((G, G // 4), lambda b: (0, 0)),
            pl.BlockSpec((G // 4, G), lambda b: (0, 0)),
            pl.BlockSpec((G, 4 * G), lambda b: (0, 0)),
            pl.BlockSpec((4 * G, G // 4), lambda b: (0, 0)),
            pl.BlockSpec((G // 4, 4 * G), lambda b: (0, 0)),
            pl.BlockSpec((4 * G, G), lambda b: (0, 0)),
            pl.BlockSpec(memory_space=pltpu.MemorySpace.SMEM),
        ],
        out_specs=pl.BlockSpec((bblk, HW, cout_pad), lambda b: (b, 0, 0)),
        out_shape=jax.ShapeDtypeStruct((B, HW, cout_pad), F32),
        compiler_params=pltpu.CompilerParams(
            dimension_semantics=("parallel",),
            vmem_limit_bytes=32 * 1024 * 1024),
    )(x, p["wconv"], p["kdown"], p["kup"],
      p["t1"], p["fdown"], p["fup"], p["t2"], p["slopes"])

    out = out.reshape(B, H, W, cout_pad)[..., :cout]             # drop lane padding
    return jnp.transpose(out, (0, 3, 1, 2))                      # back to NCHW


# --------------------------------------------------------------------------
# Pure-JAX f32 reference (same weight layout, no Pallas / no bf16)
# --------------------------------------------------------------------------

def make_mix_ref(p, x_nchw):
    x = jnp.transpose(x_nchw, (0, 2, 3, 1)).astype(F32)
    B, H, W, nCh = x.shape
    K, P, G = 5, 2, 64
    HW = H * W
    s = p["slopes"]
    xp = jnp.pad(x, ((0, 0), (P, P), (P, P), (0, 0)))
    pieces = [xp[:, dh:dh + H, dw:dw + W, :]
              for dw in range(K) for dh in range(K)]
    lhs = jnp.concatenate(pieces, axis=-1).reshape(B * HW, K * K * nCh)
    conv = lhs @ p["wconv"].astype(F32)
    y1 = _prelu(conv[:, :G], s[0])
    y2 = _prelu(conv[:, G:], s[1])
    ysum = (y1 + y2).reshape(B, HW, G)
    ks = jnp.mean(ysum, axis=1)
    cd = _prelu(ks @ p["kdown"].astype(F32), s[2])
    cu = cd @ p["kup"].astype(F32)
    y = ysum * _sigmoid(cu)[:, None, :]
    ex = _prelu(y.reshape(B * HW, G) @ p["t1"].astype(F32), s[3])
    pooled = jnp.mean(ex.reshape(B, HW, 4 * G), axis=1)
    d = pooled @ p["fdown"].astype(F32)
    d = d * _sigmoid(d)
    g = d @ p["fup"].astype(F32)
    gated = ex.reshape(B, HW, 4 * G) * _sigmoid(g)[:, None, :]
    yf = _prelu(gated.reshape(B * HW, 4 * G) @ p["t2"].astype(F32), s[4])
    yf = yf.reshape(B, H, W, G)
    out = jnp.concatenate(
        [x[..., :nCh - 32], x[..., nCh - 32:] + yf[..., :32], yf[..., 32:64]],
        axis=-1)
    return jnp.transpose(out, (0, 3, 1, 2))


# --------------------------------------------------------------------------
# Deterministic parameter init (shapes mirror the PyTorch module; weights are
# pre-transposed / pre-combined and cast to bf16 for the MXU)
# --------------------------------------------------------------------------

def _conv_w(key, cout, cin, k):
    std = (cin * k * k) ** -0.5
    return jax.random.normal(key, (cout, cin, k, k), F32) * std   # torch layout


def _w1x1(key, cout, cin):
    return _conv_w(key, cout, cin, 1)[:, :, 0, 0].T.astype(BF16)  # (cin, cout)


def _combine_branch_weights(w3, w5):
    """3x3 weights zero-padded into the 5x5 footprint, concat on Cout, then
    flattened to the im2col layout: rows ordered (kw, kh, cin)."""
    w3p = jnp.pad(w3, ((0, 0), (0, 0), (1, 1), (1, 1)))           # (G, nCh, 5, 5)
    wc = jnp.concatenate([w3p, w5], axis=0)                       # (2G, nCh, 5, 5)
    wc = jnp.transpose(wc, (3, 2, 1, 0))                          # (kw, kh, cin, 2G)
    rows = wc.shape[0] * wc.shape[1] * wc.shape[2]
    return wc.reshape(rows, wc.shape[3]).astype(BF16)             # (25*nCh, 2G)


def init_make_mix(key, nCh, G=64):
    ks = jax.random.split(key, 8)
    w3 = _conv_w(ks[0], G, nCh, 3)
    w5 = _conv_w(ks[1], G, nCh, 5)
    return dict(
        wconv=_combine_branch_weights(w3, w5),   # (25*nCh, 2G) bf16
        kdown=_w1x1(ks[2], G // 4, G),           # conv_down: (G, G//4)
        kup=_w1x1(ks[3], G, G // 4),             # conv_up:   (G//4, G)
        t1=_w1x1(ks[4], G * 4, G),               # frm.trans1: (G, 4G)
        fdown=_w1x1(ks[5], G // 4, G * 4),       # frm.conv_down: (4G, G//4)
        fup=_w1x1(ks[6], G * 4, G // 4),         # frm.conv_up:   (G//4, 4G)
        t2=_w1x1(ks[7], G, G * 4),               # frm.trans2: (4G, G)
        # [relu1, relu2, krelu, frm.trans1, frm.trans2] PReLU slopes (torch default 0.25)
        slopes=jnp.full((5,), 0.25, F32),
    )


# --------------------------------------------------------------------------

if __name__ == "__main__":
    nChannels, growthRate = 64, 64
    B, H, W = 2, 8, 8

    key = jax.random.PRNGKey(0)
    kp, kx = jax.random.split(key)
    params = init_make_mix(kp, nChannels, growthRate)
    x = jax.random.normal(kx, (B, nChannels, H, W), F32)

    fwd = jax.jit(make_mix_forward)
    out = jax.block_until_ready(fwd(params, x))

    assert out.shape == (B, nChannels + 32, H, W), out.shape
    assert bool(jnp.all(jnp.isfinite(out)))

    ref = make_mix_ref(params, x)
    err = float(jnp.max(jnp.abs(out - ref)))
    assert err < 1e-1, f"max |kernel - ref| = {err}"
    print("KERNEL_OK")
</pallas_src>

<mosaic_0001>
module attributes {stable_mosaic.version = 11 : i64} {
  func.func @_make_mix_kernel(%arg0: i32, %arg1: memref<2x8x8x64xf32, #tpu.memory_space<vmem>>, %arg2: memref<1600x128xbf16, #tpu.memory_space<vmem>>, %arg3: memref<64x16xbf16, #tpu.memory_space<vmem>>, %arg4: memref<16x64xbf16, #tpu.memory_space<vmem>>, %arg5: memref<64x256xbf16, #tpu.memory_space<vmem>>, %arg6: memref<256x16xbf16, #tpu.memory_space<vmem>>, %arg7: memref<16x256xbf16, #tpu.memory_space<vmem>>, %arg8: memref<256x64xbf16, #tpu.memory_space<vmem>>, %arg9: memref<5xf32, #tpu.memory_space<smem>>, %arg10: memref<2x64x128xf32, #tpu.memory_space<vmem>>) attributes {dimension_semantics = [#tpu.dimension_semantics<parallel>], iteration_bounds = array<i64: 1>, scalar_prefetch = 0 : i64, scratch_operands = 0 : i64, tpu.core_type = #tpu.core_type<tc>, window_params = [{transform_indices = @transform_0, window_bounds = array<i64: 2, 8, 8, 64>}, {pipeline_mode = #tpu.pipeline_mode<synchronous>, transform_indices = @transform_1, window_bounds = array<i64: 1600, 128>}, {pipeline_mode = #tpu.pipeline_mode<synchronous>, transform_indices = @transform_2, window_bounds = array<i64: 64, 16>}, {pipeline_mode = #tpu.pipeline_mode<synchronous>, transform_indices = @transform_3, window_bounds = array<i64: 16, 64>}, {pipeline_mode = #tpu.pipeline_mode<synchronous>, transform_indices = @transform_4, window_bounds = array<i64: 64, 256>}, {pipeline_mode = #tpu.pipeline_mode<synchronous>, transform_indices = @transform_5, window_bounds = array<i64: 256, 16>}, {pipeline_mode = #tpu.pipeline_mode<synchronous>, transform_indices = @transform_6, window_bounds = array<i64: 16, 256>}, {pipeline_mode = #tpu.pipeline_mode<synchronous>, transform_indices = @transform_7, window_bounds = array<i64: 256, 64>}, {transform_indices = @transform_8, window_bounds = array<i64: 5>}, {transform_indices = @transform_9, window_bounds = array<i64: 2, 64, 128>}]} {
    %c0 = arith.constant 0 : index
    %c0_0 = arith.constant 0 : index
    %c0_1 = arith.constant 0 : index
    %c0_2 = arith.constant 0 : index
    %0 = vector.load %arg1[%c0, %c0_0, %c0_1, %c0_2] : memref<2x8x8x64xf32, #tpu.memory_space<vmem>>, vector<2x8x8x64xf32>
    %1 = arith.truncf %0 : vector<2x8x8x64xf32> to vector<2x8x8x64xbf16>
    %cst = arith.constant 0.000000e+00 : bf16
    %2 = vector.broadcast %cst : bf16 to vector<2x8x2x64xbf16>
    %cst_3 = arith.constant 0.000000e+00 : bf16
    %3 = vector.broadcast %cst_3 : bf16 to vector<2x2x12x64xbf16>
    %4 = tpu.concatenate %2, %1, %2 in 2 : vector<2x8x2x64xbf16>, vector<2x8x8x64xbf16>, vector<2x8x2x64xbf16> -> vector<2x8x12x64xbf16>
    %5 = tpu.concatenate %3, %4, %3 in 1 : vector<2x2x12x64xbf16>, vector<2x8x12x64xbf16>, vector<2x2x12x64xbf16> -> vector<2x12x12x64xbf16>
    %6 = vector.extract_strided_slice %5 {offsets = [0, 0, 0, 0], sizes = [2, 12, 8, 64], strides = [1, 1, 1, 1]} : vector<2x12x12x64xbf16> to vector<2x12x8x64xbf16>
    %7 = vector.shape_cast %6 : vector<2x12x8x64xbf16> to vector<2x96x64xbf16>
    %8 = vector.extract_strided_slice %7 {offsets = [0, 0, 0], sizes = [2, 64, 64], strides = [1, 1, 1]} : vector<2x96x64xbf16> to vector<2x64x64xbf16>
    %9 = vector.extract_strided_slice %7 {offsets = [0, 8, 0], sizes = [2, 64, 64], strides = [1, 1, 1]} : vector<2x96x64xbf16> to vector<2x64x64xbf16>
    %10 = vector.extract_strided_slice %7 {offsets = [0, 16, 0], sizes = [2, 64, 64], strides = [1, 1, 1]} : vector<2x96x64xbf16> to vector<2x64x64xbf16>
    %11 = vector.extract_strided_slice %7 {offsets = [0, 24, 0], sizes = [2, 64, 64], strides = [1, 1, 1]} : vector<2x96x64xbf16> to vector<2x64x64xbf16>
    %12 = vector.extract_strided_slice %7 {offsets = [0, 32, 0], sizes = [2, 64, 64], strides = [1, 1, 1]} : vector<2x96x64xbf16> to vector<2x64x64xbf16>
    %13 = tpu.concatenate %8, %9, %10, %11, %12 in 2 : vector<2x64x64xbf16>, vector<2x64x64xbf16>, vector<2x64x64xbf16>, vector<2x64x64xbf16>, vector<2x64x64xbf16> -> vector<2x64x320xbf16>
    %14 = vector.extract_strided_slice %5 {offsets = [0, 0, 1, 0], sizes = [2, 12, 8, 64], strides = [1, 1, 1, 1]} : vector<2x12x12x64xbf16> to vector<2x12x8x64xbf16>
    %15 = vector.shape_cast %14 : vector<2x12x8x64xbf16> to vector<2x96x64xbf16>
    %16 = vector.extract_strided_slice %15 {offsets = [0, 0, 0], sizes = [2, 64, 64], strides = [1, 1, 1]} : vector<2x96x64xbf16> to vector<2x64x64xbf16>
    %17 = vector.extract_strided_slice %15 {offsets = [0, 8, 0], sizes = [2, 64, 64], strides = [1, 1, 1]} : vector<2x96x64xbf16> to vector<2x64x64xbf16>
    %18 = vector.extract_strided_slice %15 {offsets = [0, 16, 0], sizes = [2, 64, 64], strides = [1, 1, 1]} : vector<2x96x64xbf16> to vector<2x64x64xbf16>
    %19 = vector.extract_strided_slice %15 {offsets = [0, 24, 0], sizes = [2, 64, 64], strides = [1, 1, 1]} : vector<2x96x64xbf16> to vector<2x64x64xbf16>
    %20 = vector.extract_strided_slice %15 {offsets = [0, 32, 0], sizes = [2, 64, 64], strides = [1, 1, 1]} : vector<2x96x64xbf16> to vector<2x64x64xbf16>
    %21 = tpu.concatenate %16, %17, %18, %19, %20 in 2 : vector<2x64x64xbf16>, vector<2x64x64xbf16>, vector<2x64x64xbf16>, vector<2x64x64xbf16>, vector<2x64x64xbf16> -> vector<2x64x320xbf16>
    %22 = vector.extract_strided_slice %5 {offsets = [0, 0, 2, 0], sizes = [2, 12, 8, 64], strides = [1, 1, 1, 1]} : vector<2x12x12x64xbf16> to vector<2x12x8x64xbf16>
    %23 = vector.shape_cast %22 : vector<2x12x8x64xbf16> to vector<2x96x64xbf16>
    %24 = vector.extract_strided_slice %23 {offsets = [0, 0, 0], sizes = [2, 64, 64], strides = [1, 1, 1]} : vector<2x96x64xbf16> to vector<2x64x64xbf16>
    %25 = vector.extract_strided_slice %23 {offsets = [0, 8, 0], sizes = [2, 64, 64], strides = [1, 1, 1]} : vector<2x96x64xbf16> to vector<2x64x64xbf16>
    %26 = vector.extract_strided_slice %23 {offsets = [0, 16, 0], sizes = [2, 64, 64], strides = [1, 1, 1]} : vector<2x96x64xbf16> to vector<2x64x64xbf16>
    %27 = vector.extract_strided_slice %23 {offsets = [0, 24, 0], sizes = [2, 64, 64], strides = [1, 1, 1]} : vector<2x96x64xbf16> to vector<2x64x64xbf16>
    %28 = vector.extract_strided_slice %23 {offsets = [0, 32, 0], sizes = [2, 64, 64], strides = [1, 1, 1]} : vector<2x96x64xbf16> to vector<2x64x64xbf16>
    %29 = tpu.concatenate %24, %25, %26, %27, %28 in 2 : vector<2x64x64xbf16>, vector<2x64x64xbf16>, vector<2x64x64xbf16>, vector<2x64x64xbf16>, vector<2x64x64xbf16> -> vector<2x64x320xbf16>
    %30 = vector.extract_strided_slice %5 {offsets = [0, 0, 3, 0], sizes = [2, 12, 8, 64], strides = [1, 1, 1, 1]} : vector<2x12x12x64xbf16> to vector<2x12x8x64xbf16>
    %31 = vector.shape_cast %30 : vector<2x12x8x64xbf16> to vector<2x96x64xbf16>
    %32 = vector.extract_strided_slice %31 {offsets = [0, 0, 0], sizes = [2, 64, 64], strides = [1, 1, 1]} : vector<2x96x64xbf16> to vector<2x64x64xbf16>
    %33 = vector.extract_strided_slice %31 {offsets = [0, 8, 0], sizes = [2, 64, 64], strides = [1, 1, 1]} : vector<2x96x64xbf16> to vector<2x64x64xbf16>
    %34 = vector.extract_strided_slice %31 {offsets = [0, 16, 0], sizes = [2, 64, 64], strides = [1, 1, 1]} : vector<2x96x64xbf16> to vector<2x64x64xbf16>
    %35 = vector.extract_strided_slice %31 {offsets = [0, 24, 0], sizes = [2, 64, 64], strides = [1, 1, 1]} : vector<2x96x64xbf16> to vector<2x64x64xbf16>
    %36 = vector.extract_strided_slice %31 {offsets = [0, 32, 0], sizes = [2, 64, 64], strides = [1, 1, 1]} : vector<2x96x64xbf16> to vector<2x64x64xbf16>
    %37 = tpu.concatenate %32, %33, %34, %35, %36 in 2 : vector<2x64x64xbf16>, vector<2x64x64xbf16>, vector<2x64x64xbf16>, vector<2x64x64xbf16>, vector<2x64x64xbf16> -> vector<2x64x320xbf16>
    %38 = vector.extract_strided_slice %5 {offsets = [0, 0, 4, 0], sizes = [2, 12, 8, 64], strides = [1, 1, 1, 1]} : vector<2x12x12x64xbf16> to vector<2x12x8x64xbf16>
    %39 = vector.shape_cast %38 : vector<2x12x8x64xbf16> to vector<2x96x64xbf16>
    %40 = vector.extract_strided_slice %39 {offsets = [0, 0, 0], sizes = [2, 64, 64], strides = [1, 1, 1]} : vector<2x96x64xbf16> to vector<2x64x64xbf16>
    %41 = vector.extract_strided_slice %39 {offsets = [0, 8, 0], sizes = [2, 64, 64], strides = [1, 1, 1]} : vector<2x96x64xbf16> to vector<2x64x64xbf16>
    %42 = vector.extract_strided_slice %39 {offsets = [0, 16, 0], sizes = [2, 64, 64], strides = [1, 1, 1]} : vector<2x96x64xbf16> to vector<2x64x64xbf16>
    %43 = vector.extract_strided_slice %39 {offsets = [0, 24, 0], sizes = [2, 64, 64], strides = [1, 1, 1]} : vector<2x96x64xbf16> to vector<2x64x64xbf16>
    %44 = vector.extract_strided_slice %39 {offsets = [0, 32, 0], sizes = [2, 64, 64], strides = [1, 1, 1]} : vector<2x96x64xbf16> to vector<2x64x64xbf16>
    %45 = tpu.concatenate %40, %41, %42, %43, %44 in 2 : vector<2x64x64xbf16>, vector<2x64x64xbf16>, vector<2x64x64xbf16>, vector<2x64x64xbf16>, vector<2x64x64xbf16> -> vector<2x64x320xbf16>
    %46 = tpu.concatenate %13, %21, %29, %37, %45 in 2 : vector<2x64x320xbf16>, vector<2x64x320xbf16>, vector<2x64x320xbf16>, vector<2x64x320xbf16>, vector<2x64x320xbf16> -> vector<2x64x1600xbf16>
    %47 = vector.shape_cast %46 : vector<2x64x1600xbf16> to vector<128x1600xbf16>
    %c0_4 = arith.constant 0 : index
    %c0_5 = arith.constant 0 : index
    %48 = vector.load %arg2[%c0_4, %c0_5] : memref<1600x128xbf16, #tpu.memory_space<vmem>>, vector<1600x128xbf16>
    %cst_6 = arith.constant dense<0.000000e+00> : vector<128x128xf32>
    %49 = tpu.matmul %47, %48, %cst_6 {dimension_numbers = #tpu.dot_dimension_numbers<[1], [0], [0], [1], [0, 0, 1, 1], [], []>} : vector<128x1600xbf16>, vector<1600x128xbf16>, vector<128x128xf32> -> vector<128x128xf32>
    %50 = vector.extract_strided_slice %49 {offsets = [0, 0], sizes = [128, 64], strides = [1, 1]} : vector<128x128xf32> to vector<128x64xf32>
    %c0_7 = arith.constant 0 : index
    %51 = memref.load %arg9[%c0_7] : memref<5xf32, #tpu.memory_space<smem>>
    %cst_8 = arith.constant 0.000000e+00 : f32
    %52 = vector.broadcast %cst_8 : f32 to vector<128x64xf32>
    %53 = arith.cmpf oge, %50, %52 : vector<128x64xf32>
    %54 = vector.broadcast %51 : f32 to vector<128x64xf32>
    %55 = arith.mulf %54, %50 : vector<128x64xf32>
    %56 = arith.select %53, %50, %55 : vector<128x64xi1>, vector<128x64xf32>
    %57 = vector.extract_strided_slice %49 {offsets = [0, 64], sizes = [128, 64], strides = [1, 1]} : vector<128x128xf32> to vector<128x64xf32>
    %c1 = arith.constant 1 : index
    %58 = memref.load %arg9[%c1] : memref<5xf32, #tpu.memory_space<smem>>
    %cst_9 = arith.constant 0.000000e+00 : f32
    %59 = vector.broadcast %cst_9 : f32 to vector<128x64xf32>
    %60 = arith.cmpf oge, %57, %59 : vector<128x64xf32>
    %61 = vector.broadcast %58 : f32 to vector<128x64xf32>
    %62 = arith.mulf %61, %57 : vector<128x64xf32>
    %63 = arith.select %60, %57, %62 : vector<128x64xi1>, vector<128x64xf32>
    %64 = arith.addf %56, %63 : vector<128x64xf32>
    %65 = vector.shape_cast %64 : vector<128x64xf32> to vector<2x64x64xf32>
    %cst_10 = arith.constant dense<0.000000e+00> : vector<2x64xf32>
    %66 = vector.multi_reduction <add>, %65, %cst_10 [1] : vector<2x64x64xf32> to vector<2x64xf32>
    %cst_11 = arith.constant 6.400000e+01 : f32
    %67 = vector.broadcast %cst_11 : f32 to vector<2x64xf32>
    %68 = arith.divf %66, %67 : vector<2x64xf32>
    %69 = arith.truncf %68 : vector<2x64xf32> to vector<2x64xbf16>
    %c0_12 = arith.constant 0 : index
    %c0_13 = arith.constant 0 : index
    %70 = vector.load %arg3[%c0_12, %c0_13] : memref<64x16xbf16, #tpu.memory_space<vmem>>, vector<64x16xbf16>
    %cst_14 = arith.constant dense<0.000000e+00> : vector<2x16xf32>
    %71 = tpu.matmul %69, %70, %cst_14 {dimension_numbers = #tpu.dot_dimension_numbers<[1], [0], [0], [1], [0, 0, 1, 1], [], []>} : vector<2x64xbf16>, vector<64x16xbf16>, vector<2x16xf32> -> vector<2x16xf32>
    %c2 = arith.constant 2 : index
    %72 = memref.load %arg9[%c2] : memref<5xf32, #tpu.memory_space<smem>>
    %cst_15 = arith.constant 0.000000e+00 : f32
    %73 = vector.broadcast %cst_15 : f32 to vector<2x16xf32>
    %74 = arith.cmpf oge, %71, %73 : vector<2x16xf32>
    %75 = vector.broadcast %72 : f32 to vector<2x16xf32>
    %76 = arith.mulf %75, %71 : vector<2x16xf32>
    %77 = arith.select %74, %71, %76 : vector<2x16xi1>, vector<2x16xf32>
    %78 = arith.truncf %77 : vector<2x16xf32> to vector<2x16xbf16>
    %c0_16 = arith.constant 0 : index
    %c0_17 = arith.constant 0 : index
    %79 = vector.load %arg4[%c0_16, %c0_17] : memref<16x64xbf16, #tpu.memory_space<vmem>>, vector<16x64xbf16>
    %cst_18 = arith.constant dense<0.000000e+00> : vector<2x64xf32>
    %80 = tpu.matmul %78, %79, %cst_18 {dimension_numbers = #tpu.dot_dimension_numbers<[1], [0], [0], [1], [0, 0, 1, 1], [], []>} : vector<2x16xbf16>, vector<16x64xbf16>, vector<2x64xf32> -> vector<2x64xf32>
    %cst_19 = arith.constant 0.000000e+00 : f32
    %81 = vector.broadcast %cst_19 : f32 to vector<2x64xf32>
    %82 = arith.subf %81, %80 : vector<2x64xf32>
    %83 = math.exp %82 : vector<2x64xf32>
    %cst_20 = arith.constant 1.000000e+00 : f32
    %84 = vector.broadcast %cst_20 : f32 to vector<2x64xf32>
    %85 = arith.addf %84, %83 : vector<2x64xf32>
    %cst_21 = arith.constant 1.000000e+00 : f32
    %86 = vector.broadcast %cst_21 : f32 to vector<2x64xf32>
    %87 = arith.divf %86, %85 : vector<2x64xf32>
    %88 = vector.shape_cast %87 : vector<2x64xf32> to vector<2x1x64xf32>
    %89 = vector.broadcast %88 : vector<2x1x64xf32> to vector<2x64x64xf32>
    %90 = arith.mulf %65, %89 : vector<2x64x64xf32>
    %91 = vector.shape_cast %90 : vector<2x64x64xf32> to vector<128x64xf32>
    %92 = arith.truncf %91 : vector<128x64xf32> to vector<128x64xbf16>
    %c0_22 = arith.constant 0 : index
    %c0_23 = arith.constant 0 : index
    %93 = vector.load %arg5[%c0_22, %c0_23] : memref<64x256xbf16, #tpu.memory_space<vmem>>, vector<64x256xbf16>
    %cst_24 = arith.constant dense<0.000000e+00> : vector<128x256xf32>
    %94 = tpu.matmul %92, %93, %cst_24 {dimension_numbers = #tpu.dot_dimension_numbers<[1], [0], [0], [1], [0, 0, 1, 1], [], []>} : vector<128x64xbf16>, vector<64x256xbf16>, vector<128x256xf32> -> vector<128x256xf32>
    %c3 = arith.constant 3 : index
    %95 = memref.load %arg9[%c3] : memref<5xf32, #tpu.memory_space<smem>>
    %cst_25 = arith.constant 0.000000e+00 : f32
    %96 = vector.broadcast %cst_25 : f32 to vector<128x256xf32>
    %97 = arith.cmpf oge, %94, %96 : vector<128x256xf32>
    %98 = vector.broadcast %95 : f32 to vector<128x256xf32>
    %99 = arith.mulf %98, %94 : vector<128x256xf32>
    %100 = arith.select %97, %94, %99 : vector<128x256xi1>, vector<128x256xf32>
    %101 = vector.shape_cast %100 : vector<128x256xf32> to vector<2x64x256xf32>
    %cst_26 = arith.constant dense<0.000000e+00> : vector<2x256xf32>
    %102 = vector.multi_reduction <add>, %101, %cst_26 [1] : vector<2x64x256xf32> to vector<2x256xf32>
    %cst_27 = arith.constant 6.400000e+01 : f32
    %103 = vector.broadcast %cst_27 : f32 to vector<2x256xf32>
    %104 = arith.divf %102, %103 : vector<2x256xf32>
    %105 = arith.truncf %104 : vector<2x256xf32> to vector<2x256xbf16>
    %c0_28 = arith.constant 0 : index
    %c0_29 = arith.constant 0 : index
    %106 = vector.load %arg6[%c0_28, %c0_29] : memref<256x16xbf16, #tpu.memory_space<vmem>>, vector<256x16xbf16>
    %cst_30 = arith.constant dense<0.000000e+00> : vector<2x16xf32>
    %107 = tpu.matmul %105, %106, %cst_30 {dimension_numbers = #tpu.dot_dimension_numbers<[1], [0], [0], [1], [0, 0, 1, 1], [], []>} : vector<2x256xbf16>, vector<256x16xbf16>, vector<2x16xf32> -> vector<2x16xf32>
    %cst_31 = arith.constant 0.000000e+00 : f32
    %108 = vector.broadcast %cst_31 : f32 to vector<2x16xf32>
    %109 = arith.subf %108, %107 : vector<2x16xf32>
    %110 = math.exp %109 : vector<2x16xf32>
    %cst_32 = arith.constant 1.000000e+00 : f32
    %111 = vector.broadcast %cst_32 : f32 to vector<2x16xf32>
    %112 = arith.addf %111, %110 : vector<2x16xf32>
    %cst_33 = arith.constant 1.000000e+00 : f32
    %113 = vector.broadcast %cst_33 : f32 to vector<2x16xf32>
    %114 = arith.divf %113, %112 : vector<2x16xf32>
    %115 = arith.mulf %107, %114 : vector<2x16xf32>
    %116 = arith.truncf %115 : vector<2x16xf32> to vector<2x16xbf16>
    %c0_34 = arith.constant 0 : index
    %c0_35 = arith.constant 0 : index
    %117 = vector.load %arg7[%c0_34, %c0_35] : memref<16x256xbf16, #tpu.memory_space<vmem>>, vector<16x256xbf16>
    %cst_36 = arith.constant dense<0.000000e+00> : vector<2x256xf32>
    %118 = tpu.matmul %116, %117, %cst_36 {dimension_numbers = #tpu.dot_dimension_numbers<[1], [0], [0], [1], [0, 0, 1, 1], [], []>} : vector<2x16xbf16>, vector<16x256xbf16>, vector<2x256xf32> -> vector<2x256xf32>
    %119 = vector.shape_cast %100 : vector<128x256xf32> to vector<2x64x256xf32>
    %cst_37 = arith.constant 0.000000e+00 : f32
    %120 = vector.broadcast %cst_37 : f32 to vector<2x256xf32>
    %121 = arith.subf %120, %118 : vector<2x256xf32>
    %122 = math.exp %121 : vector<2x256xf32>
    %cst_38 = arith.constant 1.000000e+00 : f32
    %123 = vector.broadcast %cst_38 : f32 to vector<2x256xf32>
    %124 = arith.addf %123, %122 : vector<2x256xf32>
    %cst_39 = arith.constant 1.000000e+00 : f32
    %125 = vector.broadcast %cst_39 : f32 to vector<2x256xf32>
    %126 = arith.divf %125, %124 : vector<2x256xf32>
    %127 = vector.shape_cast %126 : vector<2x256xf32> to vector<2x1x256xf32>
    %128 = vector.broadcast %127 : vector<2x1x256xf32> to vector<2x64x256xf32>
    %129 = arith.mulf %119, %128 : vector<2x64x256xf32>
    %130 = vector.shape_cast %129 : vector<2x64x256xf32> to vector<128x256xf32>
    %131 = arith.truncf %130 : vector<128x256xf32> to vector<128x256xbf16>
    %c0_40 = arith.constant 0 : index
    %c0_41 = arith.constant 0 : index
    %132 = vector.load %arg8[%c0_40, %c0_41] : memref<256x64xbf16, #tpu.memory_space<vmem>>, vector<256x64xbf16>
    %cst_42 = arith.constant dense<0.000000e+00> : vector<128x64xf32>
    %133 = tpu.matmul %131, %132, %cst_42 {dimension_numbers = #tpu.dot_dimension_numbers<[1], [0], [0], [1], [0, 0, 1, 1], [], []>} : vector<128x256xbf16>, vector<256x64xbf16>, vector<128x64xf32> -> vector<128x64xf32>
    %c4 = arith.constant 4 : index
    %134 = memref.load %arg9[%c4] : memref<5xf32, #tpu.memory_space<smem>>
    %cst_43 = arith.constant 0.000000e+00 : f32
    %135 = vector.broadcast %cst_43 : f32 to vector<128x64xf32>
    %136 = arith.cmpf oge, %133, %135 : vector<128x64xf32>
    %137 = vector.broadcast %134 : f32 to vector<128x64xf32>
    %138 = arith.mulf %137, %133 : vector<128x64xf32>
    %139 = arith.select %136, %133, %138 : vector<128x64xi1>, vector<128x64xf32>
    %140 = vector.shape_cast %139 : vector<128x64xf32> to vector<2x64x64xf32>
    %141 = vector.shape_cast %0 : vector<2x8x8x64xf32> to vector<2x64x64xf32>
    %142 = vector.extract_strided_slice %141 {offsets = [0, 0, 0], sizes = [2, 64, 32], strides = [1, 1, 1]} : vector<2x64x64xf32> to vector<2x64x32xf32>
    %143 = vector.extract_strided_slice %141 {offsets = [0, 0, 32], sizes = [2, 64, 32], strides = [1, 1, 1]} : vector<2x64x64xf32> to vector<2x64x32xf32>
    %144 = vector.extract_strided_slice %140 {offsets = [0, 0, 0], sizes = [2, 64, 32], strides = [1, 1, 1]} : vector<2x64x64xf32> to vector<2x64x32xf32>
    %145 = arith.addf %143, %144 : vector<2x64x32xf32>
    %146 = vector.extract_strided_slice %140 {offsets = [0, 0, 32], sizes = [2, 64, 32], strides = [1, 1, 1]} : vector<2x64x64xf32> to vector<2x64x32xf32>
    %cst_44 = arith.constant 0.000000e+00 : f32
    %147 = vector.broadcast %cst_44 : f32 to vector<2x64x32xf32>
    %148 = tpu.concatenate %142, %145, %146, %147 in 2 : vector<2x64x32xf32>, vector<2x64x32xf32>, vector<2x64x32xf32>, vector<2x64x32xf32> -> vector<2x64x128xf32>
    %c0_45 = arith.constant 0 : index
    %c0_46 = arith.constant 0 : index
    %c0_47 = arith.constant 0 : index
    %149 = vector.load %arg10[%c0_45, %c0_46, %c0_47] : memref<2x64x128xf32, #tpu.memory_space<vmem>>, vector<2x64x128xf32>
    tpu.vector_store %arg10[%c0_45, %c0_46, %c0_47], %148 {strides = array<i32>} : memref<2x64x128xf32, #tpu.memory_space<vmem>>, vector<2x64x128xf32>,
    return
  }
  func.func @transform_0(%arg0: i32) -> (i32, i32, i32, i32) {
    %c0_i32 = arith.constant 0 : i32
    %c0_i32_0 = arith.constant 0 : i32
    %c0_i32_1 = arith.constant 0 : i32
    %c0_i32_2 = arith.constant 0 : i32
    return %arg0, %c0_i32, %c0_i32_0, %c0_i32_1 : i32, i32, i32, i32
  }
  func.func @transform_1(%arg0: i32) -> (i32, i32) {
    %c0_i32 = arith.constant 0 : i32
    %c0_i32_0 = arith.constant 0 : i32
    %c0_i32_1 = arith.constant 0 : i32
    return %c0_i32, %c0_i32_0 : i32, i32
  }
  func.func @transform_2(%arg0: i32) -> (i32, i32) {
    %c0_i32 = arith.constant 0 : i32
    %c0_i32_0 = arith.constant 0 : i32
    %c0_i32_1 = arith.constant 0 : i32
    return %c0_i32, %c0_i32_0 : i32, i32
  }
  func.func @transform_3(%arg0: i32) -> (i32, i32) {
    %c0_i32 = arith.constant 0 : i32
    %c0_i32_0 = arith.constant 0 : i32
    %c0_i32_1 = arith.constant 0 : i32
    return %c0_i32, %c0_i32_0 : i32, i32
  }
  func.func @transform_4(%arg0: i32) -> (i32, i32) {
    %c0_i32 = arith.constant 0 : i32
    %c0_i32_0 = arith.constant 0 : i32
    %c0_i32_1 = arith.constant 0 : i32
    return %c0_i32, %c0_i32_0 : i32, i32
  }
  func.func @transform_5(%arg0: i32) -> (i32, i32) {
    %c0_i32 = arith.constant 0 : i32
    %c0_i32_0 = arith.constant 0 : i32
    %c0_i32_1 = arith.constant 0 : i32
    return %c0_i32, %c0_i32_0 : i32, i32
  }
  func.func @transform_6(%arg0: i32) -> (i32, i32) {
    %c0_i32 = arith.constant 0 : i32
    %c0_i32_0 = arith.constant 0 : i32
    %c0_i32_1 = arith.constant 0 : i32
    return %c0_i32, %c0_i32_0 : i32, i32
  }
  func.func @transform_7(%arg0: i32) -> (i32, i32) {
    %c0_i32 = arith.constant 0 : i32
    %c0_i32_0 = arith.constant 0 : i32
    %c0_i32_1 = arith.constant 0 : i32
    return %c0_i32, %c0_i32_0 : i32, i32
  }
  func.func @transform_8(%arg0: i32) -> i32 {
    %c0_i32 = arith.constant 0 : i32
    %c0_i32_0 = arith.constant 0 : i32
    return %c0_i32 : i32
  }
  func.func @transform_9(%arg0: i32) -> (i32, i32, i32) {
    %c0_i32 = arith.constant 0 : i32
    %c0_i32_0 = arith.constant 0 : i32
    %c0_i32_1 = arith.constant 0 : i32
    return %arg0, %c0_i32, %c0_i32_0 : i32, i32, i32
  }
}

</mosaic_0001>

<llo_original>
// kernel: make_mix_forward.1
$region0: #{make_mix_forward.1}
  #allocation0 [shape = 'u32[]', space=smem, size = 0x4, offset = 0x4, fixed_abs, tag = 'smem constant byte address 0x4 - core index']
  #allocation1 [shape = 'u32[144,128]{1,0:T(1,128)}', space=vmem, size = 0x12000, scoped, tag = 'internal scratch']
  %s0 = inlined_call_operand.vmem [shape: f32[2,8,8,64], index: 0, kind: input, shape index: {}]
  %s1 = inlined_call_operand.hbm [shape: bf16[1600,128], index: 1, kind: input, shape index: {}]
  %s2 = inlined_call_operand.vmem [shape: bf16[64,16], index: 2, kind: input, shape index: {}]
  %s3 = inlined_call_operand.vmem [shape: bf16[16,64], index: 3, kind: input, shape index: {}]
  %s4 = inlined_call_operand.vmem [shape: bf16[64,256], index: 4, kind: input, shape index: {}]
  %s5 = inlined_call_operand.vmem [shape: bf16[256,16], index: 5, kind: input, shape index: {}]
  %s6 = inlined_call_operand.vmem [shape: bf16[16,256], index: 6, kind: input, shape index: {}]
  %s7 = inlined_call_operand.vmem [shape: bf16[256,64], index: 7, kind: input, shape index: {}]
  %s8 = inlined_call_operand.vmem [shape: f32[5], index: 8, kind: input, shape index: {}]
  %s9 = inlined_call_operand.vmem [shape: f32[2,64,128], index: 9, kind: output, shape index: {}]
  %s10 = sld [smem:[#allocation0]]
  $region54: #{make_mix_forward.1} parent=0
    _
  %s12 = ssub.s32 1, %s10
  %s13 = scalar_select 0, %s12, %s10
  $region1: #{make_mix_forward.1} parent=0
    #allocation2 [shape = 'u8[409600]{0}', space=vmem, size = 0x64000, scoped, tag = 'input window, operand 1, single buffered']
    #allocation3 [shape = 's32[1]{0}', space=sflag, size = 0x4, scoped, tag = 'scoped memory for make_mix_forward.1']
    #allocation4 [shape = 's32[1]{0}', space=sflag, size = 0x4, scoped, tag = 'scoped memory for make_mix_forward.1']
    #allocation5 [shape = 'u8[512]{0}', space=smem, size = 0x200, scoped, tag = 'input window, operand 8, single buffered']
    %14 = vsyncpa [#allocation3], 0
    %15 = vsyncpa [#allocation4], 0
    // Predicated region
    $region2: #{make_mix_forward.1} parent=1 // pred_check
      _
    $region3: #{make_mix_forward.1} parent=1 // pred_check_branch
      %17 = sbr.rel (0) target = $region5
    $region4: #{make_mix_forward.1} parent=1 // pred_region
      _
    $region5: #{make_mix_forward.1} parent=1 // pred_fallthru
      _
    // Predicated region
    $region6: #{make_mix_forward.1} parent=1 // pred_check
      _
    $region7: #{make_mix_forward.1} parent=1 // pred_check_branch
      %19 = sbr.rel (0) target = $region9
    $region8: #{make_mix_forward.1} parent=1 // pred_region
      %s21 = ssub.s32 12800, 12800
      %22 = vsyncadd [#allocation3], %s21
      %s23 = sshll.u32 [#allocation2], 4
      %s24 = int_to_ptr.vmem [resolvable:$true] %s23
      %29 = dma.hbm_to_vmem [thread:$0]  %s1, 12800, %s24, [#allocation3], 64, 64, 4
    $region9: #{make_mix_forward.1} parent=1 // pred_fallthru
      _
    // Predicated region
    $region10: #{make_mix_forward.1} parent=1 // pred_check
      _
    $region11: #{make_mix_forward.1} parent=1 // pred_check_branch
      %31 = sbr.rel (0) target = $region13
    $region12: #{make_mix_forward.1} parent=1 // pred_region
      _
    $region13: #{make_mix_forward.1} parent=1 // pred_fallthru
      _
    // Predicated region
    $region14: #{make_mix_forward.1} parent=1 // pred_check
      _
    $region15: #{make_mix_forward.1} parent=1 // pred_check_branch
      %33 = sbr.rel (0) target = $region17
    $region16: #{make_mix_forward.1} parent=1 // pred_region
      _
    $region17: #{make_mix_forward.1} parent=1 // pred_fallthru
      _
    // Predicated region
    $region18: #{make_mix_forward.1} parent=1 // pred_check
      _
    $region19: #{make_mix_forward.1} parent=1 // pred_check_branch
      %35 = sbr.rel (0) target = $region21
    $region20: #{make_mix_forward.1} parent=1 // pred_region
      _
    $region21: #{make_mix_forward.1} parent=1 // pred_fallthru
      _
    // Predicated region
    $region22: #{make_mix_forward.1} parent=1 // pred_check
      _
    $region23: #{make_mix_forward.1} parent=1 // pred_check_branch
      %37 = sbr.rel (0) target = $region25
    $region24: #{make_mix_forward.1} parent=1 // pred_region
      _
    $region25: #{make_mix_forward.1} parent=1 // pred_fallthru
      _
    // Predicated region
    $region26: #{make_mix_forward.1} parent=1 // pred_check
      _
    $region27: #{make_mix_forward.1} parent=1 // pred_check_branch
      %39 = sbr.rel (0) target = $region29
    $region28: #{make_mix_forward.1} parent=1 // pred_region
      _
    $region29: #{make_mix_forward.1} parent=1 // pred_fallthru
      _
    // Predicated region
    $region30: #{make_mix_forward.1} parent=1 // pred_check
      _
    $region31: #{make_mix_forward.1} parent=1 // pred_check_branch
      %41 = sbr.rel (0) target = $region33
    $region32: #{make_mix_forward.1} parent=1 // pred_region
      _
    $region33: #{make_mix_forward.1} parent=1 // pred_fallthru
      _
    // Predicated region
    $region34: #{make_mix_forward.1} parent=1 // pred_check
      _
    $region35: #{make_mix_forward.1} parent=1 // pred_check_branch
      %43 = sbr.rel (0) target = $region37
    $region36: #{make_mix_forward.1} parent=1 // pred_region
      %s45 = ssub.s32 16, 16
      %46 = vsyncadd [#allocation4], %s45
      %s48 = sshll.u32 %s8, 4
      %s49 = int_to_ptr.vmem [resolvable:$true] %s48
      %51 = dma.vmem_to_smem %s49, 16, [#allocation5], [#allocation4]
    $region37: #{make_mix_forward.1} parent=1 // pred_fallthru
      _
    // Predicated region
    $region38: #{make_mix_forward.1} parent=1 // pred_check
      _
    $region39: #{make_mix_forward.1} parent=1 // pred_check_branch
      %53 = sbr.rel (0) target = $region41
    $region40: #{make_mix_forward.1} parent=1 // pred_region
      %54 = dma.done [#allocation3], 12800
    $region41: #{make_mix_forward.1} parent=1 // pred_fallthru
      _
    // Predicated region
    $region42: #{make_mix_forward.1} parent=1 // pred_check
      _
    $region43: #{make_mix_forward.1} parent=1 // pred_check_branch
      %56 = sbr.rel (0) target = $region45
    $region44: #{make_mix_forward.1} parent=1 // pred_region
      %57 = dma.done [#allocation4], 16
    $region45: #{make_mix_forward.1} parent=1 // pred_fallthru
      _
    %58 = sfence
    %v60 = vld [vmem:[%s0] sm:$0xff]
    %v61 = vld [vmem:[%s0 + $0x8] sm:$0xff]
    %v62 = vld [vmem:[%s0 + $0x10] sm:$0xff]
    %v63 = vld [vmem:[%s0 + $0x18] sm:$0xff]
    %v64 = vld [vmem:[%s0 + $0x20] sm:$0xff]
    %v65 = vld [vmem:[%s0 + $0x28] sm:$0xff]
    %v66 = vld [vmem:[%s0 + $0x30] sm:$0xff]
    %v67 = vld [vmem:[%s0 + $0x38] sm:$0xff]
    %v68 = vld [vmem:[%s0 + $0x40] sm:$0xff]
    %v69 = vld [vmem:[%s0 + $0x48] sm:$0xff]
    %v70 = vld [vmem:[%s0 + $0x50] sm:$0xff]
    %v71 = vld [vmem:[%s0 + $0x58] sm:$0xff]
    %v72 = vld [vmem:[%s0 + $0x60] sm:$0xff]
    %v73 = vld [vmem:[%s0 + $0x68] sm:$0xff]
    %v74 = vld [vmem:[%s0 + $0x70] sm:$0xff]
    %v75 = vld [vmem:[%s0 + $0x78] sm:$0xff]
    %v76 = vpack.c.bf16 %v60, %v60
    %v77 = vpack.c.bf16 %v61, %v61
    %v78 = vpack.c.bf16 %v62, %v62
    %v79 = vpack.c.bf16 %v63, %v63
    %v80 = vpack.c.bf16 %v64, %v64
    %v81 = vpack.c.bf16 %v65, %v65
    %v82 = vpack.c.bf16 %v66, %v66
    %v83 = vpack.c.bf16 %v67, %v67
    %v84 = vpack.c.bf16 %v68, %v68
    %v85 = vpack.c.bf16 %v69, %v69
    %v86 = vpack.c.bf16 %v70, %v70
    %v87 = vpack.c.bf16 %v71, %v71
    %v88 = vpack.c.bf16 %v72, %v72
    %v89 = vpack.c.bf16 %v73, %v73
    %v90 = vpack.c.bf16 %v74, %v74
    %v91 = vpack.c.bf16 %v75, %v75
    %v108 = vrot.slane %v76, 7
    %v109 = vrot.slane %v77, 7
    %v110 = vrot.slane %v78, 7
    %v111 = vrot.slane %v79, 7
    %v112 = vrot.slane %v80, 7
    %v113 = vrot.slane %v81, 7
    %v114 = vrot.slane %v82, 7
    %v115 = vrot.slane %v83, 7
    %v116 = vrot.slane %v84, 7
    %v117 = vrot.slane %v85, 7
    %v118 = vrot.slane %v86, 7
    %v119 = vrot.slane %v87, 7
    %v120 = vrot.slane %v88, 7
    %v121 = vrot.slane %v89, 7
    %v122 = vrot.slane %v90, 7
    %v123 = vrot.slane %v91, 7
    %vm124 = vcmask 1040384
    %v127 = vsel %vm124, 0, %v108
    %v129 = vsel %vm124, 0, %v109
    %v131 = vsel %vm124, 0, %v110
    %v133 = vsel %vm124, 0, %v111
    %v135 = vsel %vm124, 0, %v112
    %v137 = vsel %vm124, 0, %v113
    %v139 = vsel %vm124, 0, %v114
    %v141 = vsel %vm124, 0, %v115
    %v143 = vsel %vm124, 0, %v116
    %v145 = vsel %vm124, 0, %v117
    %v147 = vsel %vm124, 0, %v118
    %v149 = vsel %vm124, 0, %v119
    %v151 = vsel %vm124, 0, %v120
    %v153 = vsel %vm124, 0, %v121
    %v155 = vsel %vm124, 0, %v122
    %v157 = vsel %vm124, 0, %v123
    %vm158 = vcmask 1044480
    %v159 = vsel %vm158, %v127, 0
    %v160 = vsel %vm158, %v129, 0
    %v161 = vsel %vm158, %v131, 0
    %v162 = vsel %vm158, %v133, 0
    %v163 = vsel %vm158, %v135, 0
    %v164 = vsel %vm158, %v137, 0
    %v165 = vsel %vm158, %v139, 0
    %v166 = vsel %vm158, %v141, 0
    %v167 = vsel %vm158, %v143, 0
    %v168 = vsel %vm158, %v145, 0
    %v169 = vsel %vm158, %v147, 0
    %v170 = vsel %vm158, %v149, 0
    %v171 = vsel %vm158, %v151, 0
    %v172 = vsel %vm158, %v153, 0
    %v173 = vsel %vm158, %v155, 0
    %v174 = vsel %vm158, %v157, 0
    %v188 = vunpack.c.l.b16 0
    %v189 = vunpack.c.l.b16 %v159
    %v190 = vunpack.c.l.b16 %v160
    %v191 = vunpack.c.l.b16 %v161
    %v192 = vunpack.c.l.b16 %v162
    %v193 = vunpack.c.l.b16 %v163
    %v194 = vunpack.c.l.b16 %v164
    %v195 = vunpack.c.l.b16 %v167
    %v196 = vunpack.c.l.b16 %v168
    %v197 = vunpack.c.l.b16 %v169
    %v198 = vunpack.c.l.b16 %v170
    %v199 = vunpack.c.l.b16 %v171
    %v200 = vunpack.c.l.b16 %v172
    %v201 = vpack.c.b16 %v188, %v188
    %v202 = vpack.c.b16 %v190, %v189
    %v203 = vpack.c.b16 %v192, %v191
    %v204 = vpack.c.b16 %v194, %v193
    %v205 = vpack.c.b16 %v196, %v195
    %v206 = vpack.c.b16 %v198, %v197
    %v207 = vpack.c.b16 %v200, %v199
    %v210 = vunpack.c.l.b16 %v165
    %v211 = vunpack.c.l.b16 %v173
    %v212 = vpack.c.b16 %v189, %v188
    %v213 = vpack.c.b16 %v191, %v190
    %v214 = vpack.c.b16 %v193, %v192
    %v215 = vpack.c.b16 %v210, %v194
    %v216 = vpack.c.b16 %v195, %v188
    %v217 = vpack.c.b16 %v197, %v196
    %v218 = vpack.c.b16 %v199, %v198
    %v219 = vpack.c.b16 %v211, %v200
    %220 = vrot.lane.b32.xlu0 %v212, 64
    %v221 = vpop.permute.xlu0 %220
    %222 = vrot.lane.b32.xlu0 %v213, 64
    %v223 = vpop.permute.xlu0 %222
    %224 = vrot.lane.b32.xlu0 %v214, 64
    %v225 = vpop.permute.xlu0 %224
    %226 = vrot.lane.b32.xlu0 %v215, 64
    %v227 = vpop.permute.xlu0 %226
    %228 = vrot.lane.b32.xlu0 %v216, 64
    %v229 = vpop.permute.xlu0 %228
    %230 = vrot.lane.b32.xlu0 %v217, 64
    %v231 = vpop.permute.xlu0 %230
    %232 = vrot.lane.b32.xlu0 %v218, 64
    %v233 = vpop.permute.xlu0 %232
    %234 = vrot.lane.b32.xlu0 %v219, 64
    %v235 = vpop.permute.xlu0 %234
    %v238 = vunpack.c.l.b16 %v166
    %v239 = vunpack.c.l.b16 %v174
    %v240 = vpack.c.b16 %v238, %v210
    %v241 = vpack.c.b16 %v239, %v211
    %v242 = vpack.c.b16 %v188, %v238
    %v243 = vpack.c.b16 %v188, %v239
    %244 = vrot.lane.b32.xlu0 %v242, 64
    %v245 = vpop.permute.xlu0 %244
    %246 = vrot.lane.b32.xlu0 %v243, 64
    %v247 = vpop.permute.xlu0 %246
    %vm248 = vcmask 523264
    %v251 = vsel %vm248, %v201, %v221
    %v255 = vsel %vm248, %v202, %v223
    %v259 = vsel %vm248, %v203, %v225
    %v263 = vsel %vm248, %v204, %v227
    %v266 = vsel %vm248, %v201, %v229
    %v270 = vsel %vm248, %v205, %v231
    %v274 = vsel %vm248, %v206, %v233
    %v278 = vsel %vm248, %v207, %v235
    %v282 = vsel %vm248, %v240, %v245
    %v286 = vsel %vm248, %v241, %v247
    %v288 = vunpack.c.h.b16 0
    %v289 = vunpack.c.h.b16 %v159
    %v290 = vunpack.c.h.b16 %v160
    %v291 = vunpack.c.h.b16 %v161
    %v292 = vunpack.c.h.b16 %v162
    %v293 = vunpack.c.h.b16 %v163
    %v294 = vunpack.c.h.b16 %v164
    %v295 = vunpack.c.h.b16 %v165
    %v296 = vunpack.c.h.b16 %v166
    %v297 = vunpack.c.h.b16 %v167
    %v298 = vunpack.c.h.b16 %v168
    %v299 = vunpack.c.h.b16 %v169
    %v300 = vunpack.c.h.b16 %v170
    %v301 = vunpack.c.h.b16 %v171
    %v302 = vunpack.c.h.b16 %v172
    %v303 = vunpack.c.h.b16 %v173
    %v304 = vunpack.c.h.b16 %v174
    %v305 = vpack.c.b16 %v288, %v288
    %v306 = vpack.c.b16 %v189, %v189
    %v307 = vpack.c.b16 %v289, %v289
    %v308 = vpack.c.b16 %v190, %v190
    %v309 = vpack.c.b16 %v290, %v290
    %v310 = vpack.c.b16 %v191, %v191
    %v311 = vpack.c.b16 %v291, %v291
    %v312 = vpack.c.b16 %v192, %v192
    %v313 = vpack.c.b16 %v292, %v292
    %v314 = vpack.c.b16 %v193, %v193
    %v315 = vpack.c.b16 %v293, %v293
    %v316 = vpack.c.b16 %v194, %v194
    %v317 = vpack.c.b16 %v294, %v294
    %v318 = vpack.c.b16 %v210, %v210
    %v319 = vpack.c.b16 %v295, %v295
    %v320 = vpack.c.b16 %v238, %v238
    %v321 = vpack.c.b16 %v296, %v296
    %v322 = vpack.c.b16 %v195, %v195
    %v323 = vpack.c.b16 %v297, %v297
    %v324 = vpack.c.b16 %v196, %v196
    %v325 = vpack.c.b16 %v298, %v298
    %v326 = vpack.c.b16 %v197, %v197
    %v327 = vpack.c.b16 %v299, %v299
    %v328 = vpack.c.b16 %v198, %v198
    %v329 = vpack.c.b16 %v300, %v300
    %v330 = vpack.c.b16 %v199, %v199
    %v331 = vpack.c.b16 %v301, %v301
    %v332 = vpack.c.b16 %v200, %v200
    %v333 = vpack.c.b16 %v302, %v302
    %v334 = vpack.c.b16 %v211, %v211
    %v335 = vpack.c.b16 %v303, %v303
    %v336 = vpack.c.b16 %v239, %v239
    %v337 = vpack.c.b16 %v304, %v304
    %vm338 = vsmask.f32 3328
    %vm339 = vsmask.f32 7440
    %vm340 = vmor %vm338, %vm339
    %v341 = vshrl.u32 %v201, 16
    %v343 = vrot.slane %v341, 4
    %v344 = vshll.u32 %v201, 16
    %v346 = vrot.slane %v344, 5
    %v347 = vor.u32 %v343, %v346
    %v348 = vrot.slane %v347, 4
    %v350 = vshll.u32 %v305, 16
    %v352 = vrot.slane %v350, 5
    %v353 = vsel %vm340, %v348, %v352
    %v355 = vshrl.u32 %v306, 16
    %v357 = vrot.slane %v355, 4
    %v358 = vshll.u32 %v306, 16
    %v360 = vrot.slane %v358, 5
    %v361 = vor.u32 %v357, %v360
    %v362 = vrot.slane %v361, 4
    %v364 = vshll.u32 %v307, 16
    %v366 = vrot.slane %v364, 5
    %v367 = vsel %vm340, %v362, %v366
    %v369 = vshrl.u32 %v308, 16
    %v371 = vrot.slane %v369, 4
    %v372 = vshll.u32 %v308, 16
    %v374 = vrot.slane %v372, 5
    %v375 = vor.u32 %v371, %v374
    %v376 = vrot.slane %v375, 4
    %v378 = vshll.u32 %v309, 16
    %v380 = vrot.slane %v378, 5
    %v381 = vsel %vm340, %v376, %v380
    %v383 = vshrl.u32 %v310, 16
    %v385 = vrot.slane %v383, 4
    %v386 = vshll.u32 %v310, 16
    %v388 = vrot.slane %v386, 5
    %v389 = vor.u32 %v385, %v388
    %v390 = vrot.slane %v389, 4
    %v392 = vshll.u32 %v311, 16
    %v394 = vrot.slane %v392, 5
    %v395 = vsel %vm340, %v390, %v394
    %v397 = vshrl.u32 %v312, 16
    %v399 = vrot.slane %v397, 4
    %v400 = vshll.u32 %v312, 16
    %v402 = vrot.slane %v400, 5
    %v403 = vor.u32 %v399, %v402
    %v404 = vrot.slane %v403, 4
    %v406 = vshll.u32 %v313, 16
    %v408 = vrot.slane %v406, 5
    %v409 = vsel %vm340, %v404, %v408
    %v411 = vshrl.u32 %v314, 16
    %v413 = vrot.slane %v411, 4
    %v414 = vshll.u32 %v314, 16
    %v416 = vrot.slane %v414, 5
    %v417 = vor.u32 %v413, %v416
    %v418 = vrot.slane %v417, 4
    %v420 = vshll.u32 %v315, 16
    %v422 = vrot.slane %v420, 5
    %v423 = vsel %vm340, %v418, %v422
    %v425 = vshrl.u32 %v316, 16
    %v427 = vrot.slane %v425, 4
    %v428 = vshll.u32 %v316, 16
    %v430 = vrot.slane %v428, 5
    %v431 = vor.u32 %v427, %v430
    %v432 = vrot.slane %v431, 4
    %v434 = vshll.u32 %v317, 16
    %v436 = vrot.slane %v434, 5
    %v437 = vsel %vm340, %v432, %v436
    %v439 = vshrl.u32 %v318, 16
    %v441 = vrot.slane %v439, 4
    %v442 = vshll.u32 %v318, 16
    %v444 = vrot.slane %v442, 5
    %v445 = vor.u32 %v441, %v444
    %v446 = vrot.slane %v445, 4
    %v448 = vshll.u32 %v319, 16
    %v450 = vrot.slane %v448, 5
    %v451 = vsel %vm340, %v446, %v450
    %v453 = vshrl.u32 %v320, 16
    %v455 = vrot.slane %v453, 4
    %v456 = vshll.u32 %v320, 16
    %v458 = vrot.slane %v456, 5
    %v459 = vor.u32 %v455, %v458
    %v460 = vrot.slane %v459, 4
    %v462 = vshll.u32 %v321, 16
    %v464 = vrot.slane %v462, 5
    %v465 = vsel %vm340, %v460, %v464
    %v467 = vshrl.u32 %v322, 16
    %v469 = vrot.slane %v467, 4
    %v470 = vshll.u32 %v322, 16
    %v472 = vrot.slane %v470, 5
    %v473 = vor.u32 %v469, %v472
    %v474 = vrot.slane %v473, 4
    %v476 = vshll.u32 %v323, 16
    %v478 = vrot.slane %v476, 5
    %v479 = vsel %vm340, %v474, %v478
    %v481 = vshrl.u32 %v324, 16
    %v483 = vrot.slane %v481, 4
    %v484 = vshll.u32 %v324, 16
    %v486 = vrot.slane %v484, 5
    %v487 = vor.u32 %v483, %v486
    %v488 = vrot.slane %v487, 4
    %v490 = vshll.u32 %v325, 16
    %v492 = vrot.slane %v490, 5
    %v493 = vsel %vm340, %v488, %v492
    %v495 = vshrl.u32 %v326, 16
    %v497 = vrot.slane %v495, 4
    %v498 = vshll.u32 %v326, 16
    %v500 = vrot.slane %v498, 5
    %v501 = vor.u32 %v497, %v500
    %v502 = vrot.slane %v501, 4
    %v504 = vshll.u32 %v327, 16
    %v506 = vrot.slane %v504, 5
    %v507 = vsel %vm340, %v502, %v506
    %v509 = vshrl.u32 %v328, 16
    %v511 = vrot.slane %v509, 4
    %v512 = vshll.u32 %v328, 16
    %v514 = vrot.slane %v512, 5
    %v515 = vor.u32 %v511, %v514
    %v516 = vrot.slane %v515, 4
    %v518 = vshll.u32 %v329, 16
    %v520 = vrot.slane %v518, 5
    %v521 = vsel %vm340, %v516, %v520
    %v523 = vshrl.u32 %v330, 16
    %v525 = vrot.slane %v523, 4
    %v526 = vshll.u32 %v330, 16
    %v528 = vrot.slane %v526, 5
    %v529 = vor.u32 %v525, %v528
    %v530 = vrot.slane %v529, 4
    %v532 = vshll.u32 %v331, 16
    %v534 = vrot.slane %v532, 5
    %v535 = vsel %vm340, %v530, %v534
    %v537 = vshrl.u32 %v332, 16
    %v539 = vrot.slane %v537, 4
    %v540 = vshll.u32 %v332, 16
    %v542 = vrot.slane %v540, 5
    %v543 = vor.u32 %v539, %v542
    %v544 = vrot.slane %v543, 4
    %v546 = vshll.u32 %v333, 16
    %v548 = vrot.slane %v546, 5
    %v549 = vsel %vm340, %v544, %v548
    %v551 = vshrl.u32 %v334, 16
    %v553 = vrot.slane %v551, 4
    %v554 = vshll.u32 %v334, 16
    %v556 = vrot.slane %v554, 5
    %v557 = vor.u32 %v553, %v556
    %v558 = vrot.slane %v557, 4
    %v560 = vshll.u32 %v335, 16
    %v562 = vrot.slane %v560, 5
    %v563 = vsel %vm340, %v558, %v562
    %v565 = vshrl.u32 %v336, 16
    %v567 = vrot.slane %v565, 4
    %v568 = vshll.u32 %v336, 16
    %v570 = vrot.slane %v568, 5
    %v571 = vor.u32 %v567, %v570
    %v572 = vrot.slane %v571, 4
    %v574 = vshll.u32 %v337, 16
    %v576 = vrot.slane %v574, 5
    %v577 = vsel %vm340, %v572, %v576
    %v578 = vunpack.c.l.b16 %v353
    %v579 = vunpack.c.l.b16 %v367
    %v580 = vunpack.c.l.b16 %v381
    %v581 = vunpack.c.l.b16 %v395
    %v582 = vunpack.c.l.b16 %v409
    %v583 = vunpack.c.l.b16 %v423
    %v584 = vunpack.c.l.b16 %v437
    %v585 = vunpack.c.l.b16 %v479
    %v586 = vunpack.c.l.b16 %v493
    %v587 = vunpack.c.l.b16 %v507
    %v588 = vunpack.c.l.b16 %v521
    %v589 = vunpack.c.l.b16 %v535
    %v590 = vunpack.c.l.b16 %v549
    %v591 = vpack.c.b16 %v578, %v578
    %v592 = vpack.c.b16 %v580, %v579
    %v593 = vpack.c.b16 %v582, %v581
    %v594 = vpack.c.b16 %v584, %v583
    %v595 = vpack.c.b16 %v586, %v585
    %v596 = vpack.c.b16 %v588, %v587
    %v597 = vpack.c.b16 %v590, %v589
    %v598 = vunpack.c.l.b16 %v451
    %v599 = vunpack.c.l.b16 %v563
    %v600 = vpack.c.b16 %v579, %v578
    %v601 = vpack.c.b16 %v581, %v580
    %v602 = vpack.c.b16 %v583, %v582
    %v603 = vpack.c.b16 %v598, %v584
    %v604 = vpack.c.b16 %v585, %v578
    %v605 = vpack.c.b16 %v587, %v586
    %v606 = vpack.c.b16 %v589, %v588
    %v607 = vpack.c.b16 %v599, %v590
    %608 = vrot.lane.b32.xlu0 %v600, 64
    %v609 = vpop.permute.xlu0 %608
    %610 = vrot.lane.b32.xlu0 %v601, 64
    %v611 = vpop.permute.xlu0 %610
    %612 = vrot.lane.b32.xlu0 %v602, 64
    %v613 = vpop.permute.xlu0 %612
    %614 = vrot.lane.b32.xlu0 %v603, 64
    %v615 = vpop.permute.xlu0 %614
    %616 = vrot.lane.b32.xlu0 %v604, 64
    %v617 = vpop.permute.xlu0 %616
    %618 = vrot.lane.b32.xlu0 %v605, 64
    %v619 = vpop.permute.xlu0 %618
    %620 = vrot.lane.b32.xlu0 %v606, 64
    %v621 = vpop.permute.xlu0 %620
    %622 = vrot.lane.b32.xlu0 %v607, 64
    %v623 = vpop.permute.xlu0 %622
    %v624 = vunpack.c.l.b16 %v465
    %v625 = vunpack.c.l.b16 %v577
    %v626 = vpack.c.b16 %v624, %v598
    %v627 = vpack.c.b16 %v625, %v599
    %v628 = vpack.c.b16 %v578, %v624
    %v629 = vpack.c.b16 %v578, %v625
    %630 = vrot.lane.b32.xlu0 %v628, 64
    %v631 = vpop.permute.xlu0 %630
    %632 = vrot.lane.b32.xlu0 %v629, 64
    %v633 = vpop.permute.xlu0 %632
    %v636 = vsel %vm248, %v591, %v609
    %v639 = vsel %vm248, %v592, %v611
    %v642 = vsel %vm248, %v593, %v613
    %v645 = vsel %vm248, %v594, %v615
    %v647 = vsel %vm248, %v591, %v617
    %v650 = vsel %vm248, %v595, %v619
    %v653 = vsel %vm248, %v596, %v621
    %v656 = vsel %vm248, %v597, %v623
    %v659 = vsel %vm248, %v626, %v631
    %v662 = vsel %vm248, %v627, %v633
    %vm663 = vcmask 1042432
    %vm664 = vcmask 1046532
    %vm665 = vmor %vm663, %vm664
    %v666 = vrot.slane %v201, 5
    %v667 = vrot.slane %v666, 4
    %v668 = vrot.slane %v305, 5
    %v669 = vsel %vm665, %v667, %v668
    %v670 = vrot.slane %v306, 5
    %v671 = vrot.slane %v670, 4
    %v672 = vrot.slane %v307, 5
    %v673 = vsel %vm665, %v671, %v672
    %v674 = vrot.slane %v308, 5
    %v675 = vrot.slane %v674, 4
    %v676 = vrot.slane %v309, 5
    %v677 = vsel %vm665, %v675, %v676
    %v678 = vrot.slane %v310, 5
    %v679 = vrot.slane %v678, 4
    %v680 = vrot.slane %v311, 5
    %v681 = vsel %vm665, %v679, %v680
    %v682 = vrot.slane %v312, 5
    %v683 = vrot.slane %v682, 4
    %v684 = vrot.slane %v313, 5
    %v685 = vsel %vm665, %v683, %v684
    %v686 = vrot.slane %v314, 5
    %v687 = vrot.slane %v686, 4
    %v688 = vrot.slane %v315, 5
    %v689 = vsel %vm665, %v687, %v688
    %v690 = vrot.slane %v316, 5
    %v691 = vrot.slane %v690, 4
    %v692 = vrot.slane %v317, 5
    %v693 = vsel %vm665, %v691, %v692
    %v694 = vrot.slane %v318, 5
    %v695 = vrot.slane %v694, 4
    %v696 = vrot.slane %v319, 5
    %v697 = vsel %vm665, %v695, %v696
    %v698 = vrot.slane %v320, 5
    %v699 = vrot.slane %v698, 4
    %v700 = vrot.slane %v321, 5
    %v701 = vsel %vm665, %v699, %v700
    %v702 = vrot.slane %v322, 5
    %v703 = vrot.slane %v702, 4
    %v704 = vrot.slane %v323, 5
    %v705 = vsel %vm665, %v703, %v704
    %v706 = vrot.slane %v324, 5
    %v707 = vrot.slane %v706, 4
    %v708 = vrot.slane %v325, 5
    %v709 = vsel %vm665, %v707, %v708
    %v710 = vrot.slane %v326, 5
    %v711 = vrot.slane %v710, 4
    %v712 = vrot.slane %v327, 5
    %v713 = vsel %vm665, %v711, %v712
    %v714 = vrot.slane %v328, 5
    %v715 = vrot.slane %v714, 4
    %v716 = vrot.slane %v329, 5
    %v717 = vsel %vm665, %v715, %v716
    %v718 = vrot.slane %v330, 5
    %v719 = vrot.slane %v718, 4
    %v720 = vrot.slane %v331, 5
    %v721 = vsel %vm665, %v719, %v720
    %v722 = vrot.slane %v332, 5
    %v723 = vrot.slane %v722, 4
    %v724 = vrot.slane %v333, 5
    %v725 = vsel %vm665, %v723, %v724
    %v726 = vrot.slane %v334, 5
    %v727 = vrot.slane %v726, 4
    %v728 = vrot.slane %v335, 5
    %v729 = vsel %vm665, %v727, %v728
    %v730 = vrot.slane %v336, 5
    %v731 = vrot.slane %v730, 4
    %v732 = vrot.slane %v337, 5
    %v733 = vsel %vm665, %v731, %v732
    %v734 = vunpack.c.l.b16 %v669
    %v735 = vunpack.c.l.b16 %v673
    %v736 = vunpack.c.l.b16 %v677
    %v737 = vunpack.c.l.b16 %v681
    %v738 = vunpack.c.l.b16 %v685
    %v739 = vunpack.c.l.b16 %v689
    %v740 = vunpack.c.l.b16 %v693
    %v741 = vunpack.c.l.b16 %v705
    %v742 = vunpack.c.l.b16 %v709
    %v743 = vunpack.c.l.b16 %v713
    %v744 = vunpack.c.l.b16 %v717
    %v745 = vunpack.c.l.b16 %v721
    %v746 = vunpack.c.l.b16 %v725
    %v747 = vpack.c.b16 %v734, %v734
    %v748 = vpack.c.b16 %v736, %v735
    %v749 = vpack.c.b16 %v738, %v737
    %v750 = vpack.c.b16 %v740, %v739
    %v751 = vpack.c.b16 %v742, %v741
    %v752 = vpack.c.b16 %v744, %v743
    %v753 = vpack.c.b16 %v746, %v745
    %v754 = vunpack.c.l.b16 %v697
    %v755 = vunpack.c.l.b16 %v729
    %v756 = vpack.c.b16 %v735, %v734
    %v757 = vpack.c.b16 %v737, %v736
    %v758 = vpack.c.b16 %v739, %v738
    %v759 = vpack.c.b16 %v754, %v740
    %v760 = vpack.c.b16 %v741, %v734
    %v761 = vpack.c.b16 %v743, %v742
    %v762 = vpack.c.b16 %v745, %v744
    %v763 = vpack.c.b16 %v755, %v746
    %764 = vrot.lane.b32.xlu0 %v756, 64
    %v765 = vpop.permute.xlu0 %764
    %766 = vrot.lane.b32.xlu0 %v757, 64
    %v767 = vpop.permute.xlu0 %766
    %768 = vrot.lane.b32.xlu0 %v758, 64
    %v769 = vpop.permute.xlu0 %768
    %770 = vrot.lane.b32.xlu0 %v759, 64
    %v771 = vpop.permute.xlu0 %770
    %772 = vrot.lane.b32.xlu0 %v760, 64
    %v773 = vpop.permute.xlu0 %772
    %774 = vrot.lane.b32.xlu0 %v761, 64
    %v775 = vpop.permute.xlu0 %774
    %776 = vrot.lane.b32.xlu0 %v762, 64
    %v777 = vpop.permute.xlu0 %776
    %778 = vrot.lane.b32.xlu0 %v763, 64
    %v779 = vpop.permute.xlu0 %778
    %v780 = vunpack.c.l.b16 %v701
    %v781 = vunpack.c.l.b16 %v733
    %v782 = vpack.c.b16 %v780, %v754
    %v783 = vpack.c.b16 %v781, %v755
    %v784 = vpack.c.b16 %v734, %v780
    %v785 = vpack.c.b16 %v734, %v781
    %786 = vrot.lane.b32.xlu0 %v784, 64
    %v787 = vpop.permute.xlu0 %786
    %788 = vrot.lane.b32.xlu0 %v785, 64
    %v789 = vpop.permute.xlu0 %788
    %v792 = vsel %vm248, %v747, %v765
    %v796 = vsel %vm248, %v748, %v767
    %v800 = vsel %vm248, %v749, %v769
    %v804 = vsel %vm248, %v750, %v771
    %v807 = vsel %vm248, %v747, %v773
    %v811 = vsel %vm248, %v751, %v775
    %v815 = vsel %vm248, %v752, %v777
    %v819 = vsel %vm248, %v753, %v779
    %v823 = vsel %vm248, %v782, %v787
    %v827 = vsel %vm248, %v783, %v789
    %vm829 = vsmask.f32 2304
    %vm830 = vsmask.f32 6416
    %vm831 = vmor %vm829, %vm830
    %v832 = vrot.slane %v341, 5
    %v833 = vrot.slane %v344, 6
    %v834 = vor.u32 %v832, %v833
    %v835 = vrot.slane %v834, 4
    %v836 = vshrl.u32 %v305, 16
    %v838 = vrot.slane %v836, 5
    %v839 = vrot.slane %v350, 6
    %v840 = vor.u32 %v838, %v839
    %v841 = vsel %vm831, %v835, %v840
    %v842 = vrot.slane %v355, 5
    %v843 = vrot.slane %v358, 6
    %v844 = vor.u32 %v842, %v843
    %v845 = vrot.slane %v844, 4
    %v846 = vshrl.u32 %v307, 16
    %v848 = vrot.slane %v846, 5
    %v849 = vrot.slane %v364, 6
    %v850 = vor.u32 %v848, %v849
    %v851 = vsel %vm831, %v845, %v850
    %v852 = vrot.slane %v369, 5
    %v853 = vrot.slane %v372, 6
    %v854 = vor.u32 %v852, %v853
    %v855 = vrot.slane %v854, 4
    %v856 = vshrl.u32 %v309, 16
    %v858 = vrot.slane %v856, 5
    %v859 = vrot.slane %v378, 6
    %v860 = vor.u32 %v858, %v859
    %v861 = vsel %vm831, %v855, %v860
    %v862 = vrot.slane %v383, 5
    %v863 = vrot.slane %v386, 6
    %v864 = vor.u32 %v862, %v863
    %v865 = vrot.slane %v864, 4
    %v866 = vshrl.u32 %v311, 16
    %v868 = vrot.slane %v866, 5
    %v869 = vrot.slane %v392, 6
    %v870 = vor.u32 %v868, %v869
    %v871 = vsel %vm831, %v865, %v870
    %v872 = vrot.slane %v397, 5
    %v873 = vrot.slane %v400, 6
    %v874 = vor.u32 %v872, %v873
    %v875 = vrot.slane %v874, 4
    %v876 = vshrl.u32 %v313, 16
    %v878 = vrot.slane %v876, 5
    %v879 = vrot.slane %v406, 6
    %v880 = vor.u32 %v878, %v879
    %v881 = vsel %vm831, %v875, %v880
    %v882 = vrot.slane %v411, 5
    %v883 = vrot.slane %v414, 6
    %v884 = vor.u32 %v882, %v883
    %v885 = vrot.slane %v884, 4
    %v886 = vshrl.u32 %v315, 16
    %v888 = vrot.slane %v886, 5
    %v889 = vrot.slane %v420, 6
    %v890 = vor.u32 %v888, %v889
    %v891 = vsel %vm831, %v885, %v890
    %v892 = vrot.slane %v425, 5
    %v893 = vrot.slane %v428, 6
    %v894 = vor.u32 %v892, %v893
    %v895 = vrot.slane %v894, 4
    %v896 = vshrl.u32 %v317, 16
    %v898 = vrot.slane %v896, 5
    %v899 = vrot.slane %v434, 6
    %v900 = vor.u32 %v898, %v899
    %v901 = vsel %vm831, %v895, %v900
    %v902 = vrot.slane %v439, 5
    %v903 = vrot.slane %v442, 6
    %v904 = vor.u32 %v902, %v903
    %v905 = vrot.slane %v904, 4
    %v906 = vshrl.u32 %v319, 16
    %v908 = vrot.slane %v906, 5
    %v909 = vrot.slane %v448, 6
    %v910 = vor.u32 %v908, %v909
    %v911 = vsel %vm831, %v905, %v910
    %v912 = vrot.slane %v453, 5
    %v913 = vrot.slane %v456, 6
    %v914 = vor.u32 %v912, %v913
    %v915 = vrot.slane %v914, 4
    %v916 = vshrl.u32 %v321, 16
    %v918 = vrot.slane %v916, 5
    %v919 = vrot.slane %v462, 6
    %v920 = vor.u32 %v918, %v919
    %v921 = vsel %vm831, %v915, %v920
    %v922 = vrot.slane %v467, 5
    %v923 = vrot.slane %v470, 6
    %v924 = vor.u32 %v922, %v923
    %v925 = vrot.slane %v924, 4
    %v926 = vshrl.u32 %v323, 16
    %v928 = vrot.slane %v926, 5
    %v929 = vrot.slane %v476, 6
    %v930 = vor.u32 %v928, %v929
    %v931 = vsel %vm831, %v925, %v930
    %v932 = vrot.slane %v481, 5
    %v933 = vrot.slane %v484, 6
    %v934 = vor.u32 %v932, %v933
    %v935 = vrot.slane %v934, 4
    %v936 = vshrl.u32 %v325, 16
    %v938 = vrot.slane %v936, 5
    %v939 = vrot.slane %v490, 6
    %v940 = vor.u32 %v938, %v939
    %v941 = vsel %vm831, %v935, %v940
    %v942 = vrot.slane %v495, 5
    %v943 = vrot.slane %v498, 6
    %v944 = vor.u32 %v942, %v943
    %v945 = vrot.slane %v944, 4
    %v946 = vshrl.u32 %v327, 16
    %v948 = vrot.slane %v946, 5
    %v949 = vrot.slane %v504, 6
    %v950 = vor.u32 %v948, %v949
    %v951 = vsel %vm831, %v945, %v950
    %v952 = vrot.slane %v509, 5
    %v953 = vrot.slane %v512, 6
    %v954 = vor.u32 %v952, %v953
    %v955 = vrot.slane %v954, 4
    %v956 = vshrl.u32 %v329, 16
    %v958 = vrot.slane %v956, 5
    %v959 = vrot.slane %v518, 6
    %v960 = vor.u32 %v958, %v959
    %v961 = vsel %vm831, %v955, %v960
    %v962 = vrot.slane %v523, 5
    %v963 = vrot.slane %v526, 6
    %v964 = vor.u32 %v962, %v963
    %v965 = vrot.slane %v964, 4
    %v966 = vshrl.u32 %v331, 16
    %v968 = vrot.slane %v966, 5
    %v969 = vrot.slane %v532, 6
    %v970 = vor.u32 %v968, %v969
    %v971 = vsel %vm831, %v965, %v970
    %v972 = vrot.slane %v537, 5
    %v973 = vrot.slane %v540, 6
    %v974 = vor.u32 %v972, %v973
    %v975 = vrot.slane %v974, 4
    %v976 = vshrl.u32 %v333, 16
    %v978 = vrot.slane %v976, 5
    %v979 = vrot.slane %v546, 6
    %v980 = vor.u32 %v978, %v979
    %v981 = vsel %vm831, %v975, %v980
    %v982 = vrot.slane %v551, 5
    %v983 = vrot.slane %v554, 6
    %v984 = vor.u32 %v982, %v983
    %v985 = vrot.slane %v984, 4
    %v986 = vshrl.u32 %v335, 16
    %v988 = vrot.slane %v986, 5
    %v989 = vrot.slane %v560, 6
    %v990 = vor.u32 %v988, %v989
    %v991 = vsel %vm831, %v985, %v990
    %v992 = vrot.slane %v565, 5
    %v993 = vrot.slane %v568, 6
    %v994 = vor.u32 %v992, %v993
    %v995 = vrot.slane %v994, 4
    %v996 = vshrl.u32 %v337, 16
    %v998 = vrot.slane %v996, 5
    %v999 = vrot.slane %v574, 6
    %v1000 = vor.u32 %v998, %v999
    %v1001 = vsel %vm831, %v995, %v1000
    %v1002 = vunpack.c.l.b16 %v841
    %v1003 = vunpack.c.l.b16 %v851
    %v1004 = vunpack.c.l.b16 %v861
    %v1005 = vunpack.c.l.b16 %v871
    %v1006 = vunpack.c.l.b16 %v881
    %v1007 = vunpack.c.l.b16 %v891
    %v1008 = vunpack.c.l.b16 %v901
    %v1009 = vunpack.c.l.b16 %v931
    %v1010 = vunpack.c.l.b16 %v941
    %v1011 = vunpack.c.l.b16 %v951
    %v1012 = vunpack.c.l.b16 %v961
    %v1013 = vunpack.c.l.b16 %v971
    %v1014 = vunpack.c.l.b16 %v981
    %v1015 = vpack.c.b16 %v1002, %v1002
    %v1016 = vpack.c.b16 %v1004, %v1003
    %v1017 = vpack.c.b16 %v1006, %v1005
    %v1018 = vpack.c.b16 %v1008, %v1007
    %v1019 = vpack.c.b16 %v1010, %v1009
    %v1020 = vpack.c.b16 %v1012, %v1011
    %v1021 = vpack.c.b16 %v1014, %v1013
    %v1022 = vunpack.c.l.b16 %v911
    %v1023 = vunpack.c.l.b16 %v991
    %v1024 = vpack.c.b16 %v1003, %v1002
    %v1025 = vpack.c.b16 %v1005, %v1004
    %v1026 = vpack.c.b16 %v1007, %v1006
    %v1027 = vpack.c.b16 %v1022, %v1008
    %v1028 = vpack.c.b16 %v1009, %v1002
    %v1029 = vpack.c.b16 %v1011, %v1010
    %v1030 = vpack.c.b16 %v1013, %v1012
    %v1031 = vpack.c.b16 %v1023, %v1014
    %1032 = vrot.lane.b32.xlu0 %v1024, 64
    %v1033 = vpop.permute.xlu0 %1032
    %1034 = vrot.lane.b32.xlu0 %v1025, 64
    %v1035 = vpop.permute.xlu0 %1034
    %1036 = vrot.lane.b32.xlu0 %v1026, 64
    %v1037 = vpop.permute.xlu0 %1036
    %1038 = vrot.lane.b32.xlu0 %v1027, 64
    %v1039 = vpop.permute.xlu0 %1038
    %1040 = vrot.lane.b32.xlu0 %v1028, 64
    %v1041 = vpop.permute.xlu0 %1040
    %1042 = vrot.lane.b32.xlu0 %v1029, 64
    %v1043 = vpop.permute.xlu0 %1042
    %1044 = vrot.lane.b32.xlu0 %v1030, 64
    %v1045 = vpop.permute.xlu0 %1044
    %1046 = vrot.lane.b32.xlu0 %v1031, 64
    %v1047 = vpop.permute.xlu0 %1046
    %v1048 = vunpack.c.l.b16 %v921
    %v1049 = vunpack.c.l.b16 %v1001
    %v1050 = vpack.c.b16 %v1048, %v1022
    %v1051 = vpack.c.b16 %v1049, %v1023
    %v1052 = vpack.c.b16 %v1002, %v1048
    %v1053 = vpack.c.b16 %v1002, %v1049
    %1054 = vrot.lane.b32.xlu0 %v1052, 64
    %v1055 = vpop.permute.xlu0 %1054
    %1056 = vrot.lane.b32.xlu0 %v1053, 64
    %v1057 = vpop.permute.xlu0 %1056
    %v1060 = vsel %vm248, %v1015, %v1033
    %v1063 = vsel %vm248, %v1016, %v1035
    %v1066 = vsel %vm248, %v1017, %v1037
    %v1069 = vsel %vm248, %v1018, %v1039
    %v1071 = vsel %vm248, %v1015, %v1041
    %v1074 = vsel %vm248, %v1019, %v1043
    %v1077 = vsel %vm248, %v1020, %v1045
    %v1080 = vsel %vm248, %v1021, %v1047
    %v1083 = vsel %vm248, %v1050, %v1055
    %v1086 = vsel %vm248, %v1051, %v1057
    %vm1087 = vcmask 1041408
    %vm1088 = vcmask 1045508
    %vm1089 = vmor %vm1087, %vm1088
    %v1090 = vrot.slane %v201, 6
    %v1091 = vrot.slane %v1090, 4
    %v1092 = vrot.slane %v305, 6
    %v1093 = vsel %vm1089, %v1091, %v1092
    %v1094 = vrot.slane %v306, 6
    %v1095 = vrot.slane %v1094, 4
    %v1096 = vrot.slane %v307, 6
    %v1097 = vsel %vm1089, %v1095, %v1096
    %v1098 = vrot.slane %v308, 6
    %v1099 = vrot.slane %v1098, 4
    %v1100 = vrot.slane %v309, 6
    %v1101 = vsel %vm1089, %v1099, %v1100
    %v1102 = vrot.slane %v310, 6
    %v1103 = vrot.slane %v1102, 4
    %v1104 = vrot.slane %v311, 6
    %v1105 = vsel %vm1089, %v1103, %v1104
    %v1106 = vrot.slane %v312, 6
    %v1107 = vrot.slane %v1106, 4
    %v1108 = vrot.slane %v313, 6
    %v1109 = vsel %vm1089, %v1107, %v1108
    %v1110 = vrot.slane %v314, 6
    %v1111 = vrot.slane %v1110, 4
    %v1112 = vrot.slane %v315, 6
    %v1113 = vsel %vm1089, %v1111, %v1112
    %v1114 = vrot.slane %v316, 6
    %v1115 = vrot.slane %v1114, 4
    %v1116 = vrot.slane %v317, 6
    %v1117 = vsel %vm1089, %v1115, %v1116
    %v1118 = vrot.slane %v318, 6
    %v1119 = vrot.slane %v1118, 4
    %v1120 = vrot.slane %v319, 6
    %v1121 = vsel %vm1089, %v1119, %v1120
    %v1122 = vrot.slane %v320, 6
    %v1123 = vrot.slane %v1122, 4
    %v1124 = vrot.slane %v321, 6
    %v1125 = vsel %vm1089, %v1123, %v1124
    %v1126 = vrot.slane %v322, 6
    %v1127 = vrot.slane %v1126, 4
    %v1128 = vrot.slane %v323, 6
    %v1129 = vsel %vm1089, %v1127, %v1128
    %v1130 = vrot.slane %v324, 6
    %v1131 = vrot.slane %v1130, 4
    %v1132 = vrot.slane %v325, 6
    %v1133 = vsel %vm1089, %v1131, %v1132
    %v1134 = vrot.slane %v326, 6
    %v1135 = vrot.slane %v1134, 4
    %v1136 = vrot.slane %v327, 6
    %v1137 = vsel %vm1089, %v1135, %v1136
    %v1138 = vrot.slane %v328, 6
    %v1139 = vrot.slane %v1138, 4
    %v1140 = vrot.slane %v329, 6
    %v1141 = vsel %vm1089, %v1139, %v1140
    %v1142 = vrot.slane %v330, 6
    %v1143 = vrot.slane %v1142, 4
    %v1144 = vrot.slane %v331, 6
    %v1145 = vsel %vm1089, %v1143, %v1144
    %v1146 = vrot.slane %v332, 6
    %v1147 = vrot.slane %v1146, 4
    %v1148 = vrot.slane %v333, 6
    %v1149 = vsel %vm1089, %v1147, %v1148
    %v1150 = vrot.slane %v334, 6
    %v1151 = vrot.slane %v1150, 4
    %v1152 = vrot.slane %v335, 6
    %v1153 = vsel %vm1089, %v1151, %v1152
    %v1154 = vrot.slane %v336, 6
    %v1155 = vrot.slane %v1154, 4
    %v1156 = vrot.slane %v337, 6
    %v1157 = vsel %vm1089, %v1155, %v1156
    %v1158 = vunpack.c.l.b16 %v1093
    %v1159 = vunpack.c.l.b16 %v1097
    %v1160 = vunpack.c.l.b16 %v1101
    %v1161 = vunpack.c.l.b16 %v1105
    %v1162 = vunpack.c.l.b16 %v1109
    %v1163 = vunpack.c.l.b16 %v1113
    %v1164 = vunpack.c.l.b16 %v1117
    %v1165 = vunpack.c.l.b16 %v1129
    %v1166 = vunpack.c.l.b16 %v1133
    %v1167 = vunpack.c.l.b16 %v1137
    %v1168 = vunpack.c.l.b16 %v1141
    %v1169 = vunpack.c.l.b16 %v1145
    %v1170 = vunpack.c.l.b16 %v1149
    %v1171 = vpack.c.b16 %v1158, %v1158
    %v1172 = vpack.c.b16 %v1160, %v1159
    %v1173 = vpack.c.b16 %v1162, %v1161
    %v1174 = vpack.c.b16 %v1164, %v1163
    %v1175 = vpack.c.b16 %v1166, %v1165
    %v1176 = vpack.c.b16 %v1168, %v1167
    %v1177 = vpack.c.b16 %v1170, %v1169
    %v1178 = vunpack.c.l.b16 %v1121
    %v1179 = vunpack.c.l.b16 %v1153
    %v1180 = vpack.c.b16 %v1159, %v1158
    %v1181 = vpack.c.b16 %v1161, %v1160
    %v1182 = vpack.c.b16 %v1163, %v1162
    %v1183 = vpack.c.b16 %v1178, %v1164
    %v1184 = vpack.c.b16 %v1165, %v1158
    %v1185 = vpack.c.b16 %v1167, %v1166
    %v1186 = vpack.c.b16 %v1169, %v1168
    %v1187 = vpack.c.b16 %v1179, %v1170
    %1188 = vrot.lane.b32.xlu0 %v1180, 64
    %v1189 = vpop.permute.xlu0 %1188
    %1190 = vrot.lane.b32.xlu0 %v1181, 64
    %v1191 = vpop.permute.xlu0 %1190
    %1192 = vrot.lane.b32.xlu0 %v1182, 64
    %v1193 = vpop.permute.xlu0 %1192
    %1194 = vrot.lane.b32.xlu0 %v1183, 64
    %v1195 = vpop.permute.xlu0 %1194
    %1196 = vrot.lane.b32.xlu0 %v1184, 64
    %v1197 = vpop.permute.xlu0 %1196
    %1198 = vrot.lane.b32.xlu0 %v1185, 64
    %v1199 = vpop.permute.xlu0 %1198
    %1200 = vrot.lane.b32.xlu0 %v1186, 64
    %v1201 = vpop.permute.xlu0 %1200
    %1202 = vrot.lane.b32.xlu0 %v1187, 64
    %v1203 = vpop.permute.xlu0 %1202
    %v1204 = vunpack.c.l.b16 %v1125
    %v1205 = vunpack.c.l.b16 %v1157
    %v1206 = vpack.c.b16 %v1204, %v1178
    %v1207 = vpack.c.b16 %v1205, %v1179
    %v1208 = vpack.c.b16 %v1158, %v1204
    %v1209 = vpack.c.b16 %v1158, %v1205
    %1210 = vrot.lane.b32.xlu0 %v1208, 64
    %v1211 = vpop.permute.xlu0 %1210
    %1212 = vrot.lane.b32.xlu0 %v1209, 64
    %v1213 = vpop.permute.xlu0 %1212
    %v1216 = vsel %vm248, %v1171, %v1189
    %v1220 = vsel %vm248, %v1172, %v1191
    %v1224 = vsel %vm248, %v1173, %v1193
    %v1228 = vsel %vm248, %v1174, %v1195
    %v1231 = vsel %vm248, %v1171, %v1197
    %v1235 = vsel %vm248, %v1175, %v1199
    %v1239 = vsel %vm248, %v1176, %v1201
    %v1243 = vsel %vm248, %v1177, %v1203
    %v1247 = vsel %vm248, %v1206, %v1211
    %v1251 = vsel %vm248, %v1207, %v1213
    %1263 = vrot.lane.b32.xlu0 %v636, 64
    %v1264 = vpop.permute.xlu0 %1263
    %1265 = vrot.lane.b32.xlu0 %v639, 64
    %v1266 = vpop.permute.xlu0 %1265
    %1267 = vrot.lane.b32.xlu0 %v593, 64
    %v1268 = vpop.permute.xlu0 %1267
    %1269 = vrot.lane.b32.xlu0 %v642, 64
    %v1270 = vpop.permute.xlu0 %1269
    %1271 = vrot.lane.b32.xlu0 %v594, 64
    %v1272 = vpop.permute.xlu0 %1271
    %1273 = vrot.lane.b32.xlu0 %v645, 64
    %v1274 = vpop.permute.xlu0 %1273
    %1275 = vrot.lane.b32.xlu0 %v626, 64
    %v1276 = vpop.permute.xlu0 %1275
    %1277 = vrot.lane.b32.xlu0 %v659, 64
    %v1278 = vpop.permute.xlu0 %1277
    %1279 = vrot.lane.b32.xlu0 %v591, 64
    %v1280 = vpop.permute.xlu0 %1279
    %1281 = vrot.lane.b32.xlu0 %v647, 64
    %v1282 = vpop.permute.xlu0 %1281
    %1283 = vrot.lane.b32.xlu0 %v650, 64
    %v1284 = vpop.permute.xlu0 %1283
    %1285 = vrot.lane.b32.xlu0 %v596, 64
    %v1286 = vpop.permute.xlu0 %1285
    %1287 = vrot.lane.b32.xlu0 %v653, 64
    %v1288 = vpop.permute.xlu0 %1287
    %1289 = vrot.lane.b32.xlu0 %v597, 64
    %v1290 = vpop.permute.xlu0 %1289
    %1291 = vrot.lane.b32.xlu0 %v656, 64
    %v1292 = vpop.permute.xlu0 %1291
    %1293 = vrot.lane.b32.xlu0 %v627, 64
    %v1294 = vpop.permute.xlu0 %1293
    %1295 = vrot.lane.b32.xlu0 %v662, 64
    %v1296 = vpop.permute.xlu0 %1295
    %vm1297 = vcmask 523264
    %v1298 = vsel %vm1297, %v1264, %v1266
    %v1299 = vsel %vm1297, %v1266, %v1268
    %v1300 = vsel %vm1297, %v1266, %v1270
    %v1301 = vsel %vm1297, %v1270, %v1272
    %v1302 = vsel %vm1297, %v1270, %v1274
    %v1303 = vsel %vm1297, %v1274, %v1276
    %v1304 = vsel %vm1297, %v1274, %v1278
    %v1305 = vsel %vm1297, %v1278, %v1280
    %v1306 = vsel %vm1297, %v1282, %v1284
    %v1307 = vsel %vm1297, %v1284, %v1286
    %v1308 = vsel %vm1297, %v1284, %v1288
    %v1309 = vsel %vm1297, %v1288, %v1290
    %v1310 = vsel %vm1297, %v1288, %v1292
    %v1311 = vsel %vm1297, %v1292, %v1294
    %v1312 = vsel %vm1297, %v1292, %v1296
    %v1313 = vsel %vm1297, %v1296, %v1280
    %1340 = vrot.lane.b32.xlu0 %v1060, 64
    %v1341 = vpop.permute.xlu0 %1340
    %1342 = vrot.lane.b32.xlu0 %v1063, 64
    %v1343 = vpop.permute.xlu0 %1342
    %1344 = vrot.lane.b32.xlu0 %v1017, 64
    %v1345 = vpop.permute.xlu0 %1344
    %1346 = vrot.lane.b32.xlu0 %v1066, 64
    %v1347 = vpop.permute.xlu0 %1346
    %1348 = vrot.lane.b32.xlu0 %v1018, 64
    %v1349 = vpop.permute.xlu0 %1348
    %1350 = vrot.lane.b32.xlu0 %v1069, 64
    %v1351 = vpop.permute.xlu0 %1350
    %1352 = vrot.lane.b32.xlu0 %v1050, 64
    %v1353 = vpop.permute.xlu0 %1352
    %1354 = vrot.lane.b32.xlu0 %v1083, 64
    %v1355 = vpop.permute.xlu0 %1354
    %1356 = vrot.lane.b32.xlu0 %v1015, 64
    %v1357 = vpop.permute.xlu0 %1356
    %1358 = vrot.lane.b32.xlu0 %v1071, 64
    %v1359 = vpop.permute.xlu0 %1358
    %1360 = vrot.lane.b32.xlu0 %v1074, 64
    %v1361 = vpop.permute.xlu0 %1360
    %1362 = vrot.lane.b32.xlu0 %v1020, 64
    %v1363 = vpop.permute.xlu0 %1362
    %1364 = vrot.lane.b32.xlu0 %v1077, 64
    %v1365 = vpop.permute.xlu0 %1364
    %1366 = vrot.lane.b32.xlu0 %v1021, 64
    %v1367 = vpop.permute.xlu0 %1366
    %1368 = vrot.lane.b32.xlu0 %v1080, 64
    %v1369 = vpop.permute.xlu0 %1368
    %1370 = vrot.lane.b32.xlu0 %v1051, 64
    %v1371 = vpop.permute.xlu0 %1370
    %1372 = vrot.lane.b32.xlu0 %v1086, 64
    %v1373 = vpop.permute.xlu0 %1372
    %v1374 = vsel %vm1297, %v1341, %v1343
    %v1375 = vsel %vm1297, %v1343, %v1345
    %v1376 = vsel %vm1297, %v1343, %v1347
    %v1377 = vsel %vm1297, %v1347, %v1349
    %v1378 = vsel %vm1297, %v1347, %v1351
    %v1379 = vsel %vm1297, %v1351, %v1353
    %v1380 = vsel %vm1297, %v1351, %v1355
    %v1381 = vsel %vm1297, %v1355, %v1357
    %v1382 = vsel %vm1297, %v1359, %v1361
    %v1383 = vsel %vm1297, %v1361, %v1363
    %v1384 = vsel %vm1297, %v1361, %v1365
    %v1385 = vsel %vm1297, %v1365, %v1367
    %v1386 = vsel %vm1297, %v1365, %v1369
    %v1387 = vsel %vm1297, %v1369, %v1371
    %v1388 = vsel %vm1297, %v1369, %v1373
    %v1389 = vsel %vm1297, %v1373, %v1357
    %v1407 = vsel %vm248, %v203, %v1264
    %v1410 = vsel %vm248, %v204, %v1266
    %v1413 = vsel %vm248, %v240, %v1270
    %v1416 = vsel %vm248, %v201, %v1274
    %v1419 = vsel %vm248, %v206, %v1282
    %v1422 = vsel %vm248, %v207, %v1284
    %v1425 = vsel %vm248, %v241, %v1288
    %v1428 = vsel %vm248, %v201, %v1292
    %v1431 = vsel %vm248, %v749, %v1341
    %v1434 = vsel %vm248, %v750, %v1343
    %v1437 = vsel %vm248, %v782, %v1347
    %v1440 = vsel %vm248, %v747, %v1351
    %v1443 = vsel %vm248, %v752, %v1359
    %v1446 = vsel %vm248, %v753, %v1361
    %v1449 = vsel %vm248, %v783, %v1365
    %v1452 = vsel %vm248, %v747, %v1369
    %v1454 = vld [vmem:[#allocation2] sm:$0xf]
    %v1455 = vld [vmem:[#allocation2 + $0x4] sm:$0xf]
    %v1456 = vld [vmem:[#allocation2 + $0x8] sm:$0xf]
    %v1457 = vld [vmem:[#allocation2 + $0xc] sm:$0xf]
    %v1458 = vld [vmem:[#allocation2 + $0x10] sm:$0xf]
    %v1459 = vld [vmem:[#allocation2 + $0x14] sm:$0xf]
    %v1460 = vld [vmem:[#allocation2 + $0x18] sm:$0xf]
    %v1461 = vld [vmem:[#allocation2 + $0x1c] sm:$0xf]
    %v1462 = vld [vmem:[#allocation2 + $0x20] sm:$0xf]
    %v1463 = vld [vmem:[#allocation2 + $0x24] sm:$0xf]
    %v1464 = vld [vmem:[#allocation2 + $0x28] sm:$0xf]
    %v1465 = vld [vmem:[#allocation2 + $0x2c] sm:$0xf]
    %v1466 = vld [vmem:[#allocation2 + $0x30] sm:$0xf]
    %v1467 = vld [vmem:[#allocation2 + $0x34] sm:$0xf]
    %v1468 = vld [vmem:[#allocation2 + $0x38] sm:$0xf]
    %v1469 = vld [vmem:[#allocation2 + $0x3c] sm:$0xf]
    %v1470 = vld [vmem:[#allocation2 + $0x40] sm:$0xf]
    %v1471 = vld [vmem:[#allocation2 + $0x44] sm:$0xf]
    %v1472 = vld [vmem:[#allocation2 + $0x48] sm:$0xf]
    %v1473 = vld [vmem:[#allocation2 + $0x4c] sm:$0xf]
    %v1474 = vld [vmem:[#allocation2 + $0x50] sm:$0xf]
    %v1475 = vld [vmem:[#allocation2 + $0x54] sm:$0xf]
    %v1476 = vld [vmem:[#allocation2 + $0x58] sm:$0xf]
    %v1477 = vld [vmem:[#allocation2 + $0x5c] sm:$0xf]
    %v1478 = vld [vmem:[#allocation2 + $0x60] sm:$0xf]
    %v1479 = vld [vmem:[#allocation2 + $0x64] sm:$0xf]
    %v1480 = vld [vmem:[#allocation2 + $0x68] sm:$0xf]
    %v1481 = vld [vmem:[#allocation2 + $0x6c] sm:$0xf]
    %v1482 = vld [vmem:[#allocation2 + $0x70] sm:$0xf]
    %v1483 = vld [vmem:[#allocation2 + $0x74] sm:$0xf]
    %v1484 = vld [vmem:[#allocation2 + $0x78] sm:$0xf]
    %v1485 = vld [vmem:[#allocation2 + $0x7c] sm:$0xf]
    %v1486 = vld [vmem:[#allocation2 + $0x80] sm:$0xf]
    %v1487 = vld [vmem:[#allocation2 + $0x84] sm:$0xf]
    %v1488 = vld [vmem:[#allocation2 + $0x88] sm:$0xf]
    %v1489 = vld [vmem:[#allocation2 + $0x8c] sm:$0xf]
    %v1490 = vld [vmem:[#allocation2 + $0x90] sm:$0xf]
    %v1491 = vld [vmem:[#allocation2 + $0x94] sm:$0xf]
    %v1492 = vld [vmem:[#allocation2 + $0x98] sm:$0xf]
    %v1493 = vld [vmem:[#allocation2 + $0x9c] sm:$0xf]
    %v1494 = vld [vmem:[#allocation2 + $0xa0] sm:$0xf]
    %v1495 = vld [vmem:[#allocation2 + $0xa4] sm:$0xf]
    %v1496 = vld [vmem:[#allocation2 + $0xa8] sm:$0xf]
    %v1497 = vld [vmem:[#allocation2 + $0xac] sm:$0xf]
    %v1498 = vld [vmem:[#allocation2 + $0xb0] sm:$0xf]
    %v1499 = vld [vmem:[#allocation2 + $0xb4] sm:$0xf]
    %v1500 = vld [vmem:[#allocation2 + $0xb8] sm:$0xf]
    %v1501 = vld [vmem:[#allocation2 + $0xbc] sm:$0xf]
    %v1502 = vld [vmem:[#allocation2 + $0xc0] sm:$0xf]
    %v1503 = vld [vmem:[#allocation2 + $0xc4] sm:$0xf]
    %v1504 = vld [vmem:[#allocation2 + $0xc8] sm:$0xf]
    %v1505 = vld [vmem:[#allocation2 + $0xcc] sm:$0xf]
    %v1506 = vld [vmem:[#allocation2 + $0xd0] sm:$0xf]
    %v1507 = vld [vmem:[#allocation2 + $0xd4] sm:$0xf]
    %v1508 = vld [vmem:[#allocation2 + $0xd8] sm:$0xf]
    %v1509 = vld [vmem:[#allocation2 + $0xdc] sm:$0xf]
    %v1510 = vld [vmem:[#allocation2 + $0xe0] sm:$0xf]
    %v1511 = vld [vmem:[#allocation2 + $0xe4] sm:$0xf]
    %v1512 = vld [vmem:[#allocation2 + $0xe8] sm:$0xf]
    %v1513 = vld [vmem:[#allocation2 + $0xec] sm:$0xf]
    %v1514 = vld [vmem:[#allocation2 + $0xf0] sm:$0xf]
    %v1515 = vld [vmem:[#allocation2 + $0xf4] sm:$0xf]
    %v1516 = vld [vmem:[#allocation2 + $0xf8] sm:$0xf]
    %v1517 = vld [vmem:[#allocation2 + $0xfc] sm:$0xf]
    %v1518 = vld [vmem:[#allocation2 + $0x100] sm:$0xf]
    %v1519 = vld [vmem:[#allocation2 + $0x104] sm:$0xf]
    %v1520 = vld [vmem:[#allocation2 + $0x108] sm:$0xf]
    %v1521 = vld [vmem:[#allocation2 + $0x10c] sm:$0xf]
    %v1522 = vld [vmem:[#allocation2 + $0x110] sm:$0xf]
    %v1523 = vld [vmem:[#allocation2 + $0x114] sm:$0xf]
    %v1524 = vld [vmem:[#allocation2 + $0x118] sm:$0xf]
    %v1525 = vld [vmem:[#allocation2 + $0x11c] sm:$0xf]
    %v1526 = vld [vmem:[#allocation2 + $0x120] sm:$0xf]
    %v1527 = vld [vmem:[#allocation2 + $0x124] sm:$0xf]
    %v1528 = vld [vmem:[#allocation2 + $0x128] sm:$0xf]
    %v1529 = vld [vmem:[#allocation2 + $0x12c] sm:$0xf]
    %v1530 = vld [vmem:[#allocation2 + $0x130] sm:$0xf]
    %v1531 = vld [vmem:[#allocation2 + $0x134] sm:$0xf]
    %v1532 = vld [vmem:[#allocation2 + $0x138] sm:$0xf]
    %v1533 = vld [vmem:[#allocation2 + $0x13c] sm:$0xf]
    %v1534 = vld [vmem:[#allocation2 + $0x140] sm:$0xf]
    %v1535 = vld [vmem:[#allocation2 + $0x144] sm:$0xf]
    %v1536 = vld [vmem:[#allocation2 + $0x148] sm:$0xf]
    %v1537 = vld [vmem:[#allocation2 + $0x14c] sm:$0xf]
    %v1538 = vld [vmem:[#allocation2 + $0x150] sm:$0xf]
    %v1539 = vld [vmem:[#allocation2 + $0x154] sm:$0xf]
    %v1540 = vld [vmem:[#allocation2 + $0x158] sm:$0xf]
    %v1541 = vld [vmem:[#allocation2 + $0x15c] sm:$0xf]
    %v1542 = vld [vmem:[#allocation2 + $0x160] sm:$0xf]
    %v1543 = vld [vmem:[#allocation2 + $0x164] sm:$0xf]
    %v1544 = vld [vmem:[#allocation2 + $0x168] sm:$0xf]
    %v1545 = vld [vmem:[#allocation2 + $0x16c] sm:$0xf]
    %v1546 = vld [vmem:[#allocation2 + $0x170] sm:$0xf]
    %v1547 = vld [vmem:[#allocation2 + $0x174] sm:$0xf]
    %v1548 = vld [vmem:[#allocation2 + $0x178] sm:$0xf]
    %v1549 = vld [vmem:[#allocation2 + $0x17c] sm:$0xf]
    %v1550 = vld [vmem:[#allocation2 + $0x180] sm:$0xf]
    %v1551 = vld [vmem:[#allocation2 + $0x184] sm:$0xf]
    %v1552 = vld [vmem:[#allocation2 + $0x188] sm:$0xf]
    %v1553 = vld [vmem:[#allocation2 + $0x18c] sm:$0xf]
    %v1554 = vld [vmem:[#allocation2 + $0x190] sm:$0xf]
    %v1555 = vld [vmem:[#allocation2 + $0x194] sm:$0xf]
    %v1556 = vld [vmem:[#allocation2 + $0x198] sm:$0xf]
    %v1557 = vld [vmem:[#allocation2 + $0x19c] sm:$0xf]
    %v1558 = vld [vmem:[#allocation2 + $0x1a0] sm:$0xf]
    %v1559 = vld [vmem:[#allocation2 + $0x1a4] sm:$0xf]
    %v1560 = vld [vmem:[#allocation2 + $0x1a8] sm:$0xf]
    %v1561 = vld [vmem:[#allocation2 + $0x1ac] sm:$0xf]
    %v1562 = vld [vmem:[#allocation2 + $0x1b0] sm:$0xf]
    %v1563 = vld [vmem:[#allocation2 + $0x1b4] sm:$0xf]
    %v1564 = vld [vmem:[#allocation2 + $0x1b8] sm:$0xf]
    %v1565 = vld [vmem:[#allocation2 + $0x1bc] sm:$0xf]
    %v1566 = vld [vmem:[#allocation2 + $0x1c0] sm:$0xf]
    %v1567 = vld [vmem:[#allocation2 + $0x1c4] sm:$0xf]
    %v1568 = vld [vmem:[#allocation2 + $0x1c8] sm:$0xf]
    %v1569 = vld [vmem:[#allocation2 + $0x1cc] sm:$0xf]
    %v1570 = vld [vmem:[#allocation2 + $0x1d0] sm:$0xf]
    %v1571 = vld [vmem:[#allocation2 + $0x1d4] sm:$0xf]
    %v1572 = vld [vmem:[#allocation2 + $0x1d8] sm:$0xf]
    %v1573 = vld [vmem:[#allocation2 + $0x1dc] sm:$0xf]
    %v1574 = vld [vmem:[#allocation2 + $0x1e0] sm:$0xf]
    %v1575 = vld [vmem:[#allocation2 + $0x1e4] sm:$0xf]
    %v1576 = vld [vmem:[#allocation2 + $0x1e8] sm:$0xf]
    %v1577 = vld [vmem:[#allocation2 + $0x1ec] sm:$0xf]
    %v1578 = vld [vmem:[#allocation2 + $0x1f0] sm:$0xf]
    %v1579 = vld [vmem:[#allocation2 + $0x1f4] sm:$0xf]
    %v1580 = vld [vmem:[#allocation2 + $0x1f8] sm:$0xf]
    %v1581 = vld [vmem:[#allocation2 + $0x1fc] sm:$0xf]
    %v1582 = vld [vmem:[#allocation2 + $0x200] sm:$0xf]
    %v1583 = vld [vmem:[#allocation2 + $0x204] sm:$0xf]
    %v1584 = vld [vmem:[#allocation2 + $0x208] sm:$0xf]
    %v1585 = vld [vmem:[#allocation2 + $0x20c] sm:$0xf]
    %v1586 = vld [vmem:[#allocation2 + $0x210] sm:$0xf]
    %v1587 = vld [vmem:[#allocation2 + $0x214] sm:$0xf]
    %v1588 = vld [vmem:[#allocation2 + $0x218] sm:$0xf]
    %v1589 = vld [vmem:[#allocation2 + $0x21c] sm:$0xf]
    %v1590 = vld [vmem:[#allocation2 + $0x220] sm:$0xf]
    %v1591 = vld [vmem:[#allocation2 + $0x224] sm:$0xf]
    %v1592 = vld [vmem:[#allocation2 + $0x228] sm:$0xf]
    %v1593 = vld [vmem:[#allocation2 + $0x22c] sm:$0xf]
    %v1594 = vld [vmem:[#allocation2 + $0x230] sm:$0xf]
    %v1595 = vld [vmem:[#allocation2 + $0x234] sm:$0xf]
    %v1596 = vld [vmem:[#allocation2 + $0x238] sm:$0xf]
    %v1597 = vld [vmem:[#allocation2 + $0x23c] sm:$0xf]
    %v1598 = vld [vmem:[#allocation2 + $0x240] sm:$0xf]
    %v1599 = vld [vmem:[#allocation2 + $0x244] sm:$0xf]
    %v1600 = vld [vmem:[#allocation2 + $0x248] sm:$0xf]
    %v1601 = vld [vmem:[#allocation2 + $0x24c] sm:$0xf]
    %v1602 = vld [vmem:[#allocation2 + $0x250] sm:$0xf]
    %v1603 = vld [vmem:[#allocation2 + $0x254] sm:$0xf]
    %v1604 = vld [vmem:[#allocation2 + $0x258] sm:$0xf]
    %v1605 = vld [vmem:[#allocation2 + $0x25c] sm:$0xf]
    %v1606 = vld [vmem:[#allocation2 + $0x260] sm:$0xf]
    %v1607 = vld [vmem:[#allocation2 + $0x264] sm:$0xf]
    %v1608 = vld [vmem:[#allocation2 + $0x268] sm:$0xf]
    %v1609 = vld [vmem:[#allocation2 + $0x26c] sm:$0xf]
    %v1610 = vld [vmem:[#allocation2 + $0x270] sm:$0xf]
    %v1611 = vld [vmem:[#allocation2 + $0x274] sm:$0xf]
    %v1612 = vld [vmem:[#allocation2 + $0x278] sm:$0xf]
    %v1613 = vld [vmem:[#allocation2 + $0x27c] sm:$0xf]
    %v1614 = vld [vmem:[#allocation2 + $0x280] sm:$0xf]
    %v1615 = vld [vmem:[#allocation2 + $0x284] sm:$0xf]
    %v1616 = vld [vmem:[#allocation2 + $0x288] sm:$0xf]
    %v1617 = vld [vmem:[#allocation2 + $0x28c] sm:$0xf]
    %v1618 = vld [vmem:[#allocation2 + $0x290] sm:$0xf]
    %v1619 = vld [vmem:[#allocation2 + $0x294] sm:$0xf]
    %v1620 = vld [vmem:[#allocation2 + $0x298] sm:$0xf]
    %v1621 = vld [vmem:[#allocation2 + $0x29c] sm:$0xf]
    %v1622 = vld [vmem:[#allocation2 + $0x2a0] sm:$0xf]
    %v1623 = vld [vmem:[#allocation2 + $0x2a4] sm:$0xf]
    %v1624 = vld [vmem:[#allocation2 + $0x2a8] sm:$0xf]
    %v1625 = vld [vmem:[#allocation2 + $0x2ac] sm:$0xf]
    %v1626 = vld [vmem:[#allocation2 + $0x2b0] sm:$0xf]
    %v1627 = vld [vmem:[#allocation2 + $0x2b4] sm:$0xf]
    %v1628 = vld [vmem:[#allocation2 + $0x2b8] sm:$0xf]
    %v1629 = vld [vmem:[#allocation2 + $0x2bc] sm:$0xf]
    %v1630 = vld [vmem:[#allocation2 + $0x2c0] sm:$0xf]
    %v1631 = vld [vmem:[#allocation2 + $0x2c4] sm:$0xf]
    %v1632 = vld [vmem:[#allocation2 + $0x2c8] sm:$0xf]
    %v1633 = vld [vmem:[#allocation2 + $0x2cc] sm:$0xf]
    %v1634 = vld [vmem:[#allocation2 + $0x2d0] sm:$0xf]
    %v1635 = vld [vmem:[#allocation2 + $0x2d4] sm:$0xf]
    %v1636 = vld [vmem:[#allocation2 + $0x2d8] sm:$0xf]
    %v1637 = vld [vmem:[#allocation2 + $0x2dc] sm:$0xf]
    %v1638 = vld [vmem:[#allocation2 + $0x2e0] sm:$0xf]
    %v1639 = vld [vmem:[#allocation2 + $0x2e4] sm:$0xf]
    %v1640 = vld [vmem:[#allocation2 + $0x2e8] sm:$0xf]
    %v1641 = vld [vmem:[#allocation2 + $0x2ec] sm:$0xf]
    %v1642 = vld [vmem:[#allocation2 + $0x2f0] sm:$0xf]
    %v1643 = vld [vmem:[#allocation2 + $0x2f4] sm:$0xf]
    %v1644 = vld [vmem:[#allocation2 + $0x2f8] sm:$0xf]
    %v1645 = vld [vmem:[#allocation2 + $0x2fc] sm:$0xf]
    %v1646 = vld [vmem:[#allocation2 + $0x300] sm:$0xf]
    %v1647 = vld [vmem:[#allocation2 + $0x304] sm:$0xf]
    %v1648 = vld [vmem:[#allocation2 + $0x308] sm:$0xf]
    %v1649 = vld [vmem:[#allocation2 + $0x30c] sm:$0xf]
    %v1650 = vld [vmem:[#allocation2 + $0x310] sm:$0xf]
    %v1651 = vld [vmem:[#allocation2 + $0x314] sm:$0xf]
    %v1652 = vld [vmem:[#allocation2 + $0x318] sm:$0xf]
    %v1653 = vld [vmem:[#allocation2 + $0x31c] sm:$0xf]
    %v1854 = vunpack.c.l.b16 %v1454
    %v1855 = vunpack.c.l.b16 %v1455
    %v1856 = vunpack.c.l.b16 %v1456
    %v1857 = vunpack.c.l.b16 %v1457
    %v1858 = vunpack.c.l.b16 %v1458
    %v1859 = vunpack.c.l.b16 %v1459
    %v1860 = vunpack.c.l.b16 %v1460
    %v1861 = vunpack.c.l.b16 %v1461
    %v1862 = vunpack.c.l.b16 %v1462
    %v1863 = vunpack.c.l.b16 %v1463
    %v1864 = vunpack.c.l.b16 %v1464
    %v1865 = vunpack.c.l.b16 %v1465
    %v1866 = vunpack.c.l.b16 %v1466
    %v1867 = vunpack.c.l.b16 %v1467
    %v1868 = vunpack.c.l.b16 %v1468
    %v1869 = vunpack.c.l.b16 %v1469
    %v1870 = vunpack.c.l.b16 %v1470
    %v1871 = vunpack.c.l.b16 %v1471
    %v1872 = vunpack.c.l.b16 %v1472
    %v1873 = vunpack.c.l.b16 %v1473
    %v1874 = vunpack.c.l.b16 %v1474
    %v1875 = vunpack.c.l.b16 %v1475
    %v1876 = vunpack.c.l.b16 %v1476
    %v1877 = vunpack.c.l.b16 %v1477
    %v1878 = vunpack.c.l.b16 %v1478
    %v1879 = vunpack.c.l.b16 %v1479
    %v1880 = vunpack.c.l.b16 %v1480
    %v1881 = vunpack.c.l.b16 %v1481
    %v1882 = vunpack.c.l.b16 %v1482
    %v1883 = vunpack.c.l.b16 %v1483
    %v1884 = vunpack.c.l.b16 %v1484
    %v1885 = vunpack.c.l.b16 %v1485
    %v1886 = vunpack.c.l.b16 %v1486
    %v1887 = vunpack.c.l.b16 %v1487
    %v1888 = vunpack.c.l.b16 %v1488
    %v1889 = vunpack.c.l.b16 %v1489
    %v1890 = vunpack.c.l.b16 %v1490
    %v1891 = vunpack.c.l.b16 %v1491
    %v1892 = vunpack.c.l.b16 %v1492
    %v1893 = vunpack.c.l.b16 %v1493
    %v1894 = vunpack.c.l.b16 %v1494
    %v1895 = vunpack.c.l.b16 %v1495
    %v1896 = vunpack.c.l.b16 %v1496
    %v1897 = vunpack.c.l.b16 %v1497
    %v1898 = vunpack.c.l.b16 %v1498
    %v1899 = vunpack.c.l.b16 %v1499
    %v1900 = vunpack.c.l.b16 %v1500
    %v1901 = vunpack.c.l.b16 %v1501
    %v1902 = vunpack.c.l.b16 %v1502
    %v1903 = vunpack.c.l.b16 %v1503
    %v1904 = vunpack.c.l.b16 %v1504
    %v1905 = vunpack.c.l.b16 %v1505
    %v1906 = vunpack.c.l.b16 %v1506
    %v1907 = vunpack.c.l.b16 %v1507
    %v1908 = vunpack.c.l.b16 %v1508
    %v1909 = vunpack.c.l.b16 %v1509
    %v1910 = vunpack.c.l.b16 %v1510
    %v1911 = vunpack.c.l.b16 %v1511
    %v1912 = vunpack.c.l.b16 %v1512
    %v1913 = vunpack.c.l.b16 %v1513
    %v1914 = vunpack.c.l.b16 %v1514
    %v1915 = vunpack.c.l.b16 %v1515
    %v1916 = vunpack.c.l.b16 %v1516
    %v1917 = vunpack.c.l.b16 %v1517
    %v1918 = vunpack.c.l.b16 %v1518
    %v1919 = vunpack.c.l.b16 %v1519
    %v1920 = vunpack.c.l.b16 %v1520
    %v1921 = vunpack.c.l.b16 %v1521
    %v1922 = vunpack.c.l.b16 %v1522
    %v1923 = vunpack.c.l.b16 %v1523
    %v1924 = vunpack.c.l.b16 %v1524
    %v1925 = vunpack.c.l.b16 %v1525
    %v1926 = vunpack.c.l.b16 %v1526
    %v1927 = vunpack.c.l.b16 %v1527
    %v1928 = vunpack.c.l.b16 %v1528
    %v1929 = vunpack.c.l.b16 %v1529
    %v1930 = vunpack.c.l.b16 %v1530
    %v1931 = vunpack.c.l.b16 %v1531
    %v1932 = vunpack.c.l.b16 %v1532
    %v1933 = vunpack.c.l.b16 %v1533
    %v1934 = vunpack.c.l.b16 %v1534
    %v1935 = vunpack.c.l.b16 %v1535
    %v1936 = vunpack.c.l.b16 %v1536
    %v1937 = vunpack.c.l.b16 %v1537
    %v1938 = vunpack.c.l.b16 %v1538
    %v1939 = vunpack.c.l.b16 %v1539
    %v1940 = vunpack.c.l.b16 %v1540
    %v1941 = vunpack.c.l.b16 %v1541
    %v1942 = vunpack.c.l.b16 %v1542
    %v1943 = vunpack.c.l.b16 %v1543
    %v1944 = vunpack.c.l.b16 %v1544
    %v1945 = vunpack.c.l.b16 %v1545
    %v1946 = vunpack.c.l.b16 %v1546
    %v1947 = vunpack.c.l.b16 %v1547
    %v1948 = vunpack.c.l.b16 %v1548
    %v1949 = vunpack.c.l.b16 %v1549
    %v1950 = vunpack.c.l.b16 %v1550
    %v1951 = vunpack.c.l.b16 %v1551
    %v1952 = vunpack.c.l.b16 %v1552
    %v1953 = vunpack.c.l.b16 %v1553
    %v1954 = vunpack.c.l.b16 %v1554
    %v1955 = vunpack.c.l.b16 %v1555
    %v1956 = vunpack.c.l.b16 %v1556
    %v1957 = vunpack.c.l.b16 %v1557
    %v1958 = vunpack.c.l.b16 %v1558
    %v1959 = vunpack.c.l.b16 %v1559
    %v1960 = vunpack.c.l.b16 %v1560
    %v1961 = vunpack.c.l.b16 %v1561
    %v1962 = vunpack.c.l.b16 %v1562
    %v1963 = vunpack.c.l.b16 %v1563
    %v1964 = vunpack.c.l.b16 %v1564
    %v1965 = vunpack.c.l.b16 %v1565
    %v1966 = vunpack.c.l.b16 %v1566
    %v1967 = vunpack.c.l.b16 %v1567
    %v1968 = vunpack.c.l.b16 %v1568
    %v1969 = vunpack.c.l.b16 %v1569
    %v1970 = vunpack.c.l.b16 %v1570
    %v1971 = vunpack.c.l.b16 %v1571
    %v1972 = vunpack.c.l.b16 %v1572
    %v1973 = vunpack.c.l.b16 %v1573
    %v1974 = vunpack.c.l.b16 %v1574
    %v1975 = vunpack.c.l.b16 %v1575
    %v1976 = vunpack.c.l.b16 %v1576
    %v1977 = vunpack.c.l.b16 %v1577
    %v1978 = vunpack.c.l.b16 %v1578
    %v1979 = vunpack.c.l.b16 %v1579
    %v1980 = vunpack.c.l.b16 %v1580
    %v1981 = vunpack.c.l.b16 %v1581
    %v1982 = vunpack.c.l.b16 %v1582
    %v1983 = vunpack.c.l.b16 %v1583
    %v1984 = vunpack.c.l.b16 %v1584
    %v1985 = vunpack.c.l.b16 %v1585
    %v1986 = vunpack.c.l.b16 %v1586
    %v1987 = vunpack.c.l.b16 %v1587
    %v1988 = vunpack.c.l.b16 %v1588
    %v1989 = vunpack.c.l.b16 %v1589
    %v1990 = vunpack.c.l.b16 %v1590
    %v1991 = vunpack.c.l.b16 %v1591
    %v1992 = vunpack.c.l.b16 %v1592
    %v1993 = vunpack.c.l.b16 %v1593
    %v1994 = vunpack.c.l.b16 %v1594
    %v1995 = vunpack.c.l.b16 %v1595
    %v1996 = vunpack.c.l.b16 %v1596
    %v1997 = vunpack.c.l.b16 %v1597
    %v1998 = vunpack.c.l.b16 %v1598
    %v1999 = vunpack.c.l.b16 %v1599
    %v2000 = vunpack.c.l.b16 %v1600
    %v2001 = vunpack.c.l.b16 %v1601
    %v2002 = vunpack.c.l.b16 %v1602
    %v2003 = vunpack.c.l.b16 %v1603
    %v2004 = vunpack.c.l.b16 %v1604
    %v2005 = vunpack.c.l.b16 %v1605
    %v2006 = vunpack.c.l.b16 %v1606
    %v2007 = vunpack.c.l.b16 %v1607
    %v2008 = vunpack.c.l.b16 %v1608
    %v2009 = vunpack.c.l.b16 %v1609
    %v2010 = vunpack.c.l.b16 %v1610
    %v2011 = vunpack.c.l.b16 %v1611
    %v2012 = vunpack.c.l.b16 %v1612
    %v2013 = vunpack.c.l.b16 %v1613
    %v2014 = vunpack.c.l.b16 %v1614
    %v2015 = vunpack.c.l.b16 %v1615
    %v2016 = vunpack.c.l.b16 %v1616
    %v2017 = vunpack.c.l.b16 %v1617
    %v2018 = vunpack.c.l.b16 %v1618
    %v2019 = vunpack.c.l.b16 %v1619
    %v2020 = vunpack.c.l.b16 %v1620
    %v2021 = vunpack.c.l.b16 %v1621
    %v2022 = vunpack.c.l.b16 %v1622
    %v2023 = vunpack.c.l.b16 %v1623
    %v2024 = vunpack.c.l.b16 %v1624
    %v2025 = vunpack.c.l.b16 %v1625
    %v2026 = vunpack.c.l.b16 %v1626
    %v2027 = vunpack.c.l.b16 %v1627
    %v2028 = vunpack.c.l.b16 %v1628
    %v2029 = vunpack.c.l.b16 %v1629
    %v2030 = vunpack.c.l.b16 %v1630
    %v2031 = vunpack.c.l.b16 %v1631
    %v2032 = vunpack.c.l.b16 %v1632
    %v2033 = vunpack.c.l.b16 %v1633
    %v2034 = vunpack.c.l.b16 %v1634
    %v2035 = vunpack.c.l.b16 %v1635
    %v2036 = vunpack.c.l.b16 %v1636
    %v2037 = vunpack.c.l.b16 %v1637
    %v2038 = vunpack.c.l.b16 %v1638
    %v2039 = vunpack.c.l.b16 %v1639
    %v2040 = vunpack.c.l.b16 %v1640
    %v2041 = vunpack.c.l.b16 %v1641
    %v2042 = vunpack.c.l.b16 %v1642
    %v2043 = vunpack.c.l.b16 %v1643
    %v2044 = vunpack.c.l.b16 %v1644
    %v2045 = vunpack.c.l.b16 %v1645
    %v2046 = vunpack.c.l.b16 %v1646
    %v2047 = vunpack.c.l.b16 %v1647
    %v2048 = vunpack.c.l.b16 %v1648
    %v2049 = vunpack.c.l.b16 %v1649
    %v2050 = vunpack.c.l.b16 %v1650
    %v2051 = vunpack.c.l.b16 %v1651
    %v2052 = vunpack.c.l.b16 %v1652
    %v2053 = vunpack.c.l.b16 %v1653
    %v2054 = vpack.c.b16 %v1855, %v1854
    %v2055 = vpack.c.b16 %v1857, %v1856
    %v2056 = vpack.c.b16 %v1859, %v1858
    %v2057 = vpack.c.b16 %v1861, %v1860
    %v2058 = vpack.c.b16 %v1863, %v1862
    %v2059 = vpack.c.b16 %v1865, %v1864
    %v2060 = vpack.c.b16 %v1867, %v1866
    %v2061 = vpack.c.b16 %v1869, %v1868
    %v2062 = vpack.c.b16 %v1871, %v1870
    %v2063 = vpack.c.b16 %v1873, %v1872
    %v2064 = vpack.c.b16 %v1875, %v1874
    %v2065 = vpack.c.b16 %v1877, %v1876
    %v2066 = vpack.c.b16 %v1879, %v1878
    %v2067 = vpack.c.b16 %v1881, %v1880
    %v2068 = vpack.c.b16 %v1883, %v1882
    %v2069 = vpack.c.b16 %v1885, %v1884
    %v2070 = vpack.c.b16 %v1887, %v1886
    %v2071 = vpack.c.b16 %v1889, %v1888
    %v2072 = vpack.c.b16 %v1891, %v1890
    %v2073 = vpack.c.b16 %v1893, %v1892
    %v2074 = vpack.c.b16 %v1895, %v1894
    %v2075 = vpack.c.b16 %v1897, %v1896
    %v2076 = vpack.c.b16 %v1899, %v1898
    %v2077 = vpack.c.b16 %v1901, %v1900
    %v2078 = vpack.c.b16 %v1903, %v1902
    %v2079 = vpack.c.b16 %v1905, %v1904
    %v2080 = vpack.c.b16 %v1907, %v1906
    %v2081 = vpack.c.b16 %v1909, %v1908
    %v2082 = vpack.c.b16 %v1911, %v1910
    %v2083 = vpack.c.b16 %v1913, %v1912
    %v2084 = vpack.c.b16 %v1915, %v1914
    %v2085 = vpack.c.b16 %v1917, %v1916
    %v2086 = vpack.c.b16 %v1919, %v1918
    %v2087 = vpack.c.b16 %v1921, %v1920
    %v2088 = vpack.c.b16 %v1923, %v1922
    %v2089 = vpack.c.b16 %v1925, %v1924
    %v2090 = vpack.c.b16 %v1927, %v1926
    %v2091 = vpack.c.b16 %v1929, %v1928
    %v2092 = vpack.c.b16 %v1931, %v1930
    %v2093 = vpack.c.b16 %v1933, %v1932
    %v2094 = vpack.c.b16 %v1935, %v1934
    %v2095 = vpack.c.b16 %v1937, %v1936
    %v2096 = vpack.c.b16 %v1939, %v1938
    %v2097 = vpack.c.b16 %v1941, %v1940
    %v2098 = vpack.c.b16 %v1943, %v1942
    %v2099 = vpack.c.b16 %v1945, %v1944
    %v2100 = vpack.c.b16 %v1947, %v1946
    %v2101 = vpack.c.b16 %v1949, %v1948
    %v2102 = vpack.c.b16 %v1951, %v1950
    %v2103 = vpack.c.b16 %v1953, %v1952
    %v2104 = vpack.c.b16 %v1955, %v1954
    %v2105 = vpack.c.b16 %v1957, %v1956
    %v2106 = vpack.c.b16 %v1959, %v1958
    %v2107 = vpack.c.b16 %v1961, %v1960
    %v2108 = vpack.c.b16 %v1963, %v1962
    %v2109 = vpack.c.b16 %v1965, %v1964
    %v2110 = vpack.c.b16 %v1967, %v1966
    %v2111 = vpack.c.b16 %v1969, %v1968
    %v2112 = vpack.c.b16 %v1971, %v1970
    %v2113 = vpack.c.b16 %v1973, %v1972
    %v2114 = vpack.c.b16 %v1975, %v1974
    %v2115 = vpack.c.b16 %v1977, %v1976
    %v2116 = vpack.c.b16 %v1979, %v1978
    %v2117 = vpack.c.b16 %v1981, %v1980
    %v2118 = vpack.c.b16 %v1983, %v1982
    %v2119 = vpack.c.b16 %v1985, %v1984
    %v2120 = vpack.c.b16 %v1987, %v1986
    %v2121 = vpack.c.b16 %v1989, %v1988
    %v2122 = vpack.c.b16 %v1991, %v1990
    %v2123 = vpack.c.b16 %v1993, %v1992
    %v2124 = vpack.c.b16 %v1995, %v1994
    %v2125 = vpack.c.b16 %v1997, %v1996
    %v2126 = vpack.c.b16 %v1999, %v1998
    %v2127 = vpack.c.b16 %v2001, %v2000
    %v2128 = vpack.c.b16 %v2003, %v2002
    %v2129 = vpack.c.b16 %v2005, %v2004
    %v2130 = vpack.c.b16 %v2007, %v2006
    %v2131 = vpack.c.b16 %v2009, %v2008
    %v2132 = vpack.c.b16 %v2011, %v2010
    %v2133 = vpack.c.b16 %v2013, %v2012
    %v2134 = vpack.c.b16 %v2015, %v2014
    %v2135 = vpack.c.b16 %v2017, %v2016
    %v2136 = vpack.c.b16 %v2019, %v2018
    %v2137 = vpack.c.b16 %v2021, %v2020
    %v2138 = vpack.c.b16 %v2023, %v2022
    %v2139 = vpack.c.b16 %v2025, %v2024
    %v2140 = vpack.c.b16 %v2027, %v2026
    %v2141 = vpack.c.b16 %v2029, %v2028
    %v2142 = vpack.c.b16 %v2031, %v2030
    %v2143 = vpack.c.b16 %v2033, %v2032
    %v2144 = vpack.c.b16 %v2035, %v2034
    %v2145 = vpack.c.b16 %v2037, %v2036
    %v2146 = vpack.c.b16 %v2039, %v2038
    %v2147 = vpack.c.b16 %v2041, %v2040
    %v2148 = vpack.c.b16 %v2043, %v2042
    %v2149 = vpack.c.b16 %v2045, %v2044
    %v2150 = vpack.c.b16 %v2047, %v2046
    %v2151 = vpack.c.b16 %v2049, %v2048
    %v2152 = vpack.c.b16 %v2051, %v2050
    %v2153 = vpack.c.b16 %v2053, %v2052
    %v2254 = vsel %vm248, %v1173, 0
    %v2256 = vsel %vm248, %v1174, 0
    %v2258 = vsel %vm248, %v1206, 0
    %v2260 = vsel %vm248, %v1171, 0
    %v2262 = vsel %vm248, %v1176, 0
    %v2264 = vsel %vm248, %v1177, 0
    %v2266 = vsel %vm248, %v1207, 0
    %2268 = vmatprep.subr.bf16.mxu0 0
    %2269 = vmatpush1.bf16.msra.mxu0 %v2054
    %2270 = vmatprep.subr.bf16.mxu0 0
    %2271 = vmatpush1.bf16.msra.mxu0 %v2055
    %2272 = vmatprep.subr.bf16.mxu0 0
    %2273 = vmatpush1.bf16.msra.mxu0 %v2056
    %2274 = vmatprep.subr.bf16.mxu0 0
    %2275 = vmatpush1.bf16.msra.mxu0 %v2057
    %2276 = vmatprep.subr.bf16.mxu0 0
    %2277 = vmatpush1.bf16.msra.mxu0 %v2058
    %2278 = vmatprep.subr.bf16.mxu0 0
    %2279 = vmatpush1.bf16.msra.mxu0 %v2059
    %2280 = vmatprep.subr.bf16.mxu0 0
    %2281 = vmatpush1.bf16.msra.mxu0 %v2060
    %2282 = vmatprep.subr.bf16.mxu0 0
    %2283 = vmatpush1.bf16.msra.mxu0 %v2061
    %2284 = vmatprep.subr.bf16.mxu0 0
    %2285 = vmatpush1.bf16.msra.mxu0 %v2062
    %2286 = vmatprep.subr.bf16.mxu0 0
    %2287 = vmatpush1.bf16.msra.mxu0 %v2063
    %2288 = vmatprep.subr.bf16.mxu0 0
    %2289 = vmatpush1.bf16.msra.mxu0 %v2064
    %2290 = vmatprep.subr.bf16.mxu0 0
    %2291 = vmatpush1.bf16.msra.mxu0 %v2065
    %2292 = vmatprep.subr.bf16.mxu0 0
    %2293 = vmatpush1.bf16.msra.mxu0 %v2066
    %2294 = vmatprep.subr.bf16.mxu0 0
    %2295 = vmatpush1.bf16.msra.mxu0 %v2067
    %2296 = vmatprep.subr.bf16.mxu0 0
    %2297 = vmatpush1.bf16.msra.mxu0 %v2068
    %2298 = vmatprep.subr.bf16.mxu0 0
    %2299 = vmatpush1.bf16.msra.mxu0 %v2069
    %2300 = vmatprep.mubr.bf16.mxu0 %v255
    %2301 = vmatmul.mubr.bf16.gmra.mrb[0].mxu0 %v251
    %v2302 = vpop.f32.mrb[0].mxu0
    %v2303 = vadd.f32 0.0, %v2302
    %v2304 = vpop.f32.mrb[0].mxu0
    %v2305 = vpop.f32.mrb[0].mxu0
    %v2306 = vadd.f32 0.0, %v2305
    %v2307 = vpop.f32.mrb[0].mxu0
    %2308 = vmatprep.mubr.bf16.mxu0 %v259
    %2309 = vmatmul.mubr.bf16.gmra.mrb[0].mxu0 %v255
    %v2310 = vpop.f32.mrb[0].mxu0
    %v2311 = vadd.f32 0.0, %v2310
    %v2312 = vpop.f32.mrb[0].mxu0
    %v2313 = vpop.f32.mrb[0].mxu0
    %v2314 = vadd.f32 0.0, %v2313
    %v2315 = vpop.f32.mrb[0].mxu0
    %2316 = vmatprep.mubr.bf16.mxu0 %v263
    %2317 = vmatmul.mubr.bf16.gmra.mrb[0].mxu0 %v259
    %v2318 = vpop.f32.mrb[0].mxu0
    %v2319 = vadd.f32 0.0, %v2318
    %v2320 = vpop.f32.mrb[0].mxu0
    %v2321 = vpop.f32.mrb[0].mxu0
    %v2322 = vadd.f32 0.0, %v2321
    %v2323 = vpop.f32.mrb[0].mxu0
    %2324 = vmatprep.mubr.bf16.mxu0 %v282
    %2325 = vmatmul.mubr.bf16.gmra.mrb[0].mxu0 %v263
    %v2326 = vpop.f32.mrb[0].mxu0
    %v2327 = vadd.f32 0.0, %v2326
    %v2328 = vpop.f32.mrb[0].mxu0
    %v2329 = vpop.f32.mrb[0].mxu0
    %v2330 = vadd.f32 0.0, %v2329
    %v2331 = vpop.f32.mrb[0].mxu0
    %2332 = vmatprep.mubr.bf16.mxu0 %v270
    %2333 = vmatmul.mubr.bf16.gmra.mrb[0].mxu0 %v266
    %v2334 = vpop.f32.mrb[0].mxu0
    %v2335 = vadd.f32 0.0, %v2334
    %v2336 = vpop.f32.mrb[0].mxu0
    %v2337 = vpop.f32.mrb[0].mxu0
    %v2338 = vadd.f32 0.0, %v2337
    %v2339 = vpop.f32.mrb[0].mxu0
    %2340 = vmatprep.mubr.bf16.mxu0 %v274
    %2341 = vmatmul.mubr.bf16.gmra.mrb[0].mxu0 %v270
    %v2342 = vpop.f32.mrb[0].mxu0
    %v2343 = vadd.f32 0.0, %v2342
    %v2344 = vpop.f32.mrb[0].mxu0
    %v2345 = vpop.f32.mrb[0].mxu0
    %v2346 = vadd.f32 0.0, %v2345
    %v2347 = vpop.f32.mrb[0].mxu0
    %2348 = vmatprep.mubr.bf16.mxu0 %v278
    %2349 = vmatmul.mubr.bf16.gmra.mrb[0].mxu0 %v274
    %v2350 = vpop.f32.mrb[0].mxu0
    %v2351 = vadd.f32 0.0, %v2350
    %v2352 = vpop.f32.mrb[0].mxu0
    %v2353 = vpop.f32.mrb[0].mxu0
    %v2354 = vadd.f32 0.0, %v2353
    %v2355 = vpop.f32.mrb[0].mxu0
    %2356 = vmatprep.mubr.bf16.mxu0 %v286
    %2357 = vmatmul.mubr.bf16.gmra.mrb[0].mxu0 %v278
    %v2358 = vpop.f32.mrb[0].mxu0
    %v2359 = vadd.f32 0.0, %v2358
    %v2360 = vpop.f32.mrb[0].mxu0
    %v2361 = vpop.f32.mrb[0].mxu0
    %v2362 = vadd.f32 0.0, %v2361
    %v2363 = vpop.f32.mrb[0].mxu0
    %2364 = vdwg.mxu0
    %2365 = vmatprep.subr.bf16.mxu0 0
    %2366 = vmatpush1.bf16.msra.mxu0 %v2070
    %2367 = vmatprep.subr.bf16.mxu0 0
    %2368 = vmatpush1.bf16.msra.mxu0 %v2071
    %2369 = vmatprep.subr.bf16.mxu0 0
    %2370 = vmatpush1.bf16.msra.mxu0 %v2072
    %2371 = vmatprep.subr.bf16.mxu0 0
    %2372 = vmatpush1.bf16.msra.mxu0 %v2073
    %2373 = vmatprep.subr.bf16.mxu0 0
    %2374 = vmatpush1.bf16.msra.mxu0 %v2074
    %2375 = vmatprep.subr.bf16.mxu0 0
    %2376 = vmatpush1.bf16.msra.mxu0 %v2075
    %2377 = vmatprep.subr.bf16.mxu0 0
    %2378 = vmatpush1.bf16.msra.mxu0 %v2076
    %2379 = vmatprep.subr.bf16.mxu0 0
    %2380 = vmatpush1.bf16.msra.mxu0 %v2077
    %2381 = vmatprep.subr.bf16.mxu0 0
    %2382 = vmatpush1.bf16.msra.mxu0 %v2078
    %2383 = vmatprep.subr.bf16.mxu0 0
    %2384 = vmatpush1.bf16.msra.mxu0 %v2079
    %2385 = vmatprep.subr.bf16.mxu0 0
    %2386 = vmatpush1.bf16.msra.mxu0 %v2080
    %2387 = vmatprep.subr.bf16.mxu0 0
    %2388 = vmatpush1.bf16.msra.mxu0 %v2081
    %2389 = vmatprep.subr.bf16.mxu0 0
    %2390 = vmatpush1.bf16.msra.mxu0 %v2082
    %2391 = vmatprep.subr.bf16.mxu0 0
    %2392 = vmatpush1.bf16.msra.mxu0 %v2083
    %2393 = vmatprep.subr.bf16.mxu0 0
    %2394 = vmatpush1.bf16.msra.mxu0 %v2084
    %2395 = vmatprep.subr.bf16.mxu0 0
    %2396 = vmatpush1.bf16.msra.mxu0 %v2085
    %2397 = vmatprep.mubr.bf16.mxu0 %v1298
    %2398 = vmatmul.mubr.bf16.gmra.mrb[0].mxu0 %v1407
    %v2399 = vpop.f32.mrb[0].mxu0
    %v2400 = vadd.f32 %v2303, %v2399
    %v2401 = vpop.f32.mrb[0].mxu0
    %v2402 = vpop.f32.mrb[0].mxu0
    %v2403 = vadd.f32 %v2306, %v2402
    %v2404 = vpop.f32.mrb[0].mxu0
    %2405 = vmatprep.mubr.bf16.mxu0 %v1300
    %2406 = vmatmul.mubr.bf16.gmra.mrb[0].mxu0 %v1410
    %v2407 = vpop.f32.mrb[0].mxu0
    %v2408 = vadd.f32 %v2311, %v2407
    %v2409 = vpop.f32.mrb[0].mxu0
    %v2410 = vpop.f32.mrb[0].mxu0
    %v2411 = vadd.f32 %v2314, %v2410
    %v2412 = vpop.f32.mrb[0].mxu0
    %2413 = vmatprep.mubr.bf16.mxu0 %v1302
    %2414 = vmatmul.mubr.bf16.gmra.mrb[0].mxu0 %v1413
    %v2415 = vpop.f32.mrb[0].mxu0
    %v2416 = vadd.f32 %v2319, %v2415
    %v2417 = vpop.f32.mrb[0].mxu0
    %v2418 = vpop.f32.mrb[0].mxu0
    %v2419 = vadd.f32 %v2322, %v2418
    %v2420 = vpop.f32.mrb[0].mxu0
    %2421 = vmatprep.mubr.bf16.mxu0 %v1304
    %2422 = vmatmul.mubr.bf16.gmra.mrb[0].mxu0 %v1416
    %v2423 = vpop.f32.mrb[0].mxu0
    %v2424 = vadd.f32 %v2327, %v2423
    %v2425 = vpop.f32.mrb[0].mxu0
    %v2426 = vpop.f32.mrb[0].mxu0
    %v2427 = vadd.f32 %v2330, %v2426
    %v2428 = vpop.f32.mrb[0].mxu0
    %2429 = vmatprep.mubr.bf16.mxu0 %v1306
    %2430 = vmatmul.mubr.bf16.gmra.mrb[0].mxu0 %v1419
    %v2431 = vpop.f32.mrb[0].mxu0
    %v2432 = vadd.f32 %v2335, %v2431
    %v2433 = vpop.f32.mrb[0].mxu0
    %v2434 = vpop.f32.mrb[0].mxu0
    %v2435 = vadd.f32 %v2338, %v2434
    %v2436 = vpop.f32.mrb[0].mxu0
    %2437 = vmatprep.mubr.bf16.mxu0 %v1308
    %2438 = vmatmul.mubr.bf16.gmra.mrb[0].mxu0 %v1422
    %v2439 = vpop.f32.mrb[0].mxu0
    %v2440 = vadd.f32 %v2343, %v2439
    %v2441 = vpop.f32.mrb[0].mxu0
    %v2442 = vpop.f32.mrb[0].mxu0
    %v2443 = vadd.f32 %v2346, %v2442
    %v2444 = vpop.f32.mrb[0].mxu0
    %2445 = vmatprep.mubr.bf16.mxu0 %v1310
    %2446 = vmatmul.mubr.bf16.gmra.mrb[0].mxu0 %v1425
    %v2447 = vpop.f32.mrb[0].mxu0
    %v2448 = vadd.f32 %v2351, %v2447
    %v2449 = vpop.f32.mrb[0].mxu0
    %v2450 = vpop.f32.mrb[0].mxu0
    %v2451 = vadd.f32 %v2354, %v2450
    %v2452 = vpop.f32.mrb[0].mxu0
    %2453 = vmatprep.mubr.bf16.mxu0 %v1312
    %2454 = vmatmul.mubr.bf16.gmra.mrb[0].mxu0 %v1428
    %v2455 = vpop.f32.mrb[0].mxu0
    %v2456 = vadd.f32 %v2359, %v2455
    %v2457 = vpop.f32.mrb[0].mxu0
    %v2458 = vpop.f32.mrb[0].mxu0
    %v2459 = vadd.f32 %v2362, %v2458
    %v2460 = vpop.f32.mrb[0].mxu0
    %2461 = vdwg.mxu0
    %2462 = vmatprep.subr.bf16.mxu0 0
    %2463 = vmatpush1.bf16.msra.mxu0 %v2086
    %2464 = vmatprep.subr.bf16.mxu0 0
    %2465 = vmatpush1.bf16.msra.mxu0 %v2087
    %2466 = vmatprep.subr.bf16.mxu0 0
    %2467 = vmatpush1.bf16.msra.mxu0 %v2088
    %2468 = vmatprep.subr.bf16.mxu0 0
    %2469 = vmatpush1.bf16.msra.mxu0 %v2089
    %2470 = vmatprep.subr.bf16.mxu0 0
    %2471 = vmatpush1.bf16.msra.mxu0 %v2090
    %2472 = vmatprep.subr.bf16.mxu0 0
    %2473 = vmatpush1.bf16.msra.mxu0 %v2091
    %2474 = vmatprep.subr.bf16.mxu0 0
    %2475 = vmatpush1.bf16.msra.mxu0 %v2092
    %2476 = vmatprep.subr.bf16.mxu0 0
    %2477 = vmatpush1.bf16.msra.mxu0 %v2093
    %2478 = vmatprep.subr.bf16.mxu0 0
    %2479 = vmatpush1.bf16.msra.mxu0 %v2094
    %2480 = vmatprep.subr.bf16.mxu0 0
    %2481 = vmatpush1.bf16.msra.mxu0 %v2095
    %2482 = vmatprep.subr.bf16.mxu0 0
    %2483 = vmatpush1.bf16.msra.mxu0 %v2096
    %2484 = vmatprep.subr.bf16.mxu0 0
    %2485 = vmatpush1.bf16.msra.mxu0 %v2097
    %2486 = vmatprep.subr.bf16.mxu0 0
    %2487 = vmatpush1.bf16.msra.mxu0 %v2098
    %2488 = vmatprep.subr.bf16.mxu0 0
    %2489 = vmatpush1.bf16.msra.mxu0 %v2099
    %2490 = vmatprep.subr.bf16.mxu0 0
    %2491 = vmatpush1.bf16.msra.mxu0 %v2100
    %2492 = vmatprep.subr.bf16.mxu0 0
    %2493 = vmatpush1.bf16.msra.mxu0 %v2101
    %2494 = vmatprep.mubr.bf16.mxu0 %v792
    %2495 = vmatmul.mubr.bf16.gmra.mrb[0].mxu0 %v1299
    %v2496 = vpop.f32.mrb[0].mxu0
    %v2497 = vadd.f32 %v2400, %v2496
    %v2498 = vpop.f32.mrb[0].mxu0
    %v2499 = vpop.f32.mrb[0].mxu0
    %v2500 = vadd.f32 %v2403, %v2499
    %v2501 = vpop.f32.mrb[0].mxu0
    %2502 = vmatprep.mubr.bf16.mxu0 %v796
    %2503 = vmatmul.mubr.bf16.gmra.mrb[0].mxu0 %v1301
    %v2504 = vpop.f32.mrb[0].mxu0
    %v2505 = vadd.f32 %v2408, %v2504
    %v2506 = vpop.f32.mrb[0].mxu0
    %v2507 = vpop.f32.mrb[0].mxu0
    %v2508 = vadd.f32 %v2411, %v2507
    %v2509 = vpop.f32.mrb[0].mxu0
    %2510 = vmatprep.mubr.bf16.mxu0 %v800
    %2511 = vmatmul.mubr.bf16.gmra.mrb[0].mxu0 %v1303
    %v2512 = vpop.f32.mrb[0].mxu0
    %v2513 = vadd.f32 %v2416, %v2512
    %v2514 = vpop.f32.mrb[0].mxu0
    %v2515 = vpop.f32.mrb[0].mxu0
    %v2516 = vadd.f32 %v2419, %v2515
    %v2517 = vpop.f32.mrb[0].mxu0
    %2518 = vmatprep.mubr.bf16.mxu0 %v804
    %2519 = vmatmul.mubr.bf16.gmra.mrb[0].mxu0 %v1305
    %v2520 = vpop.f32.mrb[0].mxu0
    %v2521 = vadd.f32 %v2424, %v2520
    %v2522 = vpop.f32.mrb[0].mxu0
    %v2523 = vpop.f32.mrb[0].mxu0
    %v2524 = vadd.f32 %v2427, %v2523
    %v2525 = vpop.f32.mrb[0].mxu0
    %2526 = vmatprep.mubr.bf16.mxu0 %v807
    %2527 = vmatmul.mubr.bf16.gmra.mrb[0].mxu0 %v1307
    %v2528 = vpop.f32.mrb[0].mxu0
    %v2529 = vadd.f32 %v2432, %v2528
    %v2530 = vpop.f32.mrb[0].mxu0
    %v2531 = vpop.f32.mrb[0].mxu0
    %v2532 = vadd.f32 %v2435, %v2531
    %v2533 = vpop.f32.mrb[0].mxu0
    %2534 = vmatprep.mubr.bf16.mxu0 %v811
    %2535 = vmatmul.mubr.bf16.gmra.mrb[0].mxu0 %v1309
    %v2536 = vpop.f32.mrb[0].mxu0
    %v2537 = vadd.f32 %v2440, %v2536
    %v2538 = vpop.f32.mrb[0].mxu0
    %v2539 = vpop.f32.mrb[0].mxu0
    %v2540 = vadd.f32 %v2443, %v2539
    %v2541 = vpop.f32.mrb[0].mxu0
    %2542 = vmatprep.mubr.bf16.mxu0 %v815
    %2543 = vmatmul.mubr.bf16.gmra.mrb[0].mxu0 %v1311
    %v2544 = vpop.f32.mrb[0].mxu0
    %v2545 = vadd.f32 %v2448, %v2544
    %v2546 = vpop.f32.mrb[0].mxu0
    %v2547 = vpop.f32.mrb[0].mxu0
    %v2548 = vadd.f32 %v2451, %v2547
    %v2549 = vpop.f32.mrb[0].mxu0
    %2550 = vmatprep.mubr.bf16.mxu0 %v819
    %2551 = vmatmul.mubr.bf16.gmra.mrb[0].mxu0 %v1313
    %v2552 = vpop.f32.mrb[0].mxu0
    %v2553 = vadd.f32 %v2456, %v2552
    %v2554 = vpop.f32.mrb[0].mxu0
    %v2555 = vpop.f32.mrb[0].mxu0
    %v2556 = vadd.f32 %v2459, %v2555
    %v2557 = vpop.f32.mrb[0].mxu0
    %2558 = vdwg.mxu0
    %2559 = vmatprep.subr.bf16.mxu0 0
    %2560 = vmatpush1.bf16.msra.mxu0 %v2102
    %2561 = vmatprep.subr.bf16.mxu0 0
    %2562 = vmatpush1.bf16.msra.mxu0 %v2103
    %2563 = vmatprep.subr.bf16.mxu0 0
    %2564 = vmatpush1.bf16.msra.mxu0 %v2104
    %2565 = vmatprep.subr.bf16.mxu0 0
    %2566 = vmatpush1.bf16.msra.mxu0 %v2105
    %2567 = vmatprep.subr.bf16.mxu0 0
    %2568 = vmatpush1.bf16.msra.mxu0 %v2106
    %2569 = vmatprep.subr.bf16.mxu0 0
    %2570 = vmatpush1.bf16.msra.mxu0 %v2107
    %2571 = vmatprep.subr.bf16.mxu0 0
    %2572 = vmatpush1.bf16.msra.mxu0 %v2108
    %2573 = vmatprep.subr.bf16.mxu0 0
    %2574 = vmatpush1.bf16.msra.mxu0 %v2109
    %2575 = vmatprep.subr.bf16.mxu0 0
    %2576 = vmatpush1.bf16.msra.mxu0 %v2110
    %2577 = vmatprep.subr.bf16.mxu0 0
    %2578 = vmatpush1.bf16.msra.mxu0 %v2111
    %2579 = vmatprep.subr.bf16.mxu0 0
    %2580 = vmatpush1.bf16.msra.mxu0 %v2112
    %2581 = vmatprep.subr.bf16.mxu0 0
    %2582 = vmatpush1.bf16.msra.mxu0 %v2113
    %2583 = vmatprep.subr.bf16.mxu0 0
    %2584 = vmatpush1.bf16.msra.mxu0 %v2114
    %2585 = vmatprep.subr.bf16.mxu0 0
    %2586 = vmatpush1.bf16.msra.mxu0 %v2115
    %2587 = vmatprep.subr.bf16.mxu0 0
    %2588 = vmatpush1.bf16.msra.mxu0 %v2116
    %2589 = vmatprep.subr.bf16.mxu0 0
    %2590 = vmatpush1.bf16.msra.mxu0 %v2117
    %2591 = vmatprep.mubr.bf16.mxu0 %v1431
    %2592 = vmatmul.mubr.bf16.gmra.mrb[0].mxu0 %v796
    %v2593 = vpop.f32.mrb[0].mxu0
    %v2594 = vadd.f32 %v2497, %v2593
    %v2595 = vpop.f32.mrb[0].mxu0
    %v2596 = vpop.f32.mrb[0].mxu0
    %v2597 = vadd.f32 %v2500, %v2596
    %v2598 = vpop.f32.mrb[0].mxu0
    %2599 = vmatprep.mubr.bf16.mxu0 %v1434
    %2600 = vmatmul.mubr.bf16.gmra.mrb[0].mxu0 %v800
    %v2601 = vpop.f32.mrb[0].mxu0
    %v2602 = vadd.f32 %v2505, %v2601
    %v2603 = vpop.f32.mrb[0].mxu0
    %v2604 = vpop.f32.mrb[0].mxu0
    %v2605 = vadd.f32 %v2508, %v2604
    %v2606 = vpop.f32.mrb[0].mxu0
    %2607 = vmatprep.mubr.bf16.mxu0 %v1437
    %2608 = vmatmul.mubr.bf16.gmra.mrb[0].mxu0 %v804
    %v2609 = vpop.f32.mrb[0].mxu0
    %v2610 = vadd.f32 %v2513, %v2609
    %v2611 = vpop.f32.mrb[0].mxu0
    %v2612 = vpop.f32.mrb[0].mxu0
    %v2613 = vadd.f32 %v2516, %v2612
    %v2614 = vpop.f32.mrb[0].mxu0
    %2615 = vmatprep.mubr.bf16.mxu0 %v1440
    %2616 = vmatmul.mubr.bf16.gmra.mrb[0].mxu0 %v823
    %v2617 = vpop.f32.mrb[0].mxu0
    %v2618 = vadd.f32 %v2521, %v2617
    %v2619 = vpop.f32.mrb[0].mxu0
    %v2620 = vpop.f32.mrb[0].mxu0
    %v2621 = vadd.f32 %v2524, %v2620
    %v2622 = vpop.f32.mrb[0].mxu0
    %2623 = vmatprep.mubr.bf16.mxu0 %v1443
    %2624 = vmatmul.mubr.bf16.gmra.mrb[0].mxu0 %v811
    %v2625 = vpop.f32.mrb[0].mxu0
    %v2626 = vadd.f32 %v2529, %v2625
    %v2627 = vpop.f32.mrb[0].mxu0
    %v2628 = vpop.f32.mrb[0].mxu0
    %v2629 = vadd.f32 %v2532, %v2628
    %v2630 = vpop.f32.mrb[0].mxu0
    %2631 = vmatprep.mubr.bf16.mxu0 %v1446
    %2632 = vmatmul.mubr.bf16.gmra.mrb[0].mxu0 %v815
    %v2633 = vpop.f32.mrb[0].mxu0
    %v2634 = vadd.f32 %v2537, %v2633
    %v2635 = vpop.f32.mrb[0].mxu0
    %v2636 = vpop.f32.mrb[0].mxu0
    %v2637 = vadd.f32 %v2540, %v2636
    %v2638 = vpop.f32.mrb[0].mxu0
    %2639 = vmatprep.mubr.bf16.mxu0 %v1449
    %2640 = vmatmul.mubr.bf16.gmra.mrb[0].mxu0 %v819
    %v2641 = vpop.f32.mrb[0].mxu0
    %v2642 = vadd.f32 %v2545, %v2641
    %v2643 = vpop.f32.mrb[0].mxu0
    %v2644 = vpop.f32.mrb[0].mxu0
    %v2645 = vadd.f32 %v2548, %v2644
    %v2646 = vpop.f32.mrb[0].mxu0
    %2647 = vmatprep.mubr.bf16.mxu0 %v1452
    %2648 = vmatmul.mubr.bf16.gmra.mrb[0].mxu0 %v827
    %v2649 = vpop.f32.mrb[0].mxu0
    %v2650 = vadd.f32 %v2553, %v2649
    %v2651 = vpop.f32.mrb[0].mxu0
    %v2652 = vpop.f32.mrb[0].mxu0
    %v2653 = vadd.f32 %v2556, %v2652
    %v2654 = vpop.f32.mrb[0].mxu0
    %2655 = vdwg.mxu0
    %2656 = vmatprep.subr.bf16.mxu0 0
    %2657 = vmatpush1.bf16.msra.mxu0 %v2118
    %2658 = vmatprep.subr.bf16.mxu0 0
    %2659 = vmatpush1.bf16.msra.mxu0 %v2119
    %2660 = vmatprep.subr.bf16.mxu0 0
    %2661 = vmatpush1.bf16.msra.mxu0 %v2120
    %2662 = vmatprep.subr.bf16.mxu0 0
    %2663 = vmatpush1.bf16.msra.mxu0 %v2121
    %2664 = vmatprep.subr.bf16.mxu0 0
    %2665 = vmatpush1.bf16.msra.mxu0 %v2122
    %2666 = vmatprep.subr.bf16.mxu0 0
    %2667 = vmatpush1.bf16.msra.mxu0 %v2123
    %2668 = vmatprep.subr.bf16.mxu0 0
    %2669 = vmatpush1.bf16.msra.mxu0 %v2124
    %2670 = vmatprep.subr.bf16.mxu0 0
    %2671 = vmatpush1.bf16.msra.mxu0 %v2125
    %2672 = vmatprep.subr.bf16.mxu0 0
    %2673 = vmatpush1.bf16.msra.mxu0 %v2126
    %2674 = vmatprep.subr.bf16.mxu0 0
    %2675 = vmatpush1.bf16.msra.mxu0 %v2127
    %2676 = vmatprep.subr.bf16.mxu0 0
    %2677 = vmatpush1.bf16.msra.mxu0 %v2128
    %2678 = vmatprep.subr.bf16.mxu0 0
    %2679 = vmatpush1.bf16.msra.mxu0 %v2129
    %2680 = vmatprep.subr.bf16.mxu0 0
    %2681 = vmatpush1.bf16.msra.mxu0 %v2130
    %2682 = vmatprep.subr.bf16.mxu0 0
    %2683 = vmatpush1.bf16.msra.mxu0 %v2131
    %2684 = vmatprep.subr.bf16.mxu0 0
    %2685 = vmatpush1.bf16.msra.mxu0 %v2132
    %2686 = vmatprep.subr.bf16.mxu0 0
    %2687 = vmatpush1.bf16.msra.mxu0 %v2133
    %2688 = vmatprep.mubr.bf16.mxu0 %v1375
    %2689 = vmatmul.mubr.bf16.gmra.mrb[0].mxu0 %v1374
    %v2690 = vpop.f32.mrb[0].mxu0
    %v2691 = vadd.f32 %v2594, %v2690
    %v2692 = vpop.f32.mrb[0].mxu0
    %v2693 = vpop.f32.mrb[0].mxu0
    %v2694 = vadd.f32 %v2597, %v2693
    %v2695 = vpop.f32.mrb[0].mxu0
    %2696 = vmatprep.mubr.bf16.mxu0 %v1377
    %2697 = vmatmul.mubr.bf16.gmra.mrb[0].mxu0 %v1376
    %v2698 = vpop.f32.mrb[0].mxu0
    %v2699 = vadd.f32 %v2602, %v2698
    %v2700 = vpop.f32.mrb[0].mxu0
    %v2701 = vpop.f32.mrb[0].mxu0
    %v2702 = vadd.f32 %v2605, %v2701
    %v2703 = vpop.f32.mrb[0].mxu0
    %2704 = vmatprep.mubr.bf16.mxu0 %v1379
    %2705 = vmatmul.mubr.bf16.gmra.mrb[0].mxu0 %v1378
    %v2706 = vpop.f32.mrb[0].mxu0
    %v2707 = vadd.f32 %v2610, %v2706
    %v2708 = vpop.f32.mrb[0].mxu0
    %v2709 = vpop.f32.mrb[0].mxu0
    %v2710 = vadd.f32 %v2613, %v2709
    %v2711 = vpop.f32.mrb[0].mxu0
    %2712 = vmatprep.mubr.bf16.mxu0 %v1381
    %2713 = vmatmul.mubr.bf16.gmra.mrb[0].mxu0 %v1380
    %v2714 = vpop.f32.mrb[0].mxu0
    %v2715 = vadd.f32 %v2618, %v2714
    %v2716 = vpop.f32.mrb[0].mxu0
    %v2717 = vpop.f32.mrb[0].mxu0
    %v2718 = vadd.f32 %v2621, %v2717
    %v2719 = vpop.f32.mrb[0].mxu0
    %2720 = vmatprep.mubr.bf16.mxu0 %v1383
    %2721 = vmatmul.mubr.bf16.gmra.mrb[0].mxu0 %v1382
    %v2722 = vpop.f32.mrb[0].mxu0
    %v2723 = vadd.f32 %v2626, %v2722
    %v2724 = vpop.f32.mrb[0].mxu0
    %v2725 = vpop.f32.mrb[0].mxu0
    %v2726 = vadd.f32 %v2629, %v2725
    %v2727 = vpop.f32.mrb[0].mxu0
    %2728 = vmatprep.mubr.bf16.mxu0 %v1385
    %2729 = vmatmul.mubr.bf16.gmra.mrb[0].mxu0 %v1384
    %v2730 = vpop.f32.mrb[0].mxu0
    %v2731 = vadd.f32 %v2634, %v2730
    %v2732 = vpop.f32.mrb[0].mxu0
    %v2733 = vpop.f32.mrb[0].mxu0
    %v2734 = vadd.f32 %v2637, %v2733
    %v2735 = vpop.f32.mrb[0].mxu0
    %2736 = vmatprep.mubr.bf16.mxu0 %v1387
    %2737 = vmatmul.mubr.bf16.gmra.mrb[0].mxu0 %v1386
    %v2738 = vpop.f32.mrb[0].mxu0
    %v2739 = vadd.f32 %v2642, %v2738
    %v2740 = vpop.f32.mrb[0].mxu0
    %v2741 = vpop.f32.mrb[0].mxu0
    %v2742 = vadd.f32 %v2645, %v2741
    %v2743 = vpop.f32.mrb[0].mxu0
    %2744 = vmatprep.mubr.bf16.mxu0 %v1389
    %2745 = vmatmul.mubr.bf16.gmra.mrb[0].mxu0 %v1388
    %v2746 = vpop.f32.mrb[0].mxu0
    %v2747 = vadd.f32 %v2650, %v2746
    %v2748 = vpop.f32.mrb[0].mxu0
    %v2749 = vpop.f32.mrb[0].mxu0
    %v2750 = vadd.f32 %v2653, %v2749
    %v2751 = vpop.f32.mrb[0].mxu0
    %2752 = vdwg.mxu0
    %2753 = vmatprep.subr.bf16.mxu0 0
    %2754 = vmatpush1.bf16.msra.mxu0 %v2134
    %2755 = vmatprep.subr.bf16.mxu0 0
    %2756 = vmatpush1.bf16.msra.mxu0 %v2135
    %2757 = vmatprep.subr.bf16.mxu0 0
    %2758 = vmatpush1.bf16.msra.mxu0 %v2136
    %2759 = vmatprep.subr.bf16.mxu0 0
    %2760 = vmatpush1.bf16.msra.mxu0 %v2137
    %2761 = vmatprep.subr.bf16.mxu0 0
    %2762 = vmatpush1.bf16.msra.mxu0 %v2138
    %2763 = vmatprep.subr.bf16.mxu0 0
    %2764 = vmatpush1.bf16.msra.mxu0 %v2139
    %2765 = vmatprep.subr.bf16.mxu0 0
    %2766 = vmatpush1.bf16.msra.mxu0 %v2140
    %2767 = vmatprep.subr.bf16.mxu0 0
    %2768 = vmatpush1.bf16.msra.mxu0 %v2141
    %2769 = vmatprep.subr.bf16.mxu0 0
    %2770 = vmatpush1.bf16.msra.mxu0 %v2142
    %2771 = vmatprep.subr.bf16.mxu0 0
    %2772 = vmatpush1.bf16.msra.mxu0 %v2143
    %2773 = vmatprep.subr.bf16.mxu0 0
    %2774 = vmatpush1.bf16.msra.mxu0 %v2144
    %2775 = vmatprep.subr.bf16.mxu0 0
    %2776 = vmatpush1.bf16.msra.mxu0 %v2145
    %2777 = vmatprep.subr.bf16.mxu0 0
    %2778 = vmatpush1.bf16.msra.mxu0 %v2146
    %2779 = vmatprep.subr.bf16.mxu0 0
    %2780 = vmatpush1.bf16.msra.mxu0 %v2147
    %2781 = vmatprep.subr.bf16.mxu0 0
    %2782 = vmatpush1.bf16.msra.mxu0 %v2148
    %2783 = vmatprep.subr.bf16.mxu0 0
    %2784 = vmatpush1.bf16.msra.mxu0 %v2149
    %2785 = vmatprep.mubr.bf16.mxu0 %v1220
    %2786 = vmatmul.mubr.bf16.gmra.mrb[0].mxu0 %v1216
    %v2787 = vpop.f32.mrb[0].mxu0
    %v2788 = vadd.f32 %v2691, %v2787
    %v2789 = vpop.f32.mrb[0].mxu0
    %v2790 = vpop.f32.mrb[0].mxu0
    %v2791 = vadd.f32 %v2694, %v2790
    %v2792 = vpop.f32.mrb[0].mxu0
    %2793 = vmatprep.mubr.bf16.mxu0 %v1224
    %2794 = vmatmul.mubr.bf16.gmra.mrb[0].mxu0 %v1220
    %v2795 = vpop.f32.mrb[0].mxu0
    %v2796 = vadd.f32 %v2699, %v2795
    %v2797 = vpop.f32.mrb[0].mxu0
    %v2798 = vpop.f32.mrb[0].mxu0
    %v2799 = vadd.f32 %v2702, %v2798
    %v2800 = vpop.f32.mrb[0].mxu0
    %2801 = vmatprep.mubr.bf16.mxu0 %v1228
    %2802 = vmatmul.mubr.bf16.gmra.mrb[0].mxu0 %v1224
    %v2803 = vpop.f32.mrb[0].mxu0
    %v2804 = vadd.f32 %v2707, %v2803
    %v2805 = vpop.f32.mrb[0].mxu0
    %v2806 = vpop.f32.mrb[0].mxu0
    %v2807 = vadd.f32 %v2710, %v2806
    %v2808 = vpop.f32.mrb[0].mxu0
    %2809 = vmatprep.mubr.bf16.mxu0 %v1247
    %2810 = vmatmul.mubr.bf16.gmra.mrb[0].mxu0 %v1228
    %v2811 = vpop.f32.mrb[0].mxu0
    %v2812 = vadd.f32 %v2715, %v2811
    %v2813 = vpop.f32.mrb[0].mxu0
    %v2814 = vpop.f32.mrb[0].mxu0
    %v2815 = vadd.f32 %v2718, %v2814
    %v2816 = vpop.f32.mrb[0].mxu0
    %2817 = vmatprep.mubr.bf16.mxu0 %v1235
    %2818 = vmatmul.mubr.bf16.gmra.mrb[0].mxu0 %v1231
    %v2819 = vpop.f32.mrb[0].mxu0
    %v2820 = vadd.f32 %v2723, %v2819
    %v2821 = vpop.f32.mrb[0].mxu0
    %v2822 = vpop.f32.mrb[0].mxu0
    %v2823 = vadd.f32 %v2726, %v2822
    %v2824 = vpop.f32.mrb[0].mxu0
    %2825 = vmatprep.mubr.bf16.mxu0 %v1239
    %2826 = vmatmul.mubr.bf16.gmra.mrb[0].mxu0 %v1235
    %v2827 = vpop.f32.mrb[0].mxu0
    %v2828 = vadd.f32 %v2731, %v2827
    %v2829 = vpop.f32.mrb[0].mxu0
    %v2830 = vpop.f32.mrb[0].mxu0
    %v2831 = vadd.f32 %v2734, %v2830
    %v2832 = vpop.f32.mrb[0].mxu0
    %2833 = vmatprep.mubr.bf16.mxu0 %v1243
    %2834 = vmatmul.mubr.bf16.gmra.mrb[0].mxu0 %v1239
    %v2835 = vpop.f32.mrb[0].mxu0
    %v2836 = vadd.f32 %v2739, %v2835
    %v2837 = vpop.f32.mrb[0].mxu0
    %v2838 = vpop.f32.mrb[0].mxu0
    %v2839 = vadd.f32 %v2742, %v2838
    %v2840 = vpop.f32.mrb[0].mxu0
    %2841 = vmatprep.mubr.bf16.mxu0 %v1251
    %2842 = vmatmul.mubr.bf16.gmra.mrb[0].mxu0 %v1243
    %v2843 = vpop.f32.mrb[0].mxu0
    %v2844 = vadd.f32 %v2747, %v2843
    %v2845 = vpop.f32.mrb[0].mxu0
    %v2846 = vpop.f32.mrb[0].mxu0
    %v2847 = vadd.f32 %v2750, %v2846
    %v2848 = vpop.f32.mrb[0].mxu0
    %2849 = vdwg.mxu0
    %2850 = vmatprep.subr.bf16.mxu0 0
    %2851 = vmatpush1.bf16.msra.mxu0 %v2150
    %2852 = vmatprep.subr.bf16.mxu0 0
    %2853 = vmatpush1.bf16.msra.mxu0 %v2151
    %2854 = vmatprep.subr.bf16.mxu0 0
    %2855 = vmatpush1.bf16.msra.mxu0 %v2152
    %2856 = vmatprep.subr.bf16.mxu0 0
    %2857 = vmatpush1.bf16.msra.mxu0 %v2153
    %2858 = vmatprep.subr.bf16.mxu0 0
    %2859 = vmatpush1.bf16.msra.mxu0 0
    %2860 = vmatprep.subr.bf16.mxu0 0
    %2861 = vmatpush1.bf16.msra.mxu0 0
    %2862 = vmatprep.subr.bf16.mxu0 0
    %2863 = vmatpush1.bf16.msra.mxu0 0
    %2864 = vmatprep.subr.bf16.mxu0 0
    %2865 = vmatpush1.bf16.msra.mxu0 0
    %2866 = vmatprep.subr.bf16.mxu0 0
    %2867 = vmatpush1.bf16.msra.mxu0 0
    %2868 = vmatprep.subr.bf16.mxu0 0
    %2869 = vmatpush1.bf16.msra.mxu0 0
    %2870 = vmatprep.subr.bf16.mxu0 0
    %2871 = vmatpush1.bf16.msra.mxu0 0
    %2872 = vmatprep.subr.bf16.mxu0 0
    %2873 = vmatpush1.bf16.msra.mxu0 0
    %2874 = vmatprep.subr.bf16.mxu0 0
    %2875 = vmatpush1.bf16.msra.mxu0 0
    %2876 = vmatprep.subr.bf16.mxu0 0
    %2877 = vmatpush1.bf16.msra.mxu0 0
    %2878 = vmatprep.subr.bf16.mxu0 0
    %2879 = vmatpush1.bf16.msra.mxu0 0
    %2880 = vmatprep.subr.bf16.mxu0 0
    %2881 = vmatpush1.bf16.msra.mxu0 0
    %2882 = vmatprep.mubr.bf16.mxu0 0
    %2883 = vmatmul.mubr.bf16.gmra.mrb[0].mxu0 %v2254
    %v2884 = vpop.f32.mrb[0].mxu0
    %v2885 = vadd.f32 %v2788, %v2884
    %v2886 = vpop.f32.mrb[0].mxu0
    %v2887 = vpop.f32.mrb[0].mxu0
    %v2888 = vadd.f32 %v2791, %v2887
    %v2889 = vpop.f32.mrb[0].mxu0
    %2890 = vmatprep.mubr.bf16.mxu0 0
    %2891 = vmatmul.mubr.bf16.gmra.mrb[0].mxu0 %v2256
    %v2892 = vpop.f32.mrb[0].mxu0
    %v2893 = vadd.f32 %v2796, %v2892
    %v2894 = vpop.f32.mrb[0].mxu0
    %v2895 = vpop.f32.mrb[0].mxu0
    %v2896 = vadd.f32 %v2799, %v2895
    %v2897 = vpop.f32.mrb[0].mxu0
    %2898 = vmatprep.mubr.bf16.mxu0 0
    %2899 = vmatmul.mubr.bf16.gmra.mrb[0].mxu0 %v2258
    %v2900 = vpop.f32.mrb[0].mxu0
    %v2901 = vadd.f32 %v2804, %v2900
    %v2902 = vpop.f32.mrb[0].mxu0
    %v2903 = vpop.f32.mrb[0].mxu0
    %v2904 = vadd.f32 %v2807, %v2903
    %v2905 = vpop.f32.mrb[0].mxu0
    %2906 = vmatprep.mubr.bf16.mxu0 0
    %2907 = vmatmul.mubr.bf16.gmra.mrb[0].mxu0 %v2260
    %v2908 = vpop.f32.mrb[0].mxu0
    %v2909 = vadd.f32 %v2812, %v2908
    %v2910 = vpop.f32.mrb[0].mxu0
    %v2911 = vpop.f32.mrb[0].mxu0
    %v2912 = vadd.f32 %v2815, %v2911
    %v2913 = vpop.f32.mrb[0].mxu0
    %2914 = vmatprep.mubr.bf16.mxu0 0
    %2915 = vmatmul.mubr.bf16.gmra.mrb[0].mxu0 %v2262
    %v2916 = vpop.f32.mrb[0].mxu0
    %v2917 = vadd.f32 %v2820, %v2916
    %v2918 = vpop.f32.mrb[0].mxu0
    %v2919 = vpop.f32.mrb[0].mxu0
    %v2920 = vadd.f32 %v2823, %v2919
    %v2921 = vpop.f32.mrb[0].mxu0
    %2922 = vmatprep.mubr.bf16.mxu0 0
    %2923 = vmatmul.mubr.bf16.gmra.mrb[0].mxu0 %v2264
    %v2924 = vpop.f32.mrb[0].mxu0
    %v2925 = vadd.f32 %v2828, %v2924
    %v2926 = vpop.f32.mrb[0].mxu0
    %v2927 = vpop.f32.mrb[0].mxu0
    %v2928 = vadd.f32 %v2831, %v2927
    %v2929 = vpop.f32.mrb[0].mxu0
    %2930 = vmatprep.mubr.bf16.mxu0 0
    %2931 = vmatmul.mubr.bf16.gmra.mrb[0].mxu0 %v2266
    %v2932 = vpop.f32.mrb[0].mxu0
    %v2933 = vadd.f32 %v2836, %v2932
    %v2934 = vpop.f32.mrb[0].mxu0
    %v2935 = vpop.f32.mrb[0].mxu0
    %v2936 = vadd.f32 %v2839, %v2935
    %v2937 = vpop.f32.mrb[0].mxu0
    %2938 = vmatprep.mubr.bf16.mxu0 0
    %2939 = vmatmul.mubr.bf16.gmra.mrb[0].mxu0 %v2260
    %v2940 = vpop.f32.mrb[0].mxu0
    %v2941 = vadd.f32 %v2844, %v2940
    %v2942 = vpop.f32.mrb[0].mxu0
    %v2943 = vpop.f32.mrb[0].mxu0
    %v2944 = vadd.f32 %v2847, %v2943
    %v2945 = vpop.f32.mrb[0].mxu0
    %2946 = vdwg.mxu0
    %s2947 = sld [smem:[#allocation5]]
    %vm2948 = vcmp.ge.f32.partialorder %v2885, 0.0
    %vm2949 = vcmp.ge.f32.partialorder %v2888, 0.0
    %vm2950 = vcmp.ge.f32.partialorder %v2893, 0.0
    %vm2951 = vcmp.ge.f32.partialorder %v2896, 0.0
    %vm2952 = vcmp.ge.f32.partialorder %v2901, 0.0
    %vm2953 = vcmp.ge.f32.partialorder %v2904, 0.0
    %vm2954 = vcmp.ge.f32.partialorder %v2909, 0.0
    %vm2955 = vcmp.ge.f32.partialorder %v2912, 0.0
    %vm2956 = vcmp.ge.f32.partialorder %v2917, 0.0
    %vm2957 = vcmp.ge.f32.partialorder %v2920, 0.0
    %vm2958 = vcmp.ge.f32.partialorder %v2925, 0.0
    %vm2959 = vcmp.ge.f32.partialorder %v2928, 0.0
    %vm2960 = vcmp.ge.f32.partialorder %v2933, 0.0
    %vm2961 = vcmp.ge.f32.partialorder %v2936, 0.0
    %vm2962 = vcmp.ge.f32.partialorder %v2941, 0.0
    %vm2963 = vcmp.ge.f32.partialorder %v2944, 0.0
    %v2964 = vstv %s2947
    %v2965 = vmul.f32 %v2964, %v2885
    %v2966 = vmul.f32 %v2964, %v2888
    %v2967 = vmul.f32 %v2964, %v2893
    %v2968 = vmul.f32 %v2964, %v2896
    %v2969 = vmul.f32 %v2964, %v2901
    %v2970 = vmul.f32 %v2964, %v2904
    %v2971 = vmul.f32 %v2964, %v2909
    %v2972 = vmul.f32 %v2964, %v2912
    %v2973 = vmul.f32 %v2964, %v2917
    %v2974 = vmul.f32 %v2964, %v2920
    %v2975 = vmul.f32 %v2964, %v2925
    %v2976 = vmul.f32 %v2964, %v2928
    %v2977 = vmul.f32 %v2964, %v2933
    %v2978 = vmul.f32 %v2964, %v2936
    %v2979 = vmul.f32 %v2964, %v2941
    %v2980 = vmul.f32 %v2964, %v2944
    %v2981 = vsel %vm2948, %v2885, %v2965
    %v2982 = vsel %vm2949, %v2888, %v2966
    %v2983 = vsel %vm2950, %v2893, %v2967
    %v2984 = vsel %vm2951, %v2896, %v2968
    %v2985 = vsel %vm2952, %v2901, %v2969
    %v2986 = vsel %vm2953, %v2904, %v2970
    %v2987 = vsel %vm2954, %v2909, %v2971
    %v2988 = vsel %vm2955, %v2912, %v2972
    %v2989 = vsel %vm2956, %v2917, %v2973
    %v2990 = vsel %vm2957, %v2920, %v2974
    %v2991 = vsel %vm2958, %v2925, %v2975
    %v2992 = vsel %vm2959, %v2928, %v2976
    %v2993 = vsel %vm2960, %v2933, %v2977
    %v2994 = vsel %vm2961, %v2936, %v2978
    %v2995 = vsel %vm2962, %v2941, %v2979
    %v2996 = vsel %vm2963, %v2944, %v2980
    %s2997 = sld [smem:[#allocation5 + $0x1]]
    %v2998 = vstv %s2997
    %v2999 = vmul.f32 %v2998, %v2885
    %v3000 = vmul.f32 %v2998, %v2888
    %v3001 = vmul.f32 %v2998, %v2893
    %v3002 = vmul.f32 %v2998, %v2896
    %v3003 = vmul.f32 %v2998, %v2901
    %v3004 = vmul.f32 %v2998, %v2904
    %v3005 = vmul.f32 %v2998, %v2909
    %v3006 = vmul.f32 %v2998, %v2912
    %v3007 = vmul.f32 %v2998, %v2917
    %v3008 = vmul.f32 %v2998, %v2920
    %v3009 = vmul.f32 %v2998, %v2925
    %v3010 = vmul.f32 %v2998, %v2928
    %v3011 = vmul.f32 %v2998, %v2933
    %v3012 = vmul.f32 %v2998, %v2936
    %v3013 = vmul.f32 %v2998, %v2941
    %v3014 = vmul.f32 %v2998, %v2944
    %v3015 = vsel %vm2948, %v2885, %v2999
    %v3016 = vsel %vm2949, %v2888, %v3000
    %v3017 = vsel %vm2950, %v2893, %v3001
    %v3018 = vsel %vm2951, %v2896, %v3002
    %v3019 = vsel %vm2952, %v2901, %v3003
    %v3020 = vsel %vm2953, %v2904, %v3004
    %v3021 = vsel %vm2954, %v2909, %v3005
    %v3022 = vsel %vm2955, %v2912, %v3006
    %v3023 = vsel %vm2956, %v2917, %v3007
    %v3024 = vsel %vm2957, %v2920, %v3008
    %v3025 = vsel %vm2958, %v2925, %v3009
    %v3026 = vsel %vm2959, %v2928, %v3010
    %v3027 = vsel %vm2960, %v2933, %v3011
    %v3028 = vsel %vm2961, %v2936, %v3012
    %v3029 = vsel %vm2962, %v2941, %v3013
    %v3030 = vsel %vm2963, %v2944, %v3014
    %3047 = vrot.lane.b32.xlu0 %v3015, 64
    %v3048 = vpop.permute.xlu0 %3047
    %3049 = vrot.lane.b32.xlu0 %v3016, 64
    %v3050 = vpop.permute.xlu0 %3049
    %3051 = vrot.lane.b32.xlu0 %v3017, 64
    %v3052 = vpop.permute.xlu0 %3051
    %3053 = vrot.lane.b32.xlu0 %v3018, 64
    %v3054 = vpop.permute.xlu0 %3053
    %3055 = vrot.lane.b32.xlu0 %v3019, 64
    %v3056 = vpop.permute.xlu0 %3055
    %3057 = vrot.lane.b32.xlu0 %v3020, 64
    %v3058 = vpop.permute.xlu0 %3057
    %3059 = vrot.lane.b32.xlu0 %v3021, 64
    %v3060 = vpop.permute.xlu0 %3059
    %3061 = vrot.lane.b32.xlu0 %v3022, 64
    %v3062 = vpop.permute.xlu0 %3061
    %3063 = vrot.lane.b32.xlu0 %v3023, 64
    %v3064 = vpop.permute.xlu0 %3063
    %3065 = vrot.lane.b32.xlu0 %v3024, 64
    %v3066 = vpop.permute.xlu0 %3065
    %3067 = vrot.lane.b32.xlu0 %v3025, 64
    %v3068 = vpop.permute.xlu0 %3067
    %3069 = vrot.lane.b32.xlu0 %v3026, 64
    %v3070 = vpop.permute.xlu0 %3069
    %3071 = vrot.lane.b32.xlu0 %v3027, 64
    %v3072 = vpop.permute.xlu0 %3071
    %3073 = vrot.lane.b32.xlu0 %v3028, 64
    %v3074 = vpop.permute.xlu0 %3073
    %3075 = vrot.lane.b32.xlu0 %v3029, 64
    %v3076 = vpop.permute.xlu0 %3075
    %3077 = vrot.lane.b32.xlu0 %v3030, 64
    %v3078 = vpop.permute.xlu0 %3077
    %v3095 = vadd.f32 %v2981, %v3048
    %v3096 = vadd.f32 %v2982, %v3050
    %v3097 = vadd.f32 %v2983, %v3052
    %v3098 = vadd.f32 %v2984, %v3054
    %v3099 = vadd.f32 %v2985, %v3056
    %v3100 = vadd.f32 %v2986, %v3058
    %v3101 = vadd.f32 %v2987, %v3060
    %v3102 = vadd.f32 %v2988, %v3062
    %v3103 = vadd.f32 %v2989, %v3064
    %v3104 = vadd.f32 %v2990, %v3066
    %v3105 = vadd.f32 %v2991, %v3068
    %v3106 = vadd.f32 %v2992, %v3070
    %v3107 = vadd.f32 %v2993, %v3072
    %v3108 = vadd.f32 %v2994, %v3074
    %v3109 = vadd.f32 %v2995, %v3076
    %v3110 = vadd.f32 %v2996, %v3078
    %v3111 = vsel %vm248, %v3095, 0.0
    %v3112 = vsel %vm248, %v3096, 0.0
    %v3113 = vadd.f32 %v3111, %v3112
    %v3114 = vsel %vm248, %v3097, 0.0
    %v3115 = vadd.f32 %v3113, %v3114
    %v3116 = vsel %vm248, %v3098, 0.0
    %v3117 = vadd.f32 %v3115, %v3116
    %v3118 = vsel %vm248, %v3099, 0.0
    %v3119 = vadd.f32 %v3117, %v3118
    %v3120 = vsel %vm248, %v3100, 0.0
    %v3121 = vadd.f32 %v3119, %v3120
    %v3122 = vsel %vm248, %v3101, 0.0
    %v3123 = vadd.f32 %v3121, %v3122
    %v3124 = vsel %vm248, %v3102, 0.0
    %v3125 = vadd.f32 %v3123, %v3124
    %v3126 = vrot.slane %v3125, 4
    %v3127 = vadd.f32 %v3125, %v3126
    %v3128 = vrot.slane %v3127, 2
    %v3129 = vadd.f32 %v3127, %v3128
    %v3130 = vrot.slane %v3129, 1
    %v3131 = vadd.f32 %v3129, %v3130
    %v3132 = vsel %vm248, %v3103, 0.0
    %v3133 = vsel %vm248, %v3104, 0.0
    %v3134 = vadd.f32 %v3132, %v3133
    %v3135 = vsel %vm248, %v3105, 0.0
    %v3136 = vadd.f32 %v3134, %v3135
    %v3137 = vsel %vm248, %v3106, 0.0
    %v3138 = vadd.f32 %v3136, %v3137
    %v3139 = vsel %vm248, %v3107, 0.0
    %v3140 = vadd.f32 %v3138, %v3139
    %v3141 = vsel %vm248, %v3108, 0.0
    %v3142 = vadd.f32 %v3140, %v3141
    %v3143 = vsel %vm248, %v3109, 0.0
    %v3144 = vadd.f32 %v3142, %v3143
    %v3145 = vsel %vm248, %v3110, 0.0
    %v3146 = vadd.f32 %v3144, %v3145
    %v3147 = vrot.slane %v3146, 4
    %v3148 = vadd.f32 %v3146, %v3147
    %v3149 = vrot.slane %v3148, 2
    %v3150 = vadd.f32 %v3148, %v3149
    %v3151 = vrot.slane %v3150, 1
    %v3152 = vadd.f32 %v3150, %v3151
    %v3153 = vrcp.pop 64.0
    %v3154 = vmul.f32 %v3131, %v3153
    %v3155 = vmul.f32 %v3152, %v3153
    %v3156 = vpack.c.bf16 %v3154, %v3154
    %v3157 = vpack.c.bf16 %v3155, %v3155
    %v3158 = vld [vmem:[%s2] sm:$0xf]
    %v3159 = vld [vmem:[%s2 + $0x4] sm:$0xf]
    %v3160 = vld [vmem:[%s2 + $0x8] sm:$0xf]
    %v3161 = vld [vmem:[%s2 + $0xc] sm:$0xf]
    %v3162 = vld [vmem:[%s2 + $0x10] sm:$0xf]
    %v3163 = vld [vmem:[%s2 + $0x14] sm:$0xf]
    %v3164 = vld [vmem:[%s2 + $0x18] sm:$0xf]
    %v3165 = vld [vmem:[%s2 + $0x1c] sm:$0xf]
    %v3168 = vunpack.c.l.b16 %v3156
    %v3169 = vunpack.c.l.b16 %v3157
    %vm3170 = vcmask 1041409
    %v3171 = vsel %vm3170, %v3169, %v3168
    %v3172 = vpack.c.b16 %v3171, %v3171
    %v3181 = vunpack.c.l.b16 %v3158
    %v3182 = vunpack.c.l.b16 %v3159
    %v3183 = vunpack.c.l.b16 %v3160
    %v3184 = vunpack.c.l.b16 %v3161
    %v3185 = vunpack.c.l.b16 %v3162
    %v3186 = vunpack.c.l.b16 %v3163
    %v3187 = vunpack.c.l.b16 %v3164
    %v3188 = vunpack.c.l.b16 %v3165
    %v3189 = vpack.c.b16 %v3182, %v3181
    %v3190 = vpack.c.b16 %v3184, %v3183
    %v3191 = vpack.c.b16 %v3186, %v3185
    %v3192 = vpack.c.b16 %v3188, %v3187
    %v3198 = vsel %vm248, %v3172, 0
    %3200 = vmatprep.subr.bf16.mxu0 0
    %3201 = vmatpush1.bf16.msra.mxu0 %v3189
    %3202 = vmatprep.subr.bf16.mxu0 0
    %3203 = vmatpush1.bf16.msra.mxu0 %v3190
    %3204 = vmatprep.subr.bf16.mxu0 0
    %3205 = vmatpush1.bf16.msra.mxu0 %v3191
    %3206 = vmatprep.subr.bf16.mxu0 0
    %3207 = vmatpush1.bf16.msra.mxu0 %v3192
    %3208 = vmatprep.subr.bf16.mxu0 0
    %3209 = vmatpush1.bf16.msra.mxu0 0
    %3210 = vmatprep.subr.bf16.mxu0 0
    %3211 = vmatpush1.bf16.msra.mxu0 0
    %3212 = vmatprep.subr.bf16.mxu0 0
    %3213 = vmatpush1.bf16.msra.mxu0 0
    %3214 = vmatprep.subr.bf16.mxu0 0
    %3215 = vmatpush1.bf16.msra.mxu0 0
    %3216 = vmatprep.subr.bf16.mxu0 0
    %3217 = vmatpush1.bf16.msra.mxu0 0
    %3218 = vmatprep.subr.bf16.mxu0 0
    %3219 = vmatpush1.bf16.msra.mxu0 0
    %3220 = vmatprep.subr.bf16.mxu0 0
    %3221 = vmatpush1.bf16.msra.mxu0 0
    %3222 = vmatprep.subr.bf16.mxu0 0
    %3223 = vmatpush1.bf16.msra.mxu0 0
    %3224 = vmatprep.subr.bf16.mxu0 0
    %3225 = vmatpush1.bf16.msra.mxu0 0
    %3226 = vmatprep.subr.bf16.mxu0 0
    %3227 = vmatpush1.bf16.msra.mxu0 0
    %3228 = vmatprep.subr.bf16.mxu0 0
    %3229 = vmatpush1.bf16.msra.mxu0 0
    %3230 = vmatprep.subr.bf16.mxu0 0
    %3231 = vmatpush1.bf16.msra.mxu0 0
    %3232 = vmatprep.mubr.bf16.mxu0 0
    %3233 = vmatmul.mubr.bf16.gmra.mrb[0].mxu0 %v3198
    %v3234 = vpop.f32.mrb[0].mxu0
    %v3235 = vadd.f32 0.0, %v3234
    %v3236 = vpop.f32.mrb[0].mxu0
    %v3237 = vpop.f32.mrb[0].mxu0
    %v3238 = vpop.f32.mrb[0].mxu0
    %3239 = vdwg.mxu0
    %s3240 = sld [smem:[#allocation5 + $0x2]]
    %vm3241 = vcmp.ge.f32.partialorder %v3235, 0.0
    %v3242 = vstv %s3240
    %v3243 = vmul.f32 %v3242, %v3235
    %v3244 = vsel %vm3241, %v3235, %v3243
    %v3245 = vpack.c.bf16 %v3244, %v3244
    %v3246 = vld [vmem:[%s3] sm:$0xf]
    %v3247 = vld [vmem:[%s3 + $0x4] sm:$0xf]
    %v3250 = vunpack.c.l.b16 %v3246
    %v3251 = vunpack.c.l.b16 %v3247
    %v3252 = vpack.c.b16 %v3251, %v3250
    %vm3254 = vcmask 130048
    %v3256 = vsel %vm3254, %v3245, 0
    %3258 = vmatprep.subr.bf16.mxu0 0
    %3259 = vmatpush1.bf16.msra.mxu0 %v3252
    %3260 = vmatprep.subr.bf16.mxu0 0
    %3261 = vmatpush1.bf16.msra.mxu0 0
    %3262 = vmatprep.subr.bf16.mxu0 0
    %3263 = vmatpush1.bf16.msra.mxu0 0
    %3264 = vmatprep.subr.bf16.mxu0 0
    %3265 = vmatpush1.bf16.msra.mxu0 0
    %3266 = vmatprep.subr.bf16.mxu0 0
    %3267 = vmatpush1.bf16.msra.mxu0 0
    %3268 = vmatprep.subr.bf16.mxu0 0
    %3269 = vmatpush1.bf16.msra.mxu0 0
    %3270 = vmatprep.subr.bf16.mxu0 0
    %3271 = vmatpush1.bf16.msra.mxu0 0
    %3272 = vmatprep.subr.bf16.mxu0 0
    %3273 = vmatpush1.bf16.msra.mxu0 0
    %3274 = vmatprep.subr.bf16.mxu0 0
    %3275 = vmatpush1.bf16.msra.mxu0 0
    %3276 = vmatprep.subr.bf16.mxu0 0
    %3277 = vmatpush1.bf16.msra.mxu0 0
    %3278 = vmatprep.subr.bf16.mxu0 0
    %3279 = vmatpush1.bf16.msra.mxu0 0
    %3280 = vmatprep.subr.bf16.mxu0 0
    %3281 = vmatpush1.bf16.msra.mxu0 0
    %3282 = vmatprep.subr.bf16.mxu0 0
    %3283 = vmatpush1.bf16.msra.mxu0 0
    %3284 = vmatprep.subr.bf16.mxu0 0
    %3285 = vmatpush1.bf16.msra.mxu0 0
    %3286 = vmatprep.subr.bf16.mxu0 0
    %3287 = vmatpush1.bf16.msra.mxu0 0
    %3288 = vmatprep.subr.bf16.mxu0 0
    %3289 = vmatpush1.bf16.msra.mxu0 0
    %3290 = vmatprep.mubr.bf16.mxu0 0
    %3291 = vmatmul.mubr.bf16.gmra.mrb[0].mxu0 %v3256
    %v3292 = vpop.f32.mrb[0].mxu0
    %v3293 = vadd.f32 0.0, %v3292
    %v3294 = vpop.f32.mrb[0].mxu0
    %v3295 = vpop.f32.mrb[0].mxu0
    %v3296 = vpop.f32.mrb[0].mxu0
    %3297 = vdwg.mxu0
    %v3298 = vsub.f32 0.0, %v3293
    %v3299 = vmul.f32 %v3298, 1.442695
    %v3300 = vpow.pop %v3299
    %v3301 = vadd.f32 %v3300, 1.0
    %v3302 = vrcp.pop %v3301
    %v3303 = vmul.f32 1.0, %v3302
    %v3306 = vunpack.c.l.s4 1966171168
    %v3307 = vunpack.c.0.s8 %v3306
    %v3308 = vlaneseq
    %v3309 = vshrl.u32 %v3308, 7
    %v3310 = vsub.s32 %v3307, %v3309
    %v3311 = vrot.slane %v3303, %v3310
    %v3312 = vcombine.high %v3311, %v3311
    %v3314 = vunpack.c.l.s4 1966171168
    %v3315 = vunpack.c.0.s8 %v3314
    %v3316 = vlaneseq
    %v3317 = vshrl.u32 %v3316, 7
    %v3318 = vsub.s32 %v3315, %v3317
    %v3319 = vrot.slane %v3311, %v3318
    %v3321 = vunpack.c.l.s4 1966171168
    %v3322 = vunpack.c.0.s8 %v3321
    %v3323 = vlaneseq
    %v3324 = vshrl.u32 %v3323, 7
    %v3325 = vsub.s32 %v3322, %v3324
    %v3326 = vrot.slane %v3312, %v3325
    %v3327 = vlaneseq
    %v3328 = vshrl.u32 %v3327, 7
    %v3329 = vsub.s32 0, %v3328
    %v3330 = vrot.slane %v3319, %v3329
    %v3331 = vlaneseq
    %v3332 = vshrl.u32 %v3331, 7
    %v3333 = vsub.s32 0, %v3332
    %v3334 = vrot.slane %v3326, %v3333
    %v3337 = vmul.f32 %v3095, %v3330
    %v3338 = vmul.f32 %v3096, %v3330
    %v3339 = vmul.f32 %v3097, %v3330
    %v3340 = vmul.f32 %v3098, %v3330
    %v3341 = vmul.f32 %v3099, %v3330
    %v3342 = vmul.f32 %v3100, %v3330
    %v3343 = vmul.f32 %v3101, %v3330
    %v3344 = vmul.f32 %v3102, %v3330
    %v3345 = vmul.f32 %v3103, %v3334
    %v3346 = vmul.f32 %v3104, %v3334
    %v3347 = vmul.f32 %v3105, %v3334
    %v3348 = vmul.f32 %v3106, %v3334
    %v3349 = vmul.f32 %v3107, %v3334
    %v3350 = vmul.f32 %v3108, %v3334
    %v3351 = vmul.f32 %v3109, %v3334
    %v3352 = vmul.f32 %v3110, %v3334
    %v3353 = vpack.c.bf16 %v3338, %v3337
    %v3354 = vpack.c.bf16 %v3340, %v3339
    %v3355 = vpack.c.bf16 %v3342, %v3341
    %v3356 = vpack.c.bf16 %v3344, %v3343
    %v3357 = vpack.c.bf16 %v3346, %v3345
    %v3358 = vpack.c.bf16 %v3348, %v3347
    %v3359 = vpack.c.bf16 %v3350, %v3349
    %v3360 = vpack.c.bf16 %v3352, %v3351
    %v3361 = vld [vmem:[%s4] sm:$0xff]
    %v3362 = vld [vmem:[%s4 + $0x8] sm:$0xff]
    %v3363 = vld [vmem:[%s4 + $0x10] sm:$0xff]
    %v3364 = vld [vmem:[%s4 + $0x18] sm:$0xff]
    %v3365 = vld [vmem:[%s4 + $0x20] sm:$0xff]
    %v3366 = vld [vmem:[%s4 + $0x28] sm:$0xff]
    %v3367 = vld [vmem:[%s4 + $0x30] sm:$0xff]
    %v3368 = vld [vmem:[%s4 + $0x38] sm:$0xff]
    %v3377 = vunpack.c.l.b16 %v3361
    %v3378 = vunpack.c.h.b16 %v3361
    %v3379 = vunpack.c.l.b16 %v3362
    %v3380 = vunpack.c.h.b16 %v3362
    %v3381 = vunpack.c.l.b16 %v3363
    %v3382 = vunpack.c.h.b16 %v3363
    %v3383 = vunpack.c.l.b16 %v3364
    %v3384 = vunpack.c.h.b16 %v3364
    %v3385 = vunpack.c.l.b16 %v3365
    %v3386 = vunpack.c.h.b16 %v3365
    %v3387 = vunpack.c.l.b16 %v3366
    %v3388 = vunpack.c.h.b16 %v3366
    %v3389 = vunpack.c.l.b16 %v3367
    %v3390 = vunpack.c.h.b16 %v3367
    %v3391 = vunpack.c.l.b16 %v3368
    %v3392 = vunpack.c.h.b16 %v3368
    %v3393 = vpack.c.b16 %v3379, %v3377
    %v3394 = vpack.c.b16 %v3380, %v3378
    %v3395 = vpack.c.b16 %v3383, %v3381
    %v3396 = vpack.c.b16 %v3384, %v3382
    %v3397 = vpack.c.b16 %v3387, %v3385
    %v3398 = vpack.c.b16 %v3388, %v3386
    %v3399 = vpack.c.b16 %v3391, %v3389
    %v3400 = vpack.c.b16 %v3392, %v3390
    %v3410 = vsel %vm248, %v3353, 0
    %v3413 = vsel %vm248, %v3354, 0
    %v3416 = vsel %vm248, %v3355, 0
    %v3419 = vsel %vm248, %v3356, 0
    %v3422 = vsel %vm248, %v3357, 0
    %v3425 = vsel %vm248, %v3358, 0
    %v3428 = vsel %vm248, %v3359, 0
    %v3431 = vsel %vm248, %v3360, 0
    %3433 = vmatprep.subr.bf16.mxu0 %v3394
    %3434 = vmatpush1.bf16.msra.mxu0 %v3393
    %3435 = vmatprep.subr.bf16.mxu0 %v3396
    %3436 = vmatpush1.bf16.msra.mxu0 %v3395
    %3437 = vmatprep.subr.bf16.mxu0 %v3398
    %3438 = vmatpush1.bf16.msra.mxu0 %v3397
    %3439 = vmatprep.subr.bf16.mxu0 %v3400
    %3440 = vmatpush1.bf16.msra.mxu0 %v3399
    %3441 = vmatprep.subr.bf16.mxu0 0
    %3442 = vmatpush1.bf16.msra.mxu0 0
    %3443 = vmatprep.subr.bf16.mxu0 0
    %3444 = vmatpush1.bf16.msra.mxu0 0
    %3445 = vmatprep.subr.bf16.mxu0 0
    %3446 = vmatpush1.bf16.msra.mxu0 0
    %3447 = vmatprep.subr.bf16.mxu0 0
    %3448 = vmatpush1.bf16.msra.mxu0 0
    %3449 = vmatprep.subr.bf16.mxu0 0
    %3450 = vmatpush1.bf16.msra.mxu0 0
    %3451 = vmatprep.subr.bf16.mxu0 0
    %3452 = vmatpush1.bf16.msra.mxu0 0
    %3453 = vmatprep.subr.bf16.mxu0 0
    %3454 = vmatpush1.bf16.msra.mxu0 0
    %3455 = vmatprep.subr.bf16.mxu0 0
    %3456 = vmatpush1.bf16.msra.mxu0 0
    %3457 = vmatprep.subr.bf16.mxu0 0
    %3458 = vmatpush1.bf16.msra.mxu0 0
    %3459 = vmatprep.subr.bf16.mxu0 0
    %3460 = vmatpush1.bf16.msra.mxu0 0
    %3461 = vmatprep.subr.bf16.mxu0 0
    %3462 = vmatpush1.bf16.msra.mxu0 0
    %3463 = vmatprep.subr.bf16.mxu0 0
    %3464 = vmatpush1.bf16.msra.mxu0 0
    %3465 = vmatprep.mubr.bf16.mxu0 0
    %3466 = vmatmul.mubr.bf16.gmra.mrb[0].mxu0 %v3410
    %v3467 = vpop.f32.mrb[0].mxu0
    %v3468 = vadd.f32 0.0, %v3467
    %v3469 = vpop.f32.mrb[0].mxu0
    %v3470 = vadd.f32 0.0, %v3469
    %v3471 = vpop.f32.mrb[0].mxu0
    %v3472 = vadd.f32 0.0, %v3471
    %v3473 = vpop.f32.mrb[0].mxu0
    %v3474 = vadd.f32 0.0, %v3473
    %3475 = vmatprep.mubr.bf16.mxu0 0
    %3476 = vmatmul.mubr.bf16.gmra.mrb[0].mxu0 %v3413
    %v3477 = vpop.f32.mrb[0].mxu0
    %v3478 = vadd.f32 0.0, %v3477
    %v3479 = vpop.f32.mrb[0].mxu0
    %v3480 = vadd.f32 0.0, %v3479
    %v3481 = vpop.f32.mrb[0].mxu0
    %v3482 = vadd.f32 0.0, %v3481
    %v3483 = vpop.f32.mrb[0].mxu0
    %v3484 = vadd.f32 0.0, %v3483
    %3485 = vmatprep.mubr.bf16.mxu0 0
    %3486 = vmatmul.mubr.bf16.gmra.mrb[0].mxu0 %v3416
    %v3487 = vpop.f32.mrb[0].mxu0
    %v3488 = vadd.f32 0.0, %v3487
    %v3489 = vpop.f32.mrb[0].mxu0
    %v3490 = vadd.f32 0.0, %v3489
    %v3491 = vpop.f32.mrb[0].mxu0
    %v3492 = vadd.f32 0.0, %v3491
    %v3493 = vpop.f32.mrb[0].mxu0
    %v3494 = vadd.f32 0.0, %v3493
    %3495 = vmatprep.mubr.bf16.mxu0 0
    %3496 = vmatmul.mubr.bf16.gmra.mrb[0].mxu0 %v3419
    %v3497 = vpop.f32.mrb[0].mxu0
    %v3498 = vadd.f32 0.0, %v3497
    %v3499 = vpop.f32.mrb[0].mxu0
    %v3500 = vadd.f32 0.0, %v3499
    %v3501 = vpop.f32.mrb[0].mxu0
    %v3502 = vadd.f32 0.0, %v3501
    %v3503 = vpop.f32.mrb[0].mxu0
    %v3504 = vadd.f32 0.0, %v3503
    %3505 = vmatprep.mubr.bf16.mxu0 0
    %3506 = vmatmul.mubr.bf16.gmra.mrb[0].mxu0 %v3422
    %v3507 = vpop.f32.mrb[0].mxu0
    %v3508 = vadd.f32 0.0, %v3507
    %v3509 = vpop.f32.mrb[0].mxu0
    %v3510 = vadd.f32 0.0, %v3509
    %v3511 = vpop.f32.mrb[0].mxu0
    %v3512 = vadd.f32 0.0, %v3511
    %v3513 = vpop.f32.mrb[0].mxu0
    %v3514 = vadd.f32 0.0, %v3513
    %3515 = vmatprep.mubr.bf16.mxu0 0
    %3516 = vmatmul.mubr.bf16.gmra.mrb[0].mxu0 %v3425
    %v3517 = vpop.f32.mrb[0].mxu0
    %v3518 = vadd.f32 0.0, %v3517
    %v3519 = vpop.f32.mrb[0].mxu0
    %v3520 = vadd.f32 0.0, %v3519
    %v3521 = vpop.f32.mrb[0].mxu0
    %v3522 = vadd.f32 0.0, %v3521
    %v3523 = vpop.f32.mrb[0].mxu0
    %v3524 = vadd.f32 0.0, %v3523
    %3525 = vmatprep.mubr.bf16.mxu0 0
    %3526 = vmatmul.mubr.bf16.gmra.mrb[0].mxu0 %v3428
    %v3527 = vpop.f32.mrb[0].mxu0
    %v3528 = vadd.f32 0.0, %v3527
    %v3529 = vpop.f32.mrb[0].mxu0
    %v3530 = vadd.f32 0.0, %v3529
    %v3531 = vpop.f32.mrb[0].mxu0
    %v3532 = vadd.f32 0.0, %v3531
    %v3533 = vpop.f32.mrb[0].mxu0
    %v3534 = vadd.f32 0.0, %v3533
    %3535 = vmatprep.mubr.bf16.mxu0 0
    %3536 = vmatmul.mubr.bf16.gmra.mrb[0].mxu0 %v3431
    %v3537 = vpop.f32.mrb[0].mxu0
    %v3538 = vadd.f32 0.0, %v3537
    %v3539 = vpop.f32.mrb[0].mxu0
    %v3540 = vadd.f32 0.0, %v3539
    %v3541 = vpop.f32.mrb[0].mxu0
    %v3542 = vadd.f32 0.0, %v3541
    %v3543 = vpop.f32.mrb[0].mxu0
    %v3544 = vadd.f32 0.0, %v3543
    %3545 = vdwg.mxu0
    %s3546 = sld [smem:[#allocation5 + $0x3]]
    %vm3547 = vcmp.ge.f32.partialorder %v3468, 0.0
    %vm3548 = vcmp.ge.f32.partialorder %v3470, 0.0
    %vm3549 = vcmp.ge.f32.partialorder %v3472, 0.0
    %vm3550 = vcmp.ge.f32.partialorder %v3474, 0.0
    %vm3551 = vcmp.ge.f32.partialorder %v3478, 0.0
    %vm3552 = vcmp.ge.f32.partialorder %v3480, 0.0
    %vm3553 = vcmp.ge.f32.partialorder %v3482, 0.0
    %vm3554 = vcmp.ge.f32.partialorder %v3484, 0.0
    %vm3555 = vcmp.ge.f32.partialorder %v3488, 0.0
    %vm3556 = vcmp.ge.f32.partialorder %v3490, 0.0
    %vm3557 = vcmp.ge.f32.partialorder %v3492, 0.0
    %vm3558 = vcmp.ge.f32.partialorder %v3494, 0.0
    %vm3559 = vcmp.ge.f32.partialorder %v3498, 0.0
    %vm3560 = vcmp.ge.f32.partialorder %v3500, 0.0
    %vm3561 = vcmp.ge.f32.partialorder %v3502, 0.0
    %vm3562 = vcmp.ge.f32.partialorder %v3504, 0.0
    %vm3563 = vcmp.ge.f32.partialorder %v3508, 0.0
    %vm3564 = vcmp.ge.f32.partialorder %v3510, 0.0
    %vm3565 = vcmp.ge.f32.partialorder %v3512, 0.0
    %vm3566 = vcmp.ge.f32.partialorder %v3514, 0.0
    %vm3567 = vcmp.ge.f32.partialorder %v3518, 0.0
    %vm3568 = vcmp.ge.f32.partialorder %v3520, 0.0
    %vm3569 = vcmp.ge.f32.partialorder %v3522, 0.0
    %vm3570 = vcmp.ge.f32.partialorder %v3524, 0.0
    %vm3571 = vcmp.ge.f32.partialorder %v3528, 0.0
    %vm3572 = vcmp.ge.f32.partialorder %v3530, 0.0
    %vm3573 = vcmp.ge.f32.partialorder %v3532, 0.0
    %vm3574 = vcmp.ge.f32.partialorder %v3534, 0.0
    %vm3575 = vcmp.ge.f32.partialorder %v3538, 0.0
    %vm3576 = vcmp.ge.f32.partialorder %v3540, 0.0
    %vm3577 = vcmp.ge.f32.partialorder %v3542, 0.0
    %vm3578 = vcmp.ge.f32.partialorder %v3544, 0.0
    %v3579 = vstv %s3546
    %v3580 = vmul.f32 %v3579, %v3468
    %v3581 = vmul.f32 %v3579, %v3470
    %v3582 = vmul.f32 %v3579, %v3472
    %v3583 = vmul.f32 %v3579, %v3474
    %v3584 = vmul.f32 %v3579, %v3478
    %v3585 = vmul.f32 %v3579, %v3480
    %v3586 = vmul.f32 %v3579, %v3482
    %v3587 = vmul.f32 %v3579, %v3484
    %v3588 = vmul.f32 %v3579, %v3488
    %v3589 = vmul.f32 %v3579, %v3490
    %v3590 = vmul.f32 %v3579, %v3492
    %v3591 = vmul.f32 %v3579, %v3494
    %v3592 = vmul.f32 %v3579, %v3498
    %v3593 = vmul.f32 %v3579, %v3500
    %v3594 = vmul.f32 %v3579, %v3502
    %v3595 = vmul.f32 %v3579, %v3504
    %v3596 = vmul.f32 %v3579, %v3508
    %v3597 = vmul.f32 %v3579, %v3510
    %v3598 = vmul.f32 %v3579, %v3512
    %v3599 = vmul.f32 %v3579, %v3514
    %v3600 = vmul.f32 %v3579, %v3518
    %v3601 = vmul.f32 %v3579, %v3520
    %v3602 = vmul.f32 %v3579, %v3522
    %v3603 = vmul.f32 %v3579, %v3524
    %v3604 = vmul.f32 %v3579, %v3528
    %v3605 = vmul.f32 %v3579, %v3530
    %v3606 = vmul.f32 %v3579, %v3532
    %v3607 = vmul.f32 %v3579, %v3534
    %v3608 = vmul.f32 %v3579, %v3538
    %v3609 = vmul.f32 %v3579, %v3540
    %v3610 = vmul.f32 %v3579, %v3542
    %v3611 = vmul.f32 %v3579, %v3544
    %v3612 = vsel %vm3547, %v3468, %v3580
    %v3613 = vsel %vm3548, %v3470, %v3581
    %v3614 = vsel %vm3549, %v3472, %v3582
    %v3615 = vsel %vm3550, %v3474, %v3583
    %v3616 = vsel %vm3551, %v3478, %v3584
    %v3617 = vsel %vm3552, %v3480, %v3585
    %v3618 = vsel %vm3553, %v3482, %v3586
    %v3619 = vsel %vm3554, %v3484, %v3587
    %v3620 = vsel %vm3555, %v3488, %v3588
    %v3621 = vsel %vm3556, %v3490, %v3589
    %v3622 = vsel %vm3557, %v3492, %v3590
    %v3623 = vsel %vm3558, %v3494, %v3591
    %v3624 = vsel %vm3559, %v3498, %v3592
    %v3625 = vsel %vm3560, %v3500, %v3593
    %v3626 = vsel %vm3561, %v3502, %v3594
    %v3627 = vsel %vm3562, %v3504, %v3595
    %v3628 = vsel %vm3563, %v3508, %v3596
    %v3629 = vsel %vm3564, %v3510, %v3597
    %v3630 = vsel %vm3565, %v3512, %v3598
    %v3631 = vsel %vm3566, %v3514, %v3599
    %v3632 = vsel %vm3567, %v3518, %v3600
    %v3633 = vsel %vm3568, %v3520, %v3601
    %v3634 = vsel %vm3569, %v3522, %v3602
    %v3635 = vsel %vm3570, %v3524, %v3603
    %v3636 = vsel %vm3571, %v3528, %v3604
    %v3637 = vsel %vm3572, %v3530, %v3605
    %v3638 = vsel %vm3573, %v3532, %v3606
    %v3639 = vsel %vm3574, %v3534, %v3607
    %v3640 = vsel %vm3575, %v3538, %v3608
    %v3641 = vsel %vm3576, %v3540, %v3609
    %v3642 = vsel %vm3577, %v3542, %v3610
    %v3643 = vsel %vm3578, %v3544, %v3611
    %v3644 = vadd.f32 %v3612, %v3614
    %v3645 = vadd.f32 %v3644, %v3616
    %v3646 = vadd.f32 %v3645, %v3618
    %v3647 = vadd.f32 %v3646, %v3620
    %v3648 = vadd.f32 %v3647, %v3622
    %v3649 = vadd.f32 %v3648, %v3624
    %v3650 = vadd.f32 %v3649, %v3626
    %v3651 = vrot.slane %v3650, 4
    %v3652 = vadd.f32 %v3650, %v3651
    %v3653 = vrot.slane %v3652, 2
    %v3654 = vadd.f32 %v3652, %v3653
    %v3655 = vrot.slane %v3654, 1
    %v3656 = vadd.f32 %v3654, %v3655
    %v3657 = vadd.f32 %v3613, %v3615
    %v3658 = vadd.f32 %v3657, %v3617
    %v3659 = vadd.f32 %v3658, %v3619
    %v3660 = vadd.f32 %v3659, %v3621
    %v3661 = vadd.f32 %v3660, %v3623
    %v3662 = vadd.f32 %v3661, %v3625
    %v3663 = vadd.f32 %v3662, %v3627
    %v3664 = vrot.slane %v3663, 4
    %v3665 = vadd.f32 %v3663, %v3664
    %v3666 = vrot.slane %v3665, 2
    %v3667 = vadd.f32 %v3665, %v3666
    %v3668 = vrot.slane %v3667, 1
    %v3669 = vadd.f32 %v3667, %v3668
    %v3670 = vadd.f32 %v3628, %v3630
    %v3671 = vadd.f32 %v3670, %v3632
    %v3672 = vadd.f32 %v3671, %v3634
    %v3673 = vadd.f32 %v3672, %v3636
    %v3674 = vadd.f32 %v3673, %v3638
    %v3675 = vadd.f32 %v3674, %v3640
    %v3676 = vadd.f32 %v3675, %v3642
    %v3677 = vrot.slane %v3676, 4
    %v3678 = vadd.f32 %v3676, %v3677
    %v3679 = vrot.slane %v3678, 2
    %v3680 = vadd.f32 %v3678, %v3679
    %v3681 = vrot.slane %v3680, 1
    %v3682 = vadd.f32 %v3680, %v3681
    %v3683 = vadd.f32 %v3629, %v3631
    %v3684 = vadd.f32 %v3683, %v3633
    %v3685 = vadd.f32 %v3684, %v3635
    %v3686 = vadd.f32 %v3685, %v3637
    %v3687 = vadd.f32 %v3686, %v3639
    %v3688 = vadd.f32 %v3687, %v3641
    %v3689 = vadd.f32 %v3688, %v3643
    %v3690 = vrot.slane %v3689, 4
    %v3691 = vadd.f32 %v3689, %v3690
    %v3692 = vrot.slane %v3691, 2
    %v3693 = vadd.f32 %v3691, %v3692
    %v3694 = vrot.slane %v3693, 1
    %v3695 = vadd.f32 %v3693, %v3694
    %v3696 = vmul.f32 %v3656, %v3153
    %v3697 = vmul.f32 %v3669, %v3153
    %v3698 = vmul.f32 %v3682, %v3153
    %v3699 = vmul.f32 %v3695, %v3153
    %v3700 = vpack.c.bf16 %v3696, %v3696
    %v3701 = vpack.c.bf16 %v3697, %v3697
    %v3702 = vpack.c.bf16 %v3698, %v3698
    %v3703 = vpack.c.bf16 %v3699, %v3699
    %v3704 = vld [vmem:[%s5] sm:$0xf]
    %v3705 = vld [vmem:[%s5 + $0x4] sm:$0xf]
    %v3706 = vld [vmem:[%s5 + $0x8] sm:$0xf]
    %v3707 = vld [vmem:[%s5 + $0xc] sm:$0xf]
    %v3708 = vld [vmem:[%s5 + $0x10] sm:$0xf]
    %v3709 = vld [vmem:[%s5 + $0x14] sm:$0xf]
    %v3710 = vld [vmem:[%s5 + $0x18] sm:$0xf]
    %v3711 = vld [vmem:[%s5 + $0x1c] sm:$0xf]
    %v3712 = vld [vmem:[%s5 + $0x20] sm:$0xf]
    %v3713 = vld [vmem:[%s5 + $0x24] sm:$0xf]
    %v3714 = vld [vmem:[%s5 + $0x28] sm:$0xf]
    %v3715 = vld [vmem:[%s5 + $0x2c] sm:$0xf]
    %v3716 = vld [vmem:[%s5 + $0x30] sm:$0xf]
    %v3717 = vld [vmem:[%s5 + $0x34] sm:$0xf]
    %v3718 = vld [vmem:[%s5 + $0x38] sm:$0xf]
    %v3719 = vld [vmem:[%s5 + $0x3c] sm:$0xf]
    %v3720 = vld [vmem:[%s5 + $0x40] sm:$0xf]
    %v3721 = vld [vmem:[%s5 + $0x44] sm:$0xf]
    %v3722 = vld [vmem:[%s5 + $0x48] sm:$0xf]
    %v3723 = vld [vmem:[%s5 + $0x4c] sm:$0xf]
    %v3724 = vld [vmem:[%s5 + $0x50] sm:$0xf]
    %v3725 = vld [vmem:[%s5 + $0x54] sm:$0xf]
    %v3726 = vld [vmem:[%s5 + $0x58] sm:$0xf]
    %v3727 = vld [vmem:[%s5 + $0x5c] sm:$0xf]
    %v3728 = vld [vmem:[%s5 + $0x60] sm:$0xf]
    %v3729 = vld [vmem:[%s5 + $0x64] sm:$0xf]
    %v3730 = vld [vmem:[%s5 + $0x68] sm:$0xf]
    %v3731 = vld [vmem:[%s5 + $0x6c] sm:$0xf]
    %v3732 = vld [vmem:[%s5 + $0x70] sm:$0xf]
    %v3733 = vld [vmem:[%s5 + $0x74] sm:$0xf]
    %v3734 = vld [vmem:[%s5 + $0x78] sm:$0xf]
    %v3735 = vld [vmem:[%s5 + $0x7c] sm:$0xf]
    %v3740 = vunpack.c.l.b16 %v3700
    %v3741 = vunpack.c.l.b16 %v3701
    %v3742 = vunpack.c.l.b16 %v3702
    %v3743 = vunpack.c.l.b16 %v3703
    %v3744 = vsel %vm3170, %v3742, %v3740
    %v3745 = vsel %vm3170, %v3743, %v3741
    %v3746 = vpack.c.b16 %v3744, %v3744
    %v3747 = vpack.c.b16 %v3745, %v3745
    %v3782 = vunpack.c.l.b16 %v3704
    %v3783 = vunpack.c.l.b16 %v3705
    %v3784 = vunpack.c.l.b16 %v3706
    %v3785 = vunpack.c.l.b16 %v3707
    %v3786 = vunpack.c.l.b16 %v3708
    %v3787 = vunpack.c.l.b16 %v3709
    %v3788 = vunpack.c.l.b16 %v3710
    %v3789 = vunpack.c.l.b16 %v3711
    %v3790 = vunpack.c.l.b16 %v3712
    %v3791 = vunpack.c.l.b16 %v3713
    %v3792 = vunpack.c.l.b16 %v3714
    %v3793 = vunpack.c.l.b16 %v3715
    %v3794 = vunpack.c.l.b16 %v3716
    %v3795 = vunpack.c.l.b16 %v3717
    %v3796 = vunpack.c.l.b16 %v3718
    %v3797 = vunpack.c.l.b16 %v3719
    %v3798 = vunpack.c.l.b16 %v3720
    %v3799 = vunpack.c.l.b16 %v3721
    %v3800 = vunpack.c.l.b16 %v3722
    %v3801 = vunpack.c.l.b16 %v3723
    %v3802 = vunpack.c.l.b16 %v3724
    %v3803 = vunpack.c.l.b16 %v3725
    %v3804 = vunpack.c.l.b16 %v3726
    %v3805 = vunpack.c.l.b16 %v3727
    %v3806 = vunpack.c.l.b16 %v3728
    %v3807 = vunpack.c.l.b16 %v3729
    %v3808 = vunpack.c.l.b16 %v3730
    %v3809 = vunpack.c.l.b16 %v3731
    %v3810 = vunpack.c.l.b16 %v3732
    %v3811 = vunpack.c.l.b16 %v3733
    %v3812 = vunpack.c.l.b16 %v3734
    %v3813 = vunpack.c.l.b16 %v3735
    %v3814 = vpack.c.b16 %v3783, %v3782
    %v3815 = vpack.c.b16 %v3785, %v3784
    %v3816 = vpack.c.b16 %v3787, %v3786
    %v3817 = vpack.c.b16 %v3789, %v3788
    %v3818 = vpack.c.b16 %v3791, %v3790
    %v3819 = vpack.c.b16 %v3793, %v3792
    %v3820 = vpack.c.b16 %v3795, %v3794
    %v3821 = vpack.c.b16 %v3797, %v3796
    %v3822 = vpack.c.b16 %v3799, %v3798
    %v3823 = vpack.c.b16 %v3801, %v3800
    %v3824 = vpack.c.b16 %v3803, %v3802
    %v3825 = vpack.c.b16 %v3805, %v3804
    %v3826 = vpack.c.b16 %v3807, %v3806
    %v3827 = vpack.c.b16 %v3809, %v3808
    %v3828 = vpack.c.b16 %v3811, %v3810
    %v3829 = vpack.c.b16 %v3813, %v3812
    %3846 = vmatprep.subr.bf16.mxu0 0
    %3847 = vmatpush1.bf16.msra.mxu0 %v3814
    %3848 = vmatprep.subr.bf16.mxu0 0
    %3849 = vmatpush1.bf16.msra.mxu0 %v3815
    %3850 = vmatprep.subr.bf16.mxu0 0
    %3851 = vmatpush1.bf16.msra.mxu0 %v3816
    %3852 = vmatprep.subr.bf16.mxu0 0
    %3853 = vmatpush1.bf16.msra.mxu0 %v3817
    %3854 = vmatprep.subr.bf16.mxu0 0
    %3855 = vmatpush1.bf16.msra.mxu0 %v3818
    %3856 = vmatprep.subr.bf16.mxu0 0
    %3857 = vmatpush1.bf16.msra.mxu0 %v3819
    %3858 = vmatprep.subr.bf16.mxu0 0
    %3859 = vmatpush1.bf16.msra.mxu0 %v3820
    %3860 = vmatprep.subr.bf16.mxu0 0
    %3861 = vmatpush1.bf16.msra.mxu0 %v3821
    %3862 = vmatprep.subr.bf16.mxu0 0
    %3863 = vmatpush1.bf16.msra.mxu0 %v3822
    %3864 = vmatprep.subr.bf16.mxu0 0
    %3865 = vmatpush1.bf16.msra.mxu0 %v3823
    %3866 = vmatprep.subr.bf16.mxu0 0
    %3867 = vmatpush1.bf16.msra.mxu0 %v3824
    %3868 = vmatprep.subr.bf16.mxu0 0
    %3869 = vmatpush1.bf16.msra.mxu0 %v3825
    %3870 = vmatprep.subr.bf16.mxu0 0
    %3871 = vmatpush1.bf16.msra.mxu0 %v3826
    %3872 = vmatprep.subr.bf16.mxu0 0
    %3873 = vmatpush1.bf16.msra.mxu0 %v3827
    %3874 = vmatprep.subr.bf16.mxu0 0
    %3875 = vmatpush1.bf16.msra.mxu0 %v3828
    %3876 = vmatprep.subr.bf16.mxu0 0
    %3877 = vmatpush1.bf16.msra.mxu0 %v3829
    %3878 = vmatprep.mubr.bf16.mxu0 %v3747
    %3879 = vmatmul.mubr.bf16.gmra.mrb[0].mxu0 %v3746
    %v3880 = vpop.f32.mrb[0].mxu0
    %v3881 = vadd.f32 0.0, %v3880
    %v3882 = vpop.f32.mrb[0].mxu0
    %v3883 = vpop.f32.mrb[0].mxu0
    %v3884 = vpop.f32.mrb[0].mxu0
    %3885 = vdwg.mxu0
    %v3886 = vsub.f32 0.0, %v3881
    %v3887 = vmul.f32 %v3886, 1.442695
    %v3888 = vpow.pop %v3887
    %v3889 = vadd.f32 %v3888, 1.0
    %v3890 = vrcp.pop %v3889
    %v3891 = vmul.f32 1.0, %v3890
    %v3892 = vmul.f32 %v3881, %v3891
    %v3893 = vpack.c.bf16 %v3892, %v3892
    %v3894 = vld [vmem:[%s6] sm:$0xff]
    %v3895 = vld [vmem:[%s6 + $0x8] sm:$0xff]
    %v3898 = vunpack.c.l.b16 %v3894
    %v3899 = vunpack.c.h.b16 %v3894
    %v3900 = vunpack.c.l.b16 %v3895
    %v3901 = vunpack.c.h.b16 %v3895
    %v3902 = vpack.c.b16 %v3900, %v3898
    %v3903 = vpack.c.b16 %v3901, %v3899
    %v3907 = vsel %vm3254, %v3893, 0
    %3909 = vmatprep.subr.bf16.mxu0 %v3903
    %3910 = vmatpush1.bf16.msra.mxu0 %v3902
    %3911 = vmatprep.subr.bf16.mxu0 0
    %3912 = vmatpush1.bf16.msra.mxu0 0
    %3913 = vmatprep.subr.bf16.mxu0 0
    %3914 = vmatpush1.bf16.msra.mxu0 0
    %3915 = vmatprep.subr.bf16.mxu0 0
    %3916 = vmatpush1.bf16.msra.mxu0 0
    %3917 = vmatprep.subr.bf16.mxu0 0
    %3918 = vmatpush1.bf16.msra.mxu0 0
    %3919 = vmatprep.subr.bf16.mxu0 0
    %3920 = vmatpush1.bf16.msra.mxu0 0
    %3921 = vmatprep.subr.bf16.mxu0 0
    %3922 = vmatpush1.bf16.msra.mxu0 0
    %3923 = vmatprep.subr.bf16.mxu0 0
    %3924 = vmatpush1.bf16.msra.mxu0 0
    %3925 = vmatprep.subr.bf16.mxu0 0
    %3926 = vmatpush1.bf16.msra.mxu0 0
    %3927 = vmatprep.subr.bf16.mxu0 0
    %3928 = vmatpush1.bf16.msra.mxu0 0
    %3929 = vmatprep.subr.bf16.mxu0 0
    %3930 = vmatpush1.bf16.msra.mxu0 0
    %3931 = vmatprep.subr.bf16.mxu0 0
    %3932 = vmatpush1.bf16.msra.mxu0 0
    %3933 = vmatprep.subr.bf16.mxu0 0
    %3934 = vmatpush1.bf16.msra.mxu0 0
    %3935 = vmatprep.subr.bf16.mxu0 0
    %3936 = vmatpush1.bf16.msra.mxu0 0
    %3937 = vmatprep.subr.bf16.mxu0 0
    %3938 = vmatpush1.bf16.msra.mxu0 0
    %3939 = vmatprep.subr.bf16.mxu0 0
    %3940 = vmatpush1.bf16.msra.mxu0 0
    %3941 = vmatprep.mubr.bf16.mxu0 0
    %3942 = vmatmul.mubr.bf16.gmra.mrb[0].mxu0 %v3907
    %v3943 = vpop.f32.mrb[0].mxu0
    %v3944 = vadd.f32 0.0, %v3943
    %v3945 = vpop.f32.mrb[0].mxu0
    %v3946 = vadd.f32 0.0, %v3945
    %v3947 = vpop.f32.mrb[0].mxu0
    %v3948 = vpop.f32.mrb[0].mxu0
    %3949 = vdwg.mxu0
    %v3950 = vsub.f32 0.0, %v3944
    %v3951 = vsub.f32 0.0, %v3946
    %v3952 = vmul.f32 %v3950, 1.442695
    %v3953 = vpow.pop %v3952
    %v3954 = vmul.f32 %v3951, 1.442695
    %v3955 = vpow.pop %v3954
    %v3956 = vadd.f32 %v3953, 1.0
    %v3957 = vadd.f32 %v3955, 1.0
    %v3958 = vrcp.pop %v3956
    %v3959 = vmul.f32 1.0, %v3958
    %v3960 = vrcp.pop %v3957
    %v3961 = vmul.f32 1.0, %v3960
    %v3964 = vcombine.low %v3959, %v3961
    %v3966 = vunpack.c.l.s4 1966171168
    %v3967 = vunpack.c.0.s8 %v3966
    %v3968 = vlaneseq
    %v3969 = vshrl.u32 %v3968, 7
    %v3970 = vsub.s32 %v3967, %v3969
    %v3971 = vrot.slane %v3964, %v3970
    %v3972 = vcombine.high %v3971, %v3971
    %v3974 = vunpack.c.l.s4 1966171168
    %v3975 = vunpack.c.0.s8 %v3974
    %v3976 = vlaneseq
    %v3977 = vshrl.u32 %v3976, 7
    %v3978 = vsub.s32 %v3975, %v3977
    %v3979 = vrot.slane %v3971, %v3978
    %v3981 = vunpack.c.l.s4 1966171168
    %v3982 = vunpack.c.0.s8 %v3981
    %v3983 = vlaneseq
    %v3984 = vshrl.u32 %v3983, 7
    %v3985 = vsub.s32 %v3982, %v3984
    %v3986 = vrot.slane %v3972, %v3985
    %v3987 = vlaneseq
    %v3988 = vshrl.u32 %v3987, 7
    %v3989 = vsub.s32 0, %v3988
    %v3990 = vrot.slane %v3979, %v3989
    %v3991 = vlaneseq
    %v3992 = vshrl.u32 %v3991, 7
    %v3993 = vsub.s32 1, %v3992
    %v3994 = vrot.slane %v3979, %v3993
    %v3995 = vlaneseq
    %v3996 = vshrl.u32 %v3995, 7
    %v3997 = vsub.s32 0, %v3996
    %v3998 = vrot.slane %v3986, %v3997
    %v3999 = vlaneseq
    %v4000 = vshrl.u32 %v3999, 7
    %v4001 = vsub.s32 1, %v4000
    %v4002 = vrot.slane %v3986, %v4001
    %v4007 = vmul.f32 %v3612, %v3990
    %v4008 = vmul.f32 %v3613, %v3994
    %v4009 = vmul.f32 %v3614, %v3990
    %v4010 = vmul.f32 %v3615, %v3994
    %v4011 = vmul.f32 %v3616, %v3990
    %v4012 = vmul.f32 %v3617, %v3994
    %v4013 = vmul.f32 %v3618, %v3990
    %v4014 = vmul.f32 %v3619, %v3994
    %v4015 = vmul.f32 %v3620, %v3990
    %v4016 = vmul.f32 %v3621, %v3994
    %v4017 = vmul.f32 %v3622, %v3990
    %v4018 = vmul.f32 %v3623, %v3994
    %v4019 = vmul.f32 %v3624, %v3990
    %v4020 = vmul.f32 %v3625, %v3994
    %v4021 = vmul.f32 %v3626, %v3990
    %v4022 = vmul.f32 %v3627, %v3994
    %v4023 = vmul.f32 %v3628, %v3998
    %v4024 = vmul.f32 %v3629, %v4002
    %v4025 = vmul.f32 %v3630, %v3998
    %v4026 = vmul.f32 %v3631, %v4002
    %v4027 = vmul.f32 %v3632, %v3998
    %v4028 = vmul.f32 %v3633, %v4002
    %v4029 = vmul.f32 %v3634, %v3998
    %v4030 = vmul.f32 %v3635, %v4002
    %v4031 = vmul.f32 %v3636, %v3998
    %v4032 = vmul.f32 %v3637, %v4002
    %v4033 = vmul.f32 %v3638, %v3998
    %v4034 = vmul.f32 %v3639, %v4002
    %v4035 = vmul.f32 %v3640, %v3998
    %v4036 = vmul.f32 %v3641, %v4002
    %v4037 = vmul.f32 %v3642, %v3998
    %v4038 = vmul.f32 %v3643, %v4002
    %v4039 = vpack.c.bf16 %v4009, %v4007
    %v4040 = vpack.c.bf16 %v4010, %v4008
    %v4041 = vpack.c.bf16 %v4013, %v4011
    %v4042 = vpack.c.bf16 %v4014, %v4012
    %v4043 = vpack.c.bf16 %v4017, %v4015
    %v4044 = vpack.c.bf16 %v4018, %v4016
    %v4045 = vpack.c.bf16 %v4021, %v4019
    %v4046 = vpack.c.bf16 %v4022, %v4020
    %v4047 = vpack.c.bf16 %v4025, %v4023
    %v4048 = vpack.c.bf16 %v4026, %v4024
    %v4049 = vpack.c.bf16 %v4029, %v4027
    %v4050 = vpack.c.bf16 %v4030, %v4028
    %v4051 = vpack.c.bf16 %v4033, %v4031
    %v4052 = vpack.c.bf16 %v4034, %v4032
    %v4053 = vpack.c.bf16 %v4037, %v4035
    %v4054 = vpack.c.bf16 %v4038, %v4036
    %v4055 = vld [vmem:[%s7] sm:$0xf]
    %v4056 = vld [vmem:[%s7 + $0x4] sm:$0xf]
    %v4057 = vld [vmem:[%s7 + $0x8] sm:$0xf]
    %v4058 = vld [vmem:[%s7 + $0xc] sm:$0xf]
    %v4059 = vld [vmem:[%s7 + $0x10] sm:$0xf]
    %v4060 = vld [vmem:[%s7 + $0x14] sm:$0xf]
    %v4061 = vld [vmem:[%s7 + $0x18] sm:$0xf]
    %v4062 = vld [vmem:[%s7 + $0x1c] sm:$0xf]
    %v4063 = vld [vmem:[%s7 + $0x20] sm:$0xf]
    %v4064 = vld [vmem:[%s7 + $0x24] sm:$0xf]
    %v4065 = vld [vmem:[%s7 + $0x28] sm:$0xf]
    %v4066 = vld [vmem:[%s7 + $0x2c] sm:$0xf]
    %v4067 = vld [vmem:[%s7 + $0x30] sm:$0xf]
    %v4068 = vld [vmem:[%s7 + $0x34] sm:$0xf]
    %v4069 = vld [vmem:[%s7 + $0x38] sm:$0xf]
    %v4070 = vld [vmem:[%s7 + $0x3c] sm:$0xf]
    %v4071 = vld [vmem:[%s7 + $0x40] sm:$0xf]
    %v4072 = vld [vmem:[%s7 + $0x44] sm:$0xf]
    %v4073 = vld [vmem:[%s7 + $0x48] sm:$0xf]
    %v4074 = vld [vmem:[%s7 + $0x4c] sm:$0xf]
    %v4075 = vld [vmem:[%s7 + $0x50] sm:$0xf]
    %v4076 = vld [vmem:[%s7 + $0x54] sm:$0xf]
    %v4077 = vld [vmem:[%s7 + $0x58] sm:$0xf]
    %v4078 = vld [vmem:[%s7 + $0x5c] sm:$0xf]
    %v4079 = vld [vmem:[%s7 + $0x60] sm:$0xf]
    %v4080 = vld [vmem:[%s7 + $0x64] sm:$0xf]
    %v4081 = vld [vmem:[%s7 + $0x68] sm:$0xf]
    %v4082 = vld [vmem:[%s7 + $0x6c] sm:$0xf]
    %v4083 = vld [vmem:[%s7 + $0x70] sm:$0xf]
    %v4084 = vld [vmem:[%s7 + $0x74] sm:$0xf]
    %v4085 = vld [vmem:[%s7 + $0x78] sm:$0xf]
    %v4086 = vld [vmem:[%s7 + $0x7c] sm:$0xf]
    %v4119 = vunpack.c.l.b16 %v4055
    %v4120 = vunpack.c.l.b16 %v4056
    %v4121 = vunpack.c.l.b16 %v4057
    %v4122 = vunpack.c.l.b16 %v4058
    %v4123 = vunpack.c.l.b16 %v4059
    %v4124 = vunpack.c.l.b16 %v4060
    %v4125 = vunpack.c.l.b16 %v4061
    %v4126 = vunpack.c.l.b16 %v4062
    %v4127 = vunpack.c.l.b16 %v4063
    %v4128 = vunpack.c.l.b16 %v4064
    %v4129 = vunpack.c.l.b16 %v4065
    %v4130 = vunpack.c.l.b16 %v4066
    %v4131 = vunpack.c.l.b16 %v4067
    %v4132 = vunpack.c.l.b16 %v4068
    %v4133 = vunpack.c.l.b16 %v4069
    %v4134 = vunpack.c.l.b16 %v4070
    %v4135 = vunpack.c.l.b16 %v4071
    %v4136 = vunpack.c.l.b16 %v4072
    %v4137 = vunpack.c.l.b16 %v4073
    %v4138 = vunpack.c.l.b16 %v4074
    %v4139 = vunpack.c.l.b16 %v4075
    %v4140 = vunpack.c.l.b16 %v4076
    %v4141 = vunpack.c.l.b16 %v4077
    %v4142 = vunpack.c.l.b16 %v4078
    %v4143 = vunpack.c.l.b16 %v4079
    %v4144 = vunpack.c.l.b16 %v4080
    %v4145 = vunpack.c.l.b16 %v4081
    %v4146 = vunpack.c.l.b16 %v4082
    %v4147 = vunpack.c.l.b16 %v4083
    %v4148 = vunpack.c.l.b16 %v4084
    %v4149 = vunpack.c.l.b16 %v4085
    %v4150 = vunpack.c.l.b16 %v4086
    %v4151 = vpack.c.b16 %v4120, %v4119
    %v4152 = vpack.c.b16 %v4122, %v4121
    %v4153 = vpack.c.b16 %v4124, %v4123
    %v4154 = vpack.c.b16 %v4126, %v4125
    %v4155 = vpack.c.b16 %v4128, %v4127
    %v4156 = vpack.c.b16 %v4130, %v4129
    %v4157 = vpack.c.b16 %v4132, %v4131
    %v4158 = vpack.c.b16 %v4134, %v4133
    %v4159 = vpack.c.b16 %v4136, %v4135
    %v4160 = vpack.c.b16 %v4138, %v4137
    %v4161 = vpack.c.b16 %v4140, %v4139
    %v4162 = vpack.c.b16 %v4142, %v4141
    %v4163 = vpack.c.b16 %v4144, %v4143
    %v4164 = vpack.c.b16 %v4146, %v4145
    %v4165 = vpack.c.b16 %v4148, %v4147
    %v4166 = vpack.c.b16 %v4150, %v4149
    %4183 = vmatprep.subr.bf16.mxu0 0
    %4184 = vmatpush1.bf16.msra.mxu0 %v4151
    %4185 = vmatprep.subr.bf16.mxu0 0
    %4186 = vmatpush1.bf16.msra.mxu0 %v4152
    %4187 = vmatprep.subr.bf16.mxu0 0
    %4188 = vmatpush1.bf16.msra.mxu0 %v4153
    %4189 = vmatprep.subr.bf16.mxu0 0
    %4190 = vmatpush1.bf16.msra.mxu0 %v4154
    %4191 = vmatprep.subr.bf16.mxu0 0
    %4192 = vmatpush1.bf16.msra.mxu0 %v4155
    %4193 = vmatprep.subr.bf16.mxu0 0
    %4194 = vmatpush1.bf16.msra.mxu0 %v4156
    %4195 = vmatprep.subr.bf16.mxu0 0
    %4196 = vmatpush1.bf16.msra.mxu0 %v4157
    %4197 = vmatprep.subr.bf16.mxu0 0
    %4198 = vmatpush1.bf16.msra.mxu0 %v4158
    %4199 = vmatprep.subr.bf16.mxu0 0
    %4200 = vmatpush1.bf16.msra.mxu0 %v4159
    %4201 = vmatprep.subr.bf16.mxu0 0
    %4202 = vmatpush1.bf16.msra.mxu0 %v4160
    %4203 = vmatprep.subr.bf16.mxu0 0
    %4204 = vmatpush1.bf16.msra.mxu0 %v4161
    %4205 = vmatprep.subr.bf16.mxu0 0
    %4206 = vmatpush1.bf16.msra.mxu0 %v4162
    %4207 = vmatprep.subr.bf16.mxu0 0
    %4208 = vmatpush1.bf16.msra.mxu0 %v4163
    %4209 = vmatprep.subr.bf16.mxu0 0
    %4210 = vmatpush1.bf16.msra.mxu0 %v4164
    %4211 = vmatprep.subr.bf16.mxu0 0
    %4212 = vmatpush1.bf16.msra.mxu0 %v4165
    %4213 = vmatprep.subr.bf16.mxu0 0
    %4214 = vmatpush1.bf16.msra.mxu0 %v4166
    %4215 = vmatprep.mubr.bf16.mxu0 %v4040
    %4216 = vmatmul.mubr.bf16.gmra.mrb[0].mxu0 %v4039
    %v4217 = vpop.f32.mrb[0].mxu0
    %v4218 = vadd.f32 0.0, %v4217
    %v4219 = vpop.f32.mrb[0].mxu0
    %v4220 = vpop.f32.mrb[0].mxu0
    %v4221 = vadd.f32 0.0, %v4220
    %v4222 = vpop.f32.mrb[0].mxu0
    %4223 = vmatprep.mubr.bf16.mxu0 %v4042
    %4224 = vmatmul.mubr.bf16.gmra.mrb[0].mxu0 %v4041
    %v4225 = vpop.f32.mrb[0].mxu0
    %v4226 = vadd.f32 0.0, %v4225
    %v4227 = vpop.f32.mrb[0].mxu0
    %v4228 = vpop.f32.mrb[0].mxu0
    %v4229 = vadd.f32 0.0, %v4228
    %v4230 = vpop.f32.mrb[0].mxu0
    %4231 = vmatprep.mubr.bf16.mxu0 %v4044
    %4232 = vmatmul.mubr.bf16.gmra.mrb[0].mxu0 %v4043
    %v4233 = vpop.f32.mrb[0].mxu0
    %v4234 = vadd.f32 0.0, %v4233
    %v4235 = vpop.f32.mrb[0].mxu0
    %v4236 = vpop.f32.mrb[0].mxu0
    %v4237 = vadd.f32 0.0, %v4236
    %v4238 = vpop.f32.mrb[0].mxu0
    %4239 = vmatprep.mubr.bf16.mxu0 %v4046
    %4240 = vmatmul.mubr.bf16.gmra.mrb[0].mxu0 %v4045
    %v4241 = vpop.f32.mrb[0].mxu0
    %v4242 = vadd.f32 0.0, %v4241
    %v4243 = vpop.f32.mrb[0].mxu0
    %v4244 = vpop.f32.mrb[0].mxu0
    %v4245 = vadd.f32 0.0, %v4244
    %v4246 = vpop.f32.mrb[0].mxu0
    %4247 = vmatprep.mubr.bf16.mxu0 %v4048
    %4248 = vmatmul.mubr.bf16.gmra.mrb[0].mxu0 %v4047
    %v4249 = vpop.f32.mrb[0].mxu0
    %v4250 = vadd.f32 0.0, %v4249
    %v4251 = vpop.f32.mrb[0].mxu0
    %v4252 = vpop.f32.mrb[0].mxu0
    %v4253 = vadd.f32 0.0, %v4252
    %v4254 = vpop.f32.mrb[0].mxu0
    %4255 = vmatprep.mubr.bf16.mxu0 %v4050
    %4256 = vmatmul.mubr.bf16.gmra.mrb[0].mxu0 %v4049
    %v4257 = vpop.f32.mrb[0].mxu0
    %v4258 = vadd.f32 0.0, %v4257
    %v4259 = vpop.f32.mrb[0].mxu0
    %v4260 = vpop.f32.mrb[0].mxu0
    %v4261 = vadd.f32 0.0, %v4260
    %v4262 = vpop.f32.mrb[0].mxu0
    %4263 = vmatprep.mubr.bf16.mxu0 %v4052
    %4264 = vmatmul.mubr.bf16.gmra.mrb[0].mxu0 %v4051
    %v4265 = vpop.f32.mrb[0].mxu0
    %v4266 = vadd.f32 0.0, %v4265
    %v4267 = vpop.f32.mrb[0].mxu0
    %v4268 = vpop.f32.mrb[0].mxu0
    %v4269 = vadd.f32 0.0, %v4268
    %v4270 = vpop.f32.mrb[0].mxu0
    %4271 = vmatprep.mubr.bf16.mxu0 %v4054
    %4272 = vmatmul.mubr.bf16.gmra.mrb[0].mxu0 %v4053
    %v4273 = vpop.f32.mrb[0].mxu0
    %v4274 = vadd.f32 0.0, %v4273
    %v4275 = vpop.f32.mrb[0].mxu0
    %v4276 = vpop.f32.mrb[0].mxu0
    %v4277 = vadd.f32 0.0, %v4276
    %v4278 = vpop.f32.mrb[0].mxu0
    %4279 = vdwg.mxu0
    %s4280 = sld [smem:[#allocation5 + $0x4]]
    %vm4281 = vcmp.ge.f32.partialorder %v4218, 0.0
    %vm4282 = vcmp.ge.f32.partialorder %v4221, 0.0
    %vm4283 = vcmp.ge.f32.partialorder %v4226, 0.0
    %vm4284 = vcmp.ge.f32.partialorder %v4229, 0.0
    %vm4285 = vcmp.ge.f32.partialorder %v4234, 0.0
    %vm4286 = vcmp.ge.f32.partialorder %v4237, 0.0
    %vm4287 = vcmp.ge.f32.partialorder %v4242, 0.0
    %vm4288 = vcmp.ge.f32.partialorder %v4245, 0.0
    %vm4289 = vcmp.ge.f32.partialorder %v4250, 0.0
    %vm4290 = vcmp.ge.f32.partialorder %v4253, 0.0
    %vm4291 = vcmp.ge.f32.partialorder %v4258, 0.0
    %vm4292 = vcmp.ge.f32.partialorder %v4261, 0.0
    %vm4293 = vcmp.ge.f32.partialorder %v4266, 0.0
    %vm4294 = vcmp.ge.f32.partialorder %v4269, 0.0
    %vm4295 = vcmp.ge.f32.partialorder %v4274, 0.0
    %vm4296 = vcmp.ge.f32.partialorder %v4277, 0.0
    %v4297 = vstv %s4280
    %v4298 = vmul.f32 %v4297, %v4218
    %v4299 = vmul.f32 %v4297, %v4221
    %v4300 = vmul.f32 %v4297, %v4226
    %v4301 = vmul.f32 %v4297, %v4229
    %v4302 = vmul.f32 %v4297, %v4234
    %v4303 = vmul.f32 %v4297, %v4237
    %v4304 = vmul.f32 %v4297, %v4242
    %v4305 = vmul.f32 %v4297, %v4245
    %v4306 = vmul.f32 %v4297, %v4250
    %v4307 = vmul.f32 %v4297, %v4253
    %v4308 = vmul.f32 %v4297, %v4258
    %v4309 = vmul.f32 %v4297, %v4261
    %v4310 = vmul.f32 %v4297, %v4266
    %v4311 = vmul.f32 %v4297, %v4269
    %v4312 = vmul.f32 %v4297, %v4274
    %v4313 = vmul.f32 %v4297, %v4277
    %v4314 = vsel %vm4281, %v4218, %v4298
    %v4315 = vsel %vm4282, %v4221, %v4299
    %v4316 = vsel %vm4283, %v4226, %v4300
    %v4317 = vsel %vm4284, %v4229, %v4301
    %v4318 = vsel %vm4285, %v4234, %v4302
    %v4319 = vsel %vm4286, %v4237, %v4303
    %v4320 = vsel %vm4287, %v4242, %v4304
    %v4321 = vsel %vm4288, %v4245, %v4305
    %v4322 = vsel %vm4289, %v4250, %v4306
    %v4323 = vsel %vm4290, %v4253, %v4307
    %v4324 = vsel %vm4291, %v4258, %v4308
    %v4325 = vsel %vm4292, %v4261, %v4309
    %v4326 = vsel %vm4293, %v4266, %v4310
    %v4327 = vsel %vm4294, %v4269, %v4311
    %v4328 = vsel %vm4295, %v4274, %v4312
    %v4329 = vsel %vm4296, %v4277, %v4313
    %4346 = vrot.lane.b32.xlu0 %v4314, 32
    %v4347 = vpop.permute.xlu0 %4346
    %4348 = vrot.lane.b32.xlu0 %v4315, 32
    %v4349 = vpop.permute.xlu0 %4348
    %4350 = vrot.lane.b32.xlu0 %v4316, 32
    %v4351 = vpop.permute.xlu0 %4350
    %4352 = vrot.lane.b32.xlu0 %v4317, 32
    %v4353 = vpop.permute.xlu0 %4352
    %4354 = vrot.lane.b32.xlu0 %v4318, 32
    %v4355 = vpop.permute.xlu0 %4354
    %4356 = vrot.lane.b32.xlu0 %v4319, 32
    %v4357 = vpop.permute.xlu0 %4356
    %4358 = vrot.lane.b32.xlu0 %v4320, 32
    %v4359 = vpop.permute.xlu0 %4358
    %4360 = vrot.lane.b32.xlu0 %v4321, 32
    %v4361 = vpop.permute.xlu0 %4360
    %4362 = vrot.lane.b32.xlu0 %v4322, 32
    %v4363 = vpop.permute.xlu0 %4362
    %4364 = vrot.lane.b32.xlu0 %v4323, 32
    %v4365 = vpop.permute.xlu0 %4364
    %4366 = vrot.lane.b32.xlu0 %v4324, 32
    %v4367 = vpop.permute.xlu0 %4366
    %4368 = vrot.lane.b32.xlu0 %v4325, 32
    %v4369 = vpop.permute.xlu0 %4368
    %4370 = vrot.lane.b32.xlu0 %v4326, 32
    %v4371 = vpop.permute.xlu0 %4370
    %4372 = vrot.lane.b32.xlu0 %v4327, 32
    %v4373 = vpop.permute.xlu0 %4372
    %4374 = vrot.lane.b32.xlu0 %v4328, 32
    %v4375 = vpop.permute.xlu0 %4374
    %4376 = vrot.lane.b32.xlu0 %v4329, 32
    %v4377 = vpop.permute.xlu0 %4376
    %v4394 = vadd.f32 %v60, %v4347
    %v4395 = vadd.f32 %v61, %v4349
    %v4396 = vadd.f32 %v62, %v4351
    %v4397 = vadd.f32 %v63, %v4353
    %v4398 = vadd.f32 %v64, %v4355
    %v4399 = vadd.f32 %v65, %v4357
    %v4400 = vadd.f32 %v66, %v4359
    %v4401 = vadd.f32 %v67, %v4361
    %v4402 = vadd.f32 %v68, %v4363
    %v4403 = vadd.f32 %v69, %v4365
    %v4404 = vadd.f32 %v70, %v4367
    %v4405 = vadd.f32 %v71, %v4369
    %v4406 = vadd.f32 %v72, %v4371
    %v4407 = vadd.f32 %v73, %v4373
    %v4408 = vadd.f32 %v74, %v4375
    %v4409 = vadd.f32 %v75, %v4377
    %vm4410 = vcmask 261120
    %v4411 = vsel %vm4410, %v60, %v4394
    %v4412 = vsel %vm4410, %v61, %v4395
    %v4413 = vsel %vm4410, %v62, %v4396
    %v4414 = vsel %vm4410, %v63, %v4397
    %v4415 = vsel %vm4410, %v64, %v4398
    %v4416 = vsel %vm4410, %v65, %v4399
    %v4417 = vsel %vm4410, %v66, %v4400
    %v4418 = vsel %vm4410, %v67, %v4401
    %v4419 = vsel %vm4410, %v68, %v4402
    %v4420 = vsel %vm4410, %v69, %v4403
    %v4421 = vsel %vm4410, %v70, %v4404
    %v4422 = vsel %vm4410, %v71, %v4405
    %v4423 = vsel %vm4410, %v72, %v4406
    %v4424 = vsel %vm4410, %v73, %v4407
    %v4425 = vsel %vm4410, %v74, %v4408
    %v4426 = vsel %vm4410, %v75, %v4409
    %v4427 = vsel %vm248, %v4411, %v4347
    %v4428 = vsel %vm248, %v4412, %v4349
    %v4429 = vsel %vm248, %v4413, %v4351
    %v4430 = vsel %vm248, %v4414, %v4353
    %v4431 = vsel %vm248, %v4415, %v4355
    %v4432 = vsel %vm248, %v4416, %v4357
    %v4433 = vsel %vm248, %v4417, %v4359
    %v4434 = vsel %vm248, %v4418, %v4361
    %v4435 = vsel %vm248, %v4419, %v4363
    %v4436 = vsel %vm248, %v4420, %v4365
    %v4437 = vsel %vm248, %v4421, %v4367
    %v4438 = vsel %vm248, %v4422, %v4369
    %v4439 = vsel %vm248, %v4423, %v4371
    %v4440 = vsel %vm248, %v4424, %v4373
    %v4441 = vsel %vm248, %v4425, %v4375
    %v4442 = vsel %vm248, %v4426, %v4377
    %vm4443 = vcmask 785408
    %v4444 = vsel %vm4443, %v4427, 0.0
    %v4445 = vsel %vm4443, %v4428, 0.0
    %v4446 = vsel %vm4443, %v4429, 0.0
    %v4447 = vsel %vm4443, %v4430, 0.0
    %v4448 = vsel %vm4443, %v4431, 0.0
    %v4449 = vsel %vm4443, %v4432, 0.0
    %v4450 = vsel %vm4443, %v4433, 0.0
    %v4451 = vsel %vm4443, %v4434, 0.0
    %v4452 = vsel %vm4443, %v4435, 0.0
    %v4453 = vsel %vm4443, %v4436, 0.0
    %v4454 = vsel %vm4443, %v4437, 0.0
    %v4455 = vsel %vm4443, %v4438, 0.0
    %v4456 = vsel %vm4443, %v4439, 0.0
    %v4457 = vsel %vm4443, %v4440, 0.0
    %v4458 = vsel %vm4443, %v4441, 0.0
    %v4459 = vsel %vm4443, %v4442, 0.0
    %4460 = vst [vmem:[%s9] sm:$0xff] %v4444
    %4461 = vst [vmem:[%s9 + $0x8] sm:$0xff] %v4445
    %4462 = vst [vmem:[%s9 + $0x10] sm:$0xff] %v4446
    %4463 = vst [vmem:[%s9 + $0x18] sm:$0xff] %v4447
    %4464 = vst [vmem:[%s9 + $0x20] sm:$0xff] %v4448
    %4465 = vst [vmem:[%s9 + $0x28] sm:$0xff] %v4449
    %4466 = vst [vmem:[%s9 + $0x30] sm:$0xff] %v4450
    %4467 = vst [vmem:[%s9 + $0x38] sm:$0xff] %v4451
    %4468 = vst [vmem:[%s9 + $0x40] sm:$0xff] %v4452
    %4469 = vst [vmem:[%s9 + $0x48] sm:$0xff] %v4453
    %4470 = vst [vmem:[%s9 + $0x50] sm:$0xff] %v4454
    %4471 = vst [vmem:[%s9 + $0x58] sm:$0xff] %v4455
    %4472 = vst [vmem:[%s9 + $0x60] sm:$0xff] %v4456
    %4473 = vst [vmem:[%s9 + $0x68] sm:$0xff] %v4457
    %4474 = vst [vmem:[%s9 + $0x70] sm:$0xff] %v4458
    %4475 = vst [vmem:[%s9 + $0x78] sm:$0xff] %v4459
    // Predicated region
    $region46: #{make_mix_forward.1} parent=1 // pred_check
      _
    $region47: #{make_mix_forward.1} parent=1 // pred_check_branch
      %4477 = sbr.rel (0) target = $region49
    $region48: #{make_mix_forward.1} parent=1 // pred_region
      _
    $region49: #{make_mix_forward.1} parent=1 // pred_fallthru
      _
    // Predicated region
    $region50: #{make_mix_forward.1} parent=1 // pred_check
      _
    $region51: #{make_mix_forward.1} parent=1 // pred_check_branch
      %4479 = sbr.rel (0) target = $region53
    $region52: #{make_mix_forward.1} parent=1 // pred_region
      _
    $region53: #{make_mix_forward.1} parent=1 // pred_fallthru
      _
    %4480 = vsyncpa [#allocation3], 1
    %4481 = vsyncpa [#allocation4], 1

</llo_original>
